<compile_context>
chip_gen: v7x
topology: tpu7x:2x2x1
jax: 0.10.0
libtpu: 0.0.40
codegen_flags: <defaults>
</compile_context>

<pallas_src>
import collections
import functools
import math

import jax
import jax.numpy as jnp
from jax.experimental import pallas as pl
from jax.experimental.pallas import tpu as pltpu

# ------------------------------------------------------------------ config --

GlobalParams = collections.namedtuple(
    "GlobalParams",
    ["batch_norm_momentum", "batch_norm_epsilon", "image_size", "dropout_rate",
     "num_classes", "width_coefficient", "depth_coefficient", "depth_divisor",
     "min_depth", "drop_connect_rate"])

BlockArgs = collections.namedtuple(
    "BlockArgs",
    ["kernel_size", "num_repeat", "input_filters", "output_filters",
     "expand_ratio", "id_skip", "stride", "se_ratio"])

GP = GlobalParams(batch_norm_momentum=0.99, batch_norm_epsilon=1e-3, image_size=16,
                  dropout_rate=0.2, num_classes=10, width_coefficient=0.25,
                  depth_coefficient=None, depth_divisor=8, min_depth=None,
                  drop_connect_rate=0.0)

BLOCKS_ARGS = [
    BlockArgs(kernel_size=3, num_repeat=1, input_filters=32, output_filters=16,
              expand_ratio=1, id_skip=True, stride=2, se_ratio=0.25),
    BlockArgs(kernel_size=3, num_repeat=2, input_filters=16, output_filters=24,
              expand_ratio=6, id_skip=True, stride=1, se_ratio=0.25),
]

# set externally by the RetinaNet wrapper in the original code (empty in __init__)
SOURCE_LAYER_INDEXES = [1, 2]

BN_EPS = GP.batch_norm_epsilon


def round_filters(filters, width_coefficient, depth_divisor=8, min_depth=None):
    if not width_coefficient:
        return filters
    filters *= width_coefficient
    min_depth = min_depth or depth_divisor
    new_filters = max(min_depth,
                      int(filters + depth_divisor / 2) // depth_divisor * depth_divisor)
    if new_filters < 0.9 * filters:
        new_filters += depth_divisor
    return int(new_filters)


def round_repeats(repeats, depth_coefficient):
    if not depth_coefficient:
        return repeats
    return int(math.ceil(depth_coefficient * repeats))


# ---------------------------------------------------------- Pallas kernels --

def _swish(x):
    return x * jax.nn.sigmoid(x)


def _mm_bn_act_kernel(x_ref, w_ref, s_ref, t_ref, o_ref, *, act):
    """y = swish?((x @ W) * bn_scale + bn_shift); bf16 MXU inputs, f32 accumulate."""
    y = jnp.dot(x_ref[...].astype(jnp.bfloat16), w_ref[...],
                preferred_element_type=jnp.float32)
    y = y * s_ref[...] + t_ref[...]
    if act:
        y = _swish(y)
    o_ref[...] = y.astype(o_ref.dtype)


def _se_project(y, w1_ref, b1_ref, w2_ref, b2_ref, pw_ref, s2_ref, t2_ref):
    """Fused Squeeze-Excite gate + project 1x1 + BN2 on a (rows, Cexp) value.

    SE squeeze/expand are tiny (Cs <= a few) -> plain f32 dots; the project matmul
    feeds the MXU with bf16 operands and accumulates in f32.
    """
    pooled = jnp.mean(y, axis=0, keepdims=True)                       # (1, Cexp)
    z = jnp.dot(pooled, w1_ref[...], preferred_element_type=jnp.float32) + b1_ref[...]
    z = _swish(z)
    z = jnp.dot(z, w2_ref[...], preferred_element_type=jnp.float32) + b2_ref[...]
    y = y * jax.nn.sigmoid(z)                                         # sublane-broadcast gate
    p = jnp.dot(y.astype(jnp.bfloat16), pw_ref[...],
                preferred_element_type=jnp.float32)                   # (rows, Cout)
    return p * s2_ref[...] + t2_ref[...]


def _mbconv_dw_kernel(taps_ref, dw_ref, s1_ref, t1_ref,
                      w1_ref, b1_ref, w2_ref, b2_ref,
                      pw_ref, s2_ref, t2_ref, o_ref):
    """No-expand MBConv (one batch item / grid step), fully fused:
    depthwise (pre-gathered taps) + BN1 + swish + SE + project + BN2."""
    kk = taps_ref.shape[1]
    hw, cexp = taps_ref.shape[2], taps_ref.shape[3]
    wd = dw_ref[...].astype(jnp.float32)                              # (KK, Cexp)
    acc = jnp.zeros((hw, cexp), jnp.float32)
    for t in range(kk):                                               # static K*K loop
        acc = acc + taps_ref[0, t].astype(jnp.float32) * wd[t:t + 1, :]
    y = _swish(acc * s1_ref[...] + t1_ref[...])
    p = _se_project(y, w1_ref, b1_ref, w2_ref, b2_ref, pw_ref, s2_ref, t2_ref)
    o_ref[0] = p.astype(o_ref.dtype)


def _mbconv_full_kernel(x_ref, ew_ref, s0_ref, t0_ref, dw_ref, s1_ref, t1_ref,
                        w1_ref, b1_ref, w2_ref, b2_ref, pw_ref, s2_ref, t2_ref,
                        o_ref, xp_ref, y_ref, *, h, w, k, pad_t, pad_l, skip):
    """Fully-fused stride-1 MBConv (one batch item / grid step):
    expand 1x1 -> BN0+swish -> zero-pad into VMEM scratch -> depthwise kxk ->
    BN1+swish -> SE -> project 1x1 -> BN2 (+identity skip).
    The expanded activation never leaves VMEM."""
    xin = x_ref[0].astype(jnp.float32)                                # (H*W, Cin)
    # expand 1x1 conv + BN0 + swish
    e = jnp.dot(xin.astype(jnp.bfloat16), ew_ref[...],
                preferred_element_type=jnp.float32)
    e = _swish(e * s0_ref[...] + t0_ref[...])                         # (H*W, Cexp)
    cexp = e.shape[1]
    # zero-padded spatial buffer in VMEM, written row by row (no value reshapes)
    xp_ref[...] = jnp.zeros(xp_ref.shape, xp_ref.dtype)
    for r in range(h):
        xp_ref[pad_t + r, pad_l:pad_l + w, :] = e[r * w:(r + 1) * w, :]
    # depthwise kxk (stride 1): contiguous in-VMEM tap slices, accumulated per output row
    wd = dw_ref[...].astype(jnp.float32)                              # (k*k, Cexp)
    for r in range(h):
        row = jnp.zeros((w, cexp), jnp.float32)
        for kh in range(k):
            for kw in range(k):
                row = row + xp_ref[r + kh, kw:kw + w, :] * wd[kh * k + kw:kh * k + kw + 1, :]
        y_ref[r * w:(r + 1) * w, :] = row
    y = _swish(y_ref[...] * s1_ref[...] + t1_ref[...])                # (H*W, Cexp)
    p = _se_project(y, w1_ref, b1_ref, w2_ref, b2_ref, pw_ref, s2_ref, t2_ref)
    if skip:
        p = p + xin
    o_ref[0] = p.astype(o_ref.dtype)


# ----------------------------------------------------------- kernel wrappers --

def _pick_tm(m):
    """Row-tile size: prefer 256-512 rows; at small M split in two (megacore)."""
    for tm in (512, 256):
        if m % tm == 0 and m // tm >= 2:
            return tm
    if m % 16 == 0 and m >= 32:
        return m // 2
    return m


def _matmul_bn_act(x2d, w, scale, shift, *, act):
    m, kdim = x2d.shape
    cout = w.shape[1]
    tm = _pick_tm(m)
    kernel = functools.partial(_mm_bn_act_kernel, act=act)
    return pl.pallas_call(
        kernel,
        out_shape=jax.ShapeDtypeStruct((m, cout), jnp.float32),
        grid=(m // tm,),
        in_specs=[
            pl.BlockSpec((tm, kdim), lambda i: (i, 0)),
            pl.BlockSpec((kdim, cout), lambda i: (0, 0)),
            pl.BlockSpec((1, cout), lambda i: (0, 0)),
            pl.BlockSpec((1, cout), lambda i: (0, 0)),
        ],
        out_specs=pl.BlockSpec((tm, cout), lambda i: (i, 0)),
        compiler_params=pltpu.CompilerParams(dimension_semantics=("parallel",)),
    )(x2d, w, scale.reshape(1, cout), shift.reshape(1, cout))


def _mbconv_dw_block(taps, dw_w, s1, t1, se_w1, se_b1, se_w2, se_b2, pw, s2, t2):
    n, kk, hw, cexp = taps.shape
    cout = pw.shape[1]
    nsq = se_w1.shape[1]
    return pl.pallas_call(
        _mbconv_dw_kernel,
        out_shape=jax.ShapeDtypeStruct((n, hw, cout), jnp.float32),
        grid=(n,),
        in_specs=[
            pl.BlockSpec((1, kk, hw, cexp), lambda i: (i, 0, 0, 0)),
            pl.BlockSpec((kk, cexp), lambda i: (0, 0)),
            pl.BlockSpec((1, cexp), lambda i: (0, 0)),
            pl.BlockSpec((1, cexp), lambda i: (0, 0)),
            pl.BlockSpec((cexp, nsq), lambda i: (0, 0)),
            pl.BlockSpec((1, nsq), lambda i: (0, 0)),
            pl.BlockSpec((nsq, cexp), lambda i: (0, 0)),
            pl.BlockSpec((1, cexp), lambda i: (0, 0)),
            pl.BlockSpec((cexp, cout), lambda i: (0, 0)),
            pl.BlockSpec((1, cout), lambda i: (0, 0)),
            pl.BlockSpec((1, cout), lambda i: (0, 0)),
        ],
        out_specs=pl.BlockSpec((1, hw, cout), lambda i: (i, 0, 0)),
        compiler_params=pltpu.CompilerParams(dimension_semantics=("parallel",)),
    )(taps, dw_w, s1.reshape(1, cexp), t1.reshape(1, cexp),
      se_w1, se_b1.reshape(1, nsq), se_w2, se_b2.reshape(1, cexp),
      pw, s2.reshape(1, cout), t2.reshape(1, cout))


def _mbconv_full_block(x_flat, ew, s0, t0, dw_w, s1, t1,
                       se_w1, se_b1, se_w2, se_b2, pw, s2, t2,
                       *, h, w, k, skip):
    n, hw, cin = x_flat.shape
    cexp = ew.shape[1]
    cout = pw.shape[1]
    nsq = se_w1.shape[1]
    hp, wp = h + k - 1, w + k - 1                      # stride-1 TF 'SAME'
    pad_t, pad_l = (k - 1) // 2, (k - 1) // 2
    kernel = functools.partial(_mbconv_full_kernel, h=h, w=w, k=k,
                               pad_t=pad_t, pad_l=pad_l, skip=skip)
    return pl.pallas_call(
        kernel,
        out_shape=jax.ShapeDtypeStruct((n, hw, cout), jnp.float32),
        grid=(n,),
        in_specs=[
            pl.BlockSpec((1, hw, cin), lambda i: (i, 0, 0)),
            pl.BlockSpec((cin, cexp), lambda i: (0, 0)),
            pl.BlockSpec((1, cexp), lambda i: (0, 0)),
            pl.BlockSpec((1, cexp), lambda i: (0, 0)),
            pl.BlockSpec((k * k, cexp), lambda i: (0, 0)),
            pl.BlockSpec((1, cexp), lambda i: (0, 0)),
            pl.BlockSpec((1, cexp), lambda i: (0, 0)),
            pl.BlockSpec((cexp, nsq), lambda i: (0, 0)),
            pl.BlockSpec((1, nsq), lambda i: (0, 0)),
            pl.BlockSpec((nsq, cexp), lambda i: (0, 0)),
            pl.BlockSpec((1, cexp), lambda i: (0, 0)),
            pl.BlockSpec((cexp, cout), lambda i: (0, 0)),
            pl.BlockSpec((1, cout), lambda i: (0, 0)),
            pl.BlockSpec((1, cout), lambda i: (0, 0)),
        ],
        out_specs=pl.BlockSpec((1, hw, cout), lambda i: (i, 0, 0)),
        scratch_shapes=[pltpu.VMEM((hp, wp, cexp), jnp.float32),   # padded expanded act
                        pltpu.VMEM((hw, cexp), jnp.float32)],      # depthwise output
        compiler_params=pltpu.CompilerParams(dimension_semantics=("parallel",)),
    )(x_flat, ew, s0.reshape(1, cexp), t0.reshape(1, cexp),
      dw_w, s1.reshape(1, cexp), t1.reshape(1, cexp),
      se_w1, se_b1.reshape(1, nsq), se_w2, se_b2.reshape(1, cexp),
      pw, s2.reshape(1, cout), t2.reshape(1, cout))


# ------------------------------------------------------------------- glue --

def _tf_same_pad(x, k, stride):
    """TF 'SAME' padding (Conv2dSamePadding): extra pad goes to bottom/right. x: NHWC."""
    _, hh, ww, _ = x.shape
    ho = -(-hh // stride)
    wo = -(-ww // stride)
    ph = max((ho - 1) * stride + k - hh, 0)
    pw = max((wo - 1) * stride + k - ww, 0)
    return jnp.pad(x, ((0, 0), (ph // 2, ph - ph // 2), (pw // 2, pw - pw // 2), (0, 0)))


def _extract_taps(x_nhwc, k, stride):
    """NHWC -> (N, k*k, Ho, Wo, C) taps ordered (kh, kw). Tiny pure-layout glue,
    used only where the depthwise input is already an HBM tensor (stem / block 0)."""
    xp = _tf_same_pad(x_nhwc, k, stride)
    _, hp, wp, _ = xp.shape
    ho = (hp - k) // stride + 1
    wo = (wp - k) // stride + 1
    taps = [xp[:, kh:kh + stride * (ho - 1) + 1:stride,
                  kw:kw + stride * (wo - 1) + 1:stride, :]
            for kh in range(k) for kw in range(k)]
    return jnp.stack(taps, axis=1), ho, wo


def _bn_affine(bn):
    gamma, beta, mean, var = bn
    scale = gamma * jax.lax.rsqrt(var + BN_EPS)
    shift = beta - mean * scale
    return scale, shift


# ------------------------------------------------------------- parameters --

def _conv_w(key, cin, cout, k, dtype=jnp.bfloat16):
    """Conv weight in PyTorch OIHW, converted to (k*k*cin, cout), (kh,kw,ci) row order."""
    w_oihw = 0.1 * jax.random.normal(key, (cout, cin, k, k), jnp.float32)
    return jnp.transpose(w_oihw, (2, 3, 1, 0)).reshape(k * k * cin, cout).astype(dtype)


def _dw_w(key, c, k):
    """Depthwise conv weight in PyTorch (C,1,k,k), converted to (k*k, C)."""
    w = 0.1 * jax.random.normal(key, (c, 1, k, k), jnp.float32)
    return jnp.transpose(w, (2, 3, 1, 0)).reshape(k * k, c)


def _bn_params(key, c):
    kg, kb = jax.random.split(key)
    gamma = 1.0 + 0.1 * jax.random.normal(kg, (c,), jnp.float32)
    beta = 0.1 * jax.random.normal(kb, (c,), jnp.float32)
    return gamma, beta, jnp.zeros((c,), jnp.float32), jnp.ones((c,), jnp.float32)


def _init_mbconv(key, ba):
    ks = iter(jax.random.split(key, 16))
    inp = ba.input_filters
    oup = inp * ba.expand_ratio
    p = {}
    if ba.expand_ratio != 1:
        p["expand_w"] = _conv_w(next(ks), inp, oup, 1)                 # bf16 MXU weight
        p["bn0"] = _bn_params(next(ks), oup)
    p["dw_w"] = _dw_w(next(ks), oup, ba.kernel_size)                   # f32 (VPU)
    p["bn1"] = _bn_params(next(ks), oup)
    # TODO(synk): blocks without SE (se_ratio None/0) would need a variant kernel
    #             without the SE refs; every block in this config has SE.
    n_sq = max(1, int(ba.input_filters * ba.se_ratio))
    p["se_w1"] = _conv_w(next(ks), oup, n_sq, 1, dtype=jnp.float32)
    p["se_b1"] = 0.1 * jax.random.normal(next(ks), (n_sq,), jnp.float32)
    p["se_w2"] = _conv_w(next(ks), n_sq, oup, 1, dtype=jnp.float32)
    p["se_b2"] = 0.1 * jax.random.normal(next(ks), (oup,), jnp.float32)
    p["project_w"] = _conv_w(next(ks), oup, ba.output_filters, 1)      # bf16 MXU weight
    p["bn2"] = _bn_params(next(ks), ba.output_filters)
    return p


def build_params(key, blocks_args, gp):
    wc, dc = gp.width_coefficient, gp.depth_coefficient
    keys = iter(jax.random.split(key, 64))
    params = {}
    stem_out = round_filters(32, wc, gp.depth_divisor, gp.min_depth)
    params["stem"] = {"w": _conv_w(next(keys), 3, stem_out, 3),
                      "bn": _bn_params(next(keys), stem_out)}
    block_params, block_cfgs = [], []
    for ba in blocks_args:
        ba = ba._replace(
            input_filters=round_filters(ba.input_filters, wc, gp.depth_divisor, gp.min_depth),
            output_filters=round_filters(ba.output_filters, wc, gp.depth_divisor, gp.min_depth),
            num_repeat=round_repeats(ba.num_repeat, dc))
        block_cfgs.append(ba)
        block_params.append(_init_mbconv(next(keys), ba))
        if ba.num_repeat > 1:
            ba = ba._replace(input_filters=ba.output_filters, stride=1)
        for _ in range(ba.num_repeat - 1):
            block_cfgs.append(ba)
            block_params.append(_init_mbconv(next(keys), ba))
    head_in = block_cfgs[-1].output_filters
    head_out = round_filters(1280, wc, gp.depth_divisor, gp.min_depth)
    params["head"] = {"w": _conv_w(next(keys), head_in, head_out, 1),
                      "bn": _bn_params(next(keys), head_out)}
    params["blocks"] = block_params
    return params, block_cfgs


# ---------------------------------------------------------------- forward --

def mbconv_forward(p, ba, x_flat, h, w):
    """x_flat: (N, H*W, Cin) channels-last rows. Returns (out_flat, Ho, Wo)."""
    n, hw, cin = x_flat.shape
    k, stride = ba.kernel_size, ba.stride
    s1, t1 = _bn_affine(p["bn1"])
    s2, t2 = _bn_affine(p["bn2"])
    use_skip = ba.id_skip and stride == 1 and ba.input_filters == ba.output_filters
    # drop_connect_rate == 0.0 in this config -> `if drop_connect_rate:` is False (exact match)

    if ba.expand_ratio != 1 and stride == 1:
        # Fully fused block: expand -> pad -> depthwise -> SE -> project (+skip),
        # expanded activation stays in VMEM for the whole block.
        s0, t0 = _bn_affine(p["bn0"])
        out = _mbconv_full_block(x_flat, p["expand_w"], s0, t0, p["dw_w"], s1, t1,
                                 p["se_w1"], p["se_b1"], p["se_w2"], p["se_b2"],
                                 p["project_w"], s2, t2,
                                 h=h, w=w, k=k, skip=use_skip)
        return out, h, w

    # No-expand (or strided-expand fallback) path: gather depthwise taps outside
    # (tiny tensor), then run depthwise+SE+project as one fused kernel.
    if ba.expand_ratio != 1:
        # TODO(synk): strided expand blocks (not in this config) use a separate expand matmul.
        s0, t0 = _bn_affine(p["bn0"])
        e = _matmul_bn_act(x_flat.reshape(n * hw, cin), p["expand_w"], s0, t0, act=True)
        x_sp = e.reshape(n, h, w, p["expand_w"].shape[1])
    else:
        x_sp = x_flat.reshape(n, h, w, cin)
    taps, ho, wo = _extract_taps(x_sp, k, stride)
    taps = taps.reshape(n, k * k, ho * wo, taps.shape[-1])
    out = _mbconv_dw_block(taps, p["dw_w"], s1, t1,
                           p["se_w1"], p["se_b1"], p["se_w2"], p["se_b2"],
                           p["project_w"], s2, t2)
    if use_skip:                      # never hit in this config (stride==2 here)
        out = out + x_flat
    return out, ho, wo


def efficientnet_forward(params, block_cfgs, gp, x_nchw):
    x = jnp.transpose(x_nchw, (0, 2, 3, 1)).astype(jnp.float32)       # NCHW -> NHWC
    n, _, _, cin = x.shape
    # stem: 3x3 stride-2 SAME conv (im2col glue on the tiny input + fused matmul kernel)
    taps, ho, wo = _extract_taps(x, 3, 2)                              # (N, 9, Ho, Wo, 3)
    cols = jnp.transpose(taps, (0, 2, 3, 1, 4)).reshape(n * ho * wo, 9 * cin)
    s, t = _bn_affine(params["stem"]["bn"])
    stem_out = params["stem"]["w"].shape[1]
    x_flat = _matmul_bn_act(cols, params["stem"]["w"], s, t, act=True)
    x_flat = x_flat.reshape(n, ho * wo, stem_out)
    h, w = ho, wo

    C3 = C4 = None
    c3_hw = c4_hw = None
    flag, pointer = 0, 0
    for idx, (p, ba) in enumerate(zip(params["blocks"], block_cfgs)):
        x_flat, h, w = mbconv_forward(p, ba, x_flat, h, w)
        if idx == SOURCE_LAYER_INDEXES[pointer] and flag == 0:
            C3, c3_hw = x_flat, (h, w)
            flag = 1
            pointer += 1
        if idx == SOURCE_LAYER_INDEXES[pointer]:
            C4, c4_hw = x_flat, (h, w)

    # head: 1x1 conv + BN + swish (lane-dense 320-wide output)
    cblk = x_flat.shape[-1]
    s, t = _bn_affine(params["head"]["bn"])
    head_out = params["head"]["w"].shape[1]
    y = _matmul_bn_act(x_flat.reshape(n * h * w, cblk), params["head"]["w"], s, t, act=True)
    x_out = y.reshape(n, h * w, head_out)
    C5 = x_out

    def to_nchw(a, hh, ww):
        return jnp.transpose(a.reshape(n, hh, ww, a.shape[-1]), (0, 3, 1, 2))

    return (to_nchw(x_out, h, w), to_nchw(C3, *c3_hw),
            to_nchw(C4, *c4_hw), to_nchw(C5, h, w))


# ------------------------------------------------------------------- main --

if __name__ == "__main__":
    key = jax.random.PRNGKey(0)
    kp, kx = jax.random.split(key)
    params, block_cfgs = build_params(kp, BLOCKS_ARGS, GP)
    inputs = jax.random.normal(kx, (2, 3, 16, 16), jnp.float32)        # NCHW, like PyTorch

    fwd = jax.jit(lambda inp: efficientnet_forward(params, block_cfgs, GP, inp))
    outs = jax.block_until_ready(fwd(inputs))
    x_out, C3, C4, C5 = outs
    assert x_out.shape == (2, 320, 4, 4) and C5.shape == (2, 320, 4, 4)
    assert C3.shape == (2, 8, 4, 4) and C4.shape == (2, 8, 4, 4)
    assert all(bool(jnp.all(jnp.isfinite(o))) for o in outs)
    print("KERNEL_OK")
</pallas_src>

<mosaic_0001>
module attributes {stable_mosaic.version = 11 : i64} {
  func.func @_mm_bn_act_kernel(%arg0: i32, %arg1: memref<64x27xf32, #tpu.memory_space<vmem>>, %arg2: memref<27x8xbf16, #tpu.memory_space<vmem>>, %arg3: memref<1x8xf32, #tpu.memory_space<vmem>>, %arg4: memref<1x8xf32, #tpu.memory_space<vmem>>, %arg5: memref<64x8xf32, #tpu.memory_space<vmem>>) attributes {dimension_semantics = [#tpu.dimension_semantics<parallel>], iteration_bounds = array<i64: 2>, scalar_prefetch = 0 : i64, scratch_operands = 0 : i64, tpu.core_type = #tpu.core_type<tc>, window_params = [{transform_indices = @transform_0, window_bounds = array<i64: 64, 27>}, {pipeline_mode = #tpu.pipeline_mode<synchronous>, transform_indices = @transform_1, window_bounds = array<i64: 27, 8>}, {pipeline_mode = #tpu.pipeline_mode<synchronous>, transform_indices = @transform_2, window_bounds = array<i64: 1, 8>}, {pipeline_mode = #tpu.pipeline_mode<synchronous>, transform_indices = @transform_3, window_bounds = array<i64: 1, 8>}, {transform_indices = @transform_4, window_bounds = array<i64: 64, 8>}]} {
    %c0 = arith.constant 0 : index
    %c0_0 = arith.constant 0 : index
    %0 = vector.load %arg1[%c0, %c0_0] : memref<64x27xf32, #tpu.memory_space<vmem>>, vector<64x27xf32>
    %1 = arith.truncf %0 : vector<64x27xf32> to vector<64x27xbf16>
    %c0_1 = arith.constant 0 : index
    %c0_2 = arith.constant 0 : index
    %2 = vector.load %arg2[%c0_1, %c0_2] : memref<27x8xbf16, #tpu.memory_space<vmem>>, vector<27x8xbf16>
    %cst = arith.constant dense<0.000000e+00> : vector<64x8xf32>
    %3 = tpu.matmul %1, %2, %cst {dimension_numbers = #tpu.dot_dimension_numbers<[1], [0], [0], [1], [0, 0, 1, 1], [], []>} : vector<64x27xbf16>, vector<27x8xbf16>, vector<64x8xf32> -> vector<64x8xf32>
    %c0_3 = arith.constant 0 : index
    %c0_4 = arith.constant 0 : index
    %4 = vector.load %arg3[%c0_3, %c0_4] : memref<1x8xf32, #tpu.memory_space<vmem>>, vector<1x8xf32>
    %5 = vector.broadcast %4 : vector<1x8xf32> to vector<64x8xf32>
    %6 = arith.mulf %3, %5 : vector<64x8xf32>
    %c0_5 = arith.constant 0 : index
    %c0_6 = arith.constant 0 : index
    %7 = vector.load %arg4[%c0_5, %c0_6] : memref<1x8xf32, #tpu.memory_space<vmem>>, vector<1x8xf32>
    %8 = vector.broadcast %7 : vector<1x8xf32> to vector<64x8xf32>
    %9 = arith.addf %6, %8 : vector<64x8xf32>
    %10 = arith.negf %9 : vector<64x8xf32>
    %11 = math.exp %10 : vector<64x8xf32>
    %cst_7 = arith.constant 1.000000e+00 : f32
    %12 = vector.broadcast %cst_7 : f32 to vector<64x8xf32>
    %13 = arith.addf %12, %11 : vector<64x8xf32>
    %14 = arith.divf %12, %13 : vector<64x8xf32>
    %15 = arith.mulf %9, %14 : vector<64x8xf32>
    %c0_8 = arith.constant 0 : index
    %c0_9 = arith.constant 0 : index
    %16 = vector.load %arg5[%c0_8, %c0_9] : memref<64x8xf32, #tpu.memory_space<vmem>>, vector<64x8xf32>
    tpu.vector_store %arg5[%c0_8, %c0_9], %15 {strides = array<i32>} : memref<64x8xf32, #tpu.memory_space<vmem>>, vector<64x8xf32>,
    return
  }
  func.func @transform_0(%arg0: i32) -> (i32, i32) {
    %c0_i32 = arith.constant 0 : i32
    %c0_i32_0 = arith.constant 0 : i32
    return %arg0, %c0_i32 : i32, i32
  }
  func.func @transform_1(%arg0: i32) -> (i32, i32) {
    %c0_i32 = arith.constant 0 : i32
    %c0_i32_0 = arith.constant 0 : i32
    %c0_i32_1 = arith.constant 0 : i32
    return %c0_i32, %c0_i32_0 : i32, i32
  }
  func.func @transform_2(%arg0: i32) -> (i32, i32) {
    %c0_i32 = arith.constant 0 : i32
    %c0_i32_0 = arith.constant 0 : i32
    %c0_i32_1 = arith.constant 0 : i32
    return %c0_i32, %c0_i32_0 : i32, i32
  }
  func.func @transform_3(%arg0: i32) -> (i32, i32) {
    %c0_i32 = arith.constant 0 : i32
    %c0_i32_0 = arith.constant 0 : i32
    %c0_i32_1 = arith.constant 0 : i32
    return %c0_i32, %c0_i32_0 : i32, i32
  }
  func.func @transform_4(%arg0: i32) -> (i32, i32) {
    %c0_i32 = arith.constant 0 : i32
    %c0_i32_0 = arith.constant 0 : i32
    return %arg0, %c0_i32 : i32, i32
  }
}

module attributes {stable_mosaic.version = 11 : i64} {
  func.func @_mm_bn_act_kernel(%arg0: i32, %arg1: memref<16x8xf32, #tpu.memory_space<vmem>>, %arg2: memref<8x320xbf16, #tpu.memory_space<vmem>>, %arg3: memref<1x320xf32, #tpu.memory_space<vmem>>, %arg4: memref<1x320xf32, #tpu.memory_space<vmem>>, %arg5: memref<16x320xf32, #tpu.memory_space<vmem>>) attributes {dimension_semantics = [#tpu.dimension_semantics<parallel>], iteration_bounds = array<i64: 2>, scalar_prefetch = 0 : i64, scratch_operands = 0 : i64, tpu.core_type = #tpu.core_type<tc>, window_params = [{transform_indices = @transform_0, window_bounds = array<i64: 16, 8>}, {pipeline_mode = #tpu.pipeline_mode<synchronous>, transform_indices = @transform_1, window_bounds = array<i64: 8, 320>}, {pipeline_mode = #tpu.pipeline_mode<synchronous>, transform_indices = @transform_2, window_bounds = array<i64: 1, 320>}, {pipeline_mode = #tpu.pipeline_mode<synchronous>, transform_indices = @transform_3, window_bounds = array<i64: 1, 320>}, {transform_indices = @transform_4, window_bounds = array<i64: 16, 320>}]} {
    %c0 = arith.constant 0 : index
    %c0_0 = arith.constant 0 : index
    %0 = vector.load %arg1[%c0, %c0_0] : memref<16x8xf32, #tpu.memory_space<vmem>>, vector<16x8xf32>
    %1 = arith.truncf %0 : vector<16x8xf32> to vector<16x8xbf16>
    %c0_1 = arith.constant 0 : index
    %c0_2 = arith.constant 0 : index
    %2 = vector.load %arg2[%c0_1, %c0_2] : memref<8x320xbf16, #tpu.memory_space<vmem>>, vector<8x320xbf16>
    %cst = arith.constant dense<0.000000e+00> : vector<16x320xf32>
    %3 = tpu.matmul %1, %2, %cst {dimension_numbers = #tpu.dot_dimension_numbers<[1], [0], [0], [1], [0, 0, 1, 1], [], []>} : vector<16x8xbf16>, vector<8x320xbf16>, vector<16x320xf32> -> vector<16x320xf32>
    %c0_3 = arith.constant 0 : index
    %c0_4 = arith.constant 0 : index
    %4 = vector.load %arg3[%c0_3, %c0_4] : memref<1x320xf32, #tpu.memory_space<vmem>>, vector<1x320xf32>
    %5 = vector.broadcast %4 : vector<1x320xf32> to vector<16x320xf32>
    %6 = arith.mulf %3, %5 : vector<16x320xf32>
    %c0_5 = arith.constant 0 : index
    %c0_6 = arith.constant 0 : index
    %7 = vector.load %arg4[%c0_5, %c0_6] : memref<1x320xf32, #tpu.memory_space<vmem>>, vector<1x320xf32>
    %8 = vector.broadcast %7 : vector<1x320xf32> to vector<16x320xf32>
    %9 = arith.addf %6, %8 : vector<16x320xf32>
    %10 = arith.negf %9 : vector<16x320xf32>
    %11 = math.exp %10 : vector<16x320xf32>
    %cst_7 = arith.constant 1.000000e+00 : f32
    %12 = vector.broadcast %cst_7 : f32 to vector<16x320xf32>
    %13 = arith.addf %12, %11 : vector<16x320xf32>
    %14 = arith.divf %12, %13 : vector<16x320xf32>
    %15 = arith.mulf %9, %14 : vector<16x320xf32>
    %c0_8 = arith.constant 0 : index
    %c0_9 = arith.constant 0 : index
    %16 = vector.load %arg5[%c0_8, %c0_9] : memref<16x320xf32, #tpu.memory_space<vmem>>, vector<16x320xf32>
    tpu.vector_store %arg5[%c0_8, %c0_9], %15 {strides = array<i32>} : memref<16x320xf32, #tpu.memory_space<vmem>>, vector<16x320xf32>,
    return
  }
  func.func @transform_0(%arg0: i32) -> (i32, i32) {
    %c0_i32 = arith.constant 0 : i32
    %c0_i32_0 = arith.constant 0 : i32
    return %arg0, %c0_i32 : i32, i32
  }
  func.func @transform_1(%arg0: i32) -> (i32, i32) {
    %c0_i32 = arith.constant 0 : i32
    %c0_i32_0 = arith.constant 0 : i32
    %c0_i32_1 = arith.constant 0 : i32
    return %c0_i32, %c0_i32_0 : i32, i32
  }
  func.func @transform_2(%arg0: i32) -> (i32, i32) {
    %c0_i32 = arith.constant 0 : i32
    %c0_i32_0 = arith.constant 0 : i32
    %c0_i32_1 = arith.constant 0 : i32
    return %c0_i32, %c0_i32_0 : i32, i32
  }
  func.func @transform_3(%arg0: i32) -> (i32, i32) {
    %c0_i32 = arith.constant 0 : i32
    %c0_i32_0 = arith.constant 0 : i32
    %c0_i32_1 = arith.constant 0 : i32
    return %c0_i32, %c0_i32_0 : i32, i32
  }
  func.func @transform_4(%arg0: i32) -> (i32, i32) {
    %c0_i32 = arith.constant 0 : i32
    %c0_i32_0 = arith.constant 0 : i32
    return %arg0, %c0_i32 : i32, i32
  }
}

module attributes {stable_mosaic.version = 11 : i64} {
  func.func @_mbconv_dw_kernel(%arg0: i32, %arg1: memref<1x9x16x8xf32, #tpu.memory_space<vmem>>, %arg2: memref<9x8xf32, #tpu.memory_space<vmem>>, %arg3: memref<1x8xf32, #tpu.memory_space<vmem>>, %arg4: memref<1x8xf32, #tpu.memory_space<vmem>>, %arg5: memref<8x2xf32, #tpu.memory_space<vmem>>, %arg6: memref<1x2xf32, #tpu.memory_space<vmem>>, %arg7: memref<2x8xf32, #tpu.memory_space<vmem>>, %arg8: memref<1x8xf32, #tpu.memory_space<vmem>>, %arg9: memref<8x8xbf16, #tpu.memory_space<vmem>>, %arg10: memref<1x8xf32, #tpu.memory_space<vmem>>, %arg11: memref<1x8xf32, #tpu.memory_space<vmem>>, %arg12: memref<1x16x8xf32, #tpu.memory_space<vmem>>) attributes {dimension_semantics = [#tpu.dimension_semantics<parallel>], iteration_bounds = array<i64: 2>, scalar_prefetch = 0 : i64, scratch_operands = 0 : i64, tpu.core_type = #tpu.core_type<tc>, window_params = [{transform_indices = @transform_0, window_bounds = array<i64: 1, 9, 16, 8>}, {pipeline_mode = #tpu.pipeline_mode<synchronous>, transform_indices = @transform_1, window_bounds = array<i64: 9, 8>}, {pipeline_mode = #tpu.pipeline_mode<synchronous>, transform_indices = @transform_2, window_bounds = array<i64: 1, 8>}, {pipeline_mode = #tpu.pipeline_mode<synchronous>, transform_indices = @transform_3, window_bounds = array<i64: 1, 8>}, {pipeline_mode = #tpu.pipeline_mode<synchronous>, transform_indices = @transform_4, window_bounds = array<i64: 8, 2>}, {pipeline_mode = #tpu.pipeline_mode<synchronous>, transform_indices = @transform_5, window_bounds = array<i64: 1, 2>}, {pipeline_mode = #tpu.pipeline_mode<synchronous>, transform_indices = @transform_6, window_bounds = array<i64: 2, 8>}, {pipeline_mode = #tpu.pipeline_mode<synchronous>, transform_indices = @transform_7, window_bounds = array<i64: 1, 8>}, {pipeline_mode = #tpu.pipeline_mode<synchronous>, transform_indices = @transform_8, window_bounds = array<i64: 8, 8>}, {pipeline_mode = #tpu.pipeline_mode<synchronous>, transform_indices = @transform_9, window_bounds = array<i64: 1, 8>}, {pipeline_mode = #tpu.pipeline_mode<synchronous>, transform_indices = @transform_10, window_bounds = array<i64: 1, 8>}, {transform_indices = @transform_11, window_bounds = array<i64: 1, 16, 8>}]} {
    %c0 = arith.constant 0 : index
    %c0_0 = arith.constant 0 : index
    %0 = vector.load %arg2[%c0, %c0_0] : memref<9x8xf32, #tpu.memory_space<vmem>>, vector<9x8xf32>
    %cst = arith.constant 0.000000e+00 : f32
    %1 = vector.broadcast %cst : f32 to vector<16x8xf32>
    %c0_1 = arith.constant 0 : index
    %c0_2 = arith.constant 0 : index
    %c0_3 = arith.constant 0 : index
    %c0_4 = arith.constant 0 : index
    %2 = vector.load %arg1[%c0_1, %c0_2, %c0_3, %c0_4] : memref<1x9x16x8xf32, #tpu.memory_space<vmem>>, vector<1x1x16x8xf32>
    %3 = vector.shape_cast %2 : vector<1x1x16x8xf32> to vector<16x8xf32>
    %4 = vector.extract_strided_slice %0 {offsets = [0, 0], sizes = [1, 8], strides = [1, 1]} : vector<9x8xf32> to vector<1x8xf32>
    %5 = vector.broadcast %4 : vector<1x8xf32> to vector<16x8xf32>
    %6 = arith.mulf %3, %5 : vector<16x8xf32>
    %7 = arith.addf %1, %6 : vector<16x8xf32>
    %c0_5 = arith.constant 0 : index
    %c1 = arith.constant 1 : index
    %c0_6 = arith.constant 0 : index
    %c0_7 = arith.constant 0 : index
    %8 = vector.load %arg1[%c0_5, %c1, %c0_6, %c0_7] : memref<1x9x16x8xf32, #tpu.memory_space<vmem>>, vector<1x1x16x8xf32>
    %9 = vector.shape_cast %8 : vector<1x1x16x8xf32> to vector<16x8xf32>
    %10 = vector.extract_strided_slice %0 {offsets = [1, 0], sizes = [1, 8], strides = [1, 1]} : vector<9x8xf32> to vector<1x8xf32>
    %11 = vector.broadcast %10 : vector<1x8xf32> to vector<16x8xf32>
    %12 = arith.mulf %9, %11 : vector<16x8xf32>
    %13 = arith.addf %7, %12 : vector<16x8xf32>
    %c0_8 = arith.constant 0 : index
    %c2 = arith.constant 2 : index
    %c0_9 = arith.constant 0 : index
    %c0_10 = arith.constant 0 : index
    %14 = vector.load %arg1[%c0_8, %c2, %c0_9, %c0_10] : memref<1x9x16x8xf32, #tpu.memory_space<vmem>>, vector<1x1x16x8xf32>
    %15 = vector.shape_cast %14 : vector<1x1x16x8xf32> to vector<16x8xf32>
    %16 = vector.extract_strided_slice %0 {offsets = [2, 0], sizes = [1, 8], strides = [1, 1]} : vector<9x8xf32> to vector<1x8xf32>
    %17 = vector.broadcast %16 : vector<1x8xf32> to vector<16x8xf32>
    %18 = arith.mulf %15, %17 : vector<16x8xf32>
    %19 = arith.addf %13, %18 : vector<16x8xf32>
    %c0_11 = arith.constant 0 : index
    %c3 = arith.constant 3 : index
    %c0_12 = arith.constant 0 : index
    %c0_13 = arith.constant 0 : index
    %20 = vector.load %arg1[%c0_11, %c3, %c0_12, %c0_13] : memref<1x9x16x8xf32, #tpu.memory_space<vmem>>, vector<1x1x16x8xf32>
    %21 = vector.shape_cast %20 : vector<1x1x16x8xf32> to vector<16x8xf32>
    %22 = vector.extract_strided_slice %0 {offsets = [3, 0], sizes = [1, 8], strides = [1, 1]} : vector<9x8xf32> to vector<1x8xf32>
    %23 = vector.broadcast %22 : vector<1x8xf32> to vector<16x8xf32>
    %24 = arith.mulf %21, %23 : vector<16x8xf32>
    %25 = arith.addf %19, %24 : vector<16x8xf32>
    %c0_14 = arith.constant 0 : index
    %c4 = arith.constant 4 : index
    %c0_15 = arith.constant 0 : index
    %c0_16 = arith.constant 0 : index
    %26 = vector.load %arg1[%c0_14, %c4, %c0_15, %c0_16] : memref<1x9x16x8xf32, #tpu.memory_space<vmem>>, vector<1x1x16x8xf32>
    %27 = vector.shape_cast %26 : vector<1x1x16x8xf32> to vector<16x8xf32>
    %28 = vector.extract_strided_slice %0 {offsets = [4, 0], sizes = [1, 8], strides = [1, 1]} : vector<9x8xf32> to vector<1x8xf32>
    %29 = vector.broadcast %28 : vector<1x8xf32> to vector<16x8xf32>
    %30 = arith.mulf %27, %29 : vector<16x8xf32>
    %31 = arith.addf %25, %30 : vector<16x8xf32>
    %c0_17 = arith.constant 0 : index
    %c5 = arith.constant 5 : index
    %c0_18 = arith.constant 0 : index
    %c0_19 = arith.constant 0 : index
    %32 = vector.load %arg1[%c0_17, %c5, %c0_18, %c0_19] : memref<1x9x16x8xf32, #tpu.memory_space<vmem>>, vector<1x1x16x8xf32>
    %33 = vector.shape_cast %32 : vector<1x1x16x8xf32> to vector<16x8xf32>
    %34 = vector.extract_strided_slice %0 {offsets = [5, 0], sizes = [1, 8], strides = [1, 1]} : vector<9x8xf32> to vector<1x8xf32>
    %35 = vector.broadcast %34 : vector<1x8xf32> to vector<16x8xf32>
    %36 = arith.mulf %33, %35 : vector<16x8xf32>
    %37 = arith.addf %31, %36 : vector<16x8xf32>
    %c0_20 = arith.constant 0 : index
    %c6 = arith.constant 6 : index
    %c0_21 = arith.constant 0 : index
    %c0_22 = arith.constant 0 : index
    %38 = vector.load %arg1[%c0_20, %c6, %c0_21, %c0_22] : memref<1x9x16x8xf32, #tpu.memory_space<vmem>>, vector<1x1x16x8xf32>
    %39 = vector.shape_cast %38 : vector<1x1x16x8xf32> to vector<16x8xf32>
    %40 = vector.extract_strided_slice %0 {offsets = [6, 0], sizes = [1, 8], strides = [1, 1]} : vector<9x8xf32> to vector<1x8xf32>
    %41 = vector.broadcast %40 : vector<1x8xf32> to vector<16x8xf32>
    %42 = arith.mulf %39, %41 : vector<16x8xf32>
    %43 = arith.addf %37, %42 : vector<16x8xf32>
    %c0_23 = arith.constant 0 : index
    %c7 = arith.constant 7 : index
    %c0_24 = arith.constant 0 : index
    %c0_25 = arith.constant 0 : index
    %44 = vector.load %arg1[%c0_23, %c7, %c0_24, %c0_25] : memref<1x9x16x8xf32, #tpu.memory_space<vmem>>, vector<1x1x16x8xf32>
    %45 = vector.shape_cast %44 : vector<1x1x16x8xf32> to vector<16x8xf32>
    %46 = vector.extract_strided_slice %0 {offsets = [7, 0], sizes = [1, 8], strides = [1, 1]} : vector<9x8xf32> to vector<1x8xf32>
    %47 = vector.broadcast %46 : vector<1x8xf32> to vector<16x8xf32>
    %48 = arith.mulf %45, %47 : vector<16x8xf32>
    %49 = arith.addf %43, %48 : vector<16x8xf32>
    %c0_26 = arith.constant 0 : index
    %c8 = arith.constant 8 : index
    %c0_27 = arith.constant 0 : index
    %c0_28 = arith.constant 0 : index
    %50 = vector.load %arg1[%c0_26, %c8, %c0_27, %c0_28] : memref<1x9x16x8xf32, #tpu.memory_space<vmem>>, vector<1x1x16x8xf32>
    %51 = vector.shape_cast %50 : vector<1x1x16x8xf32> to vector<16x8xf32>
    %52 = vector.extract_strided_slice %0 {offsets = [8, 0], sizes = [1, 8], strides = [1, 1]} : vector<9x8xf32> to vector<1x8xf32>
    %53 = vector.broadcast %52 : vector<1x8xf32> to vector<16x8xf32>
    %54 = arith.mulf %51, %53 : vector<16x8xf32>
    %55 = arith.addf %49, %54 : vector<16x8xf32>
    %c0_29 = arith.constant 0 : index
    %c0_30 = arith.constant 0 : index
    %56 = vector.load %arg3[%c0_29, %c0_30] : memref<1x8xf32, #tpu.memory_space<vmem>>, vector<1x8xf32>
    %57 = vector.broadcast %56 : vector<1x8xf32> to vector<16x8xf32>
    %58 = arith.mulf %55, %57 : vector<16x8xf32>
    %c0_31 = arith.constant 0 : index
    %c0_32 = arith.constant 0 : index
    %59 = vector.load %arg4[%c0_31, %c0_32] : memref<1x8xf32, #tpu.memory_space<vmem>>, vector<1x8xf32>
    %60 = vector.broadcast %59 : vector<1x8xf32> to vector<16x8xf32>
    %61 = arith.addf %58, %60 : vector<16x8xf32>
    %62 = arith.negf %61 : vector<16x8xf32>
    %63 = math.exp %62 : vector<16x8xf32>
    %cst_33 = arith.constant 1.000000e+00 : f32
    %64 = vector.broadcast %cst_33 : f32 to vector<16x8xf32>
    %65 = arith.addf %64, %63 : vector<16x8xf32>
    %66 = arith.divf %64, %65 : vector<16x8xf32>
    %67 = arith.mulf %61, %66 : vector<16x8xf32>
    %cst_34 = arith.constant dense<0.000000e+00> : vector<8xf32>
    %68 = vector.multi_reduction <add>, %67, %cst_34 [0] : vector<16x8xf32> to vector<8xf32>
    %69 = vector.shape_cast %68 : vector<8xf32> to vector<1x8xf32>
    %cst_35 = arith.constant 1.600000e+01 : f32
    %70 = vector.broadcast %cst_35 : f32 to vector<1x8xf32>
    %71 = arith.divf %69, %70 : vector<1x8xf32>
    %c0_36 = arith.constant 0 : index
    %c0_37 = arith.constant 0 : index
    %72 = vector.load %arg5[%c0_36, %c0_37] : memref<8x2xf32, #tpu.memory_space<vmem>>, vector<8x2xf32>
    %cst_38 = arith.constant dense<0.000000e+00> : vector<1x2xf32>
    %73 = tpu.matmul %71, %72, %cst_38 {dimension_numbers = #tpu.dot_dimension_numbers<[1], [0], [0], [1], [0, 0, 1, 1], [], []>} : vector<1x8xf32>, vector<8x2xf32>, vector<1x2xf32> -> vector<1x2xf32>
    %c0_39 = arith.constant 0 : index
    %c0_40 = arith.constant 0 : index
    %74 = vector.load %arg6[%c0_39, %c0_40] : memref<1x2xf32, #tpu.memory_space<vmem>>, vector<1x2xf32>
    %75 = arith.addf %73, %74 : vector<1x2xf32>
    %76 = arith.negf %75 : vector<1x2xf32>
    %77 = math.exp %76 : vector<1x2xf32>
    %cst_41 = arith.constant 1.000000e+00 : f32
    %78 = vector.broadcast %cst_41 : f32 to vector<1x2xf32>
    %79 = arith.addf %78, %77 : vector<1x2xf32>
    %80 = arith.divf %78, %79 : vector<1x2xf32>
    %81 = arith.mulf %75, %80 : vector<1x2xf32>
    %c0_42 = arith.constant 0 : index
    %c0_43 = arith.constant 0 : index
    %82 = vector.load %arg7[%c0_42, %c0_43] : memref<2x8xf32, #tpu.memory_space<vmem>>, vector<2x8xf32>
    %cst_44 = arith.constant dense<0.000000e+00> : vector<1x8xf32>
    %83 = tpu.matmul %81, %82, %cst_44 {dimension_numbers = #tpu.dot_dimension_numbers<[1], [0], [0], [1], [0, 0, 1, 1], [], []>} : vector<1x2xf32>, vector<2x8xf32>, vector<1x8xf32> -> vector<1x8xf32>
    %c0_45 = arith.constant 0 : index
    %c0_46 = arith.constant 0 : index
    %84 = vector.load %arg8[%c0_45, %c0_46] : memref<1x8xf32, #tpu.memory_space<vmem>>, vector<1x8xf32>
    %85 = arith.addf %83, %84 : vector<1x8xf32>
    %86 = arith.negf %85 : vector<1x8xf32>
    %87 = math.exp %86 : vector<1x8xf32>
    %cst_47 = arith.constant 1.000000e+00 : f32
    %88 = vector.broadcast %cst_47 : f32 to vector<1x8xf32>
    %89 = arith.addf %88, %87 : vector<1x8xf32>
    %90 = arith.divf %88, %89 : vector<1x8xf32>
    %91 = vector.broadcast %90 : vector<1x8xf32> to vector<16x8xf32>
    %92 = arith.mulf %67, %91 : vector<16x8xf32>
    %93 = arith.truncf %92 : vector<16x8xf32> to vector<16x8xbf16>
    %c0_48 = arith.constant 0 : index
    %c0_49 = arith.constant 0 : index
    %94 = vector.load %arg9[%c0_48, %c0_49] : memref<8x8xbf16, #tpu.memory_space<vmem>>, vector<8x8xbf16>
    %cst_50 = arith.constant dense<0.000000e+00> : vector<16x8xf32>
    %95 = tpu.matmul %93, %94, %cst_50 {dimension_numbers = #tpu.dot_dimension_numbers<[1], [0], [0], [1], [0, 0, 1, 1], [], []>} : vector<16x8xbf16>, vector<8x8xbf16>, vector<16x8xf32> -> vector<16x8xf32>
    %c0_51 = arith.constant 0 : index
    %c0_52 = arith.constant 0 : index
    %96 = vector.load %arg10[%c0_51, %c0_52] : memref<1x8xf32, #tpu.memory_space<vmem>>, vector<1x8xf32>
    %97 = vector.broadcast %96 : vector<1x8xf32> to vector<16x8xf32>
    %98 = arith.mulf %95, %97 : vector<16x8xf32>
    %c0_53 = arith.constant 0 : index
    %c0_54 = arith.constant 0 : index
    %99 = vector.load %arg11[%c0_53, %c0_54] : memref<1x8xf32, #tpu.memory_space<vmem>>, vector<1x8xf32>
    %100 = vector.broadcast %99 : vector<1x8xf32> to vector<16x8xf32>
    %101 = arith.addf %98, %100 : vector<16x8xf32>
    %c0_55 = arith.constant 0 : index
    %c0_56 = arith.constant 0 : index
    %c0_57 = arith.constant 0 : index
    %102 = vector.load %arg12[%c0_55, %c0_56, %c0_57] : memref<1x16x8xf32, #tpu.memory_space<vmem>>, vector<1x16x8xf32>
    %103 = vector.shape_cast %102 : vector<1x16x8xf32> to vector<16x8xf32>
    %104 = vector.shape_cast %101 : vector<16x8xf32> to vector<1x16x8xf32>
    tpu.vector_store %arg12[%c0_55, %c0_56, %c0_57], %104 {strides = array<i32>} : memref<1x16x8xf32, #tpu.memory_space<vmem>>, vector<1x16x8xf32>,
    return
  }
  func.func @transform_0(%arg0: i32) -> (i32, i32, i32, i32) {
    %c0_i32 = arith.constant 0 : i32
    %c0_i32_0 = arith.constant 0 : i32
    %c0_i32_1 = arith.constant 0 : i32
    %c0_i32_2 = arith.constant 0 : i32
    return %arg0, %c0_i32, %c0_i32_0, %c0_i32_1 : i32, i32, i32, i32
  }
  func.func @transform_1(%arg0: i32) -> (i32, i32) {
    %c0_i32 = arith.constant 0 : i32
    %c0_i32_0 = arith.constant 0 : i32
    %c0_i32_1 = arith.constant 0 : i32
    return %c0_i32, %c0_i32_0 : i32, i32
  }
  func.func @transform_2(%arg0: i32) -> (i32, i32) {
    %c0_i32 = arith.constant 0 : i32
    %c0_i32_0 = arith.constant 0 : i32
    %c0_i32_1 = arith.constant 0 : i32
    return %c0_i32, %c0_i32_0 : i32, i32
  }
  func.func @transform_3(%arg0: i32) -> (i32, i32) {
    %c0_i32 = arith.constant 0 : i32
    %c0_i32_0 = arith.constant 0 : i32
    %c0_i32_1 = arith.constant 0 : i32
    return %c0_i32, %c0_i32_0 : i32, i32
  }
  func.func @transform_4(%arg0: i32) -> (i32, i32) {
    %c0_i32 = arith.constant 0 : i32
    %c0_i32_0 = arith.constant 0 : i32
    %c0_i32_1 = arith.constant 0 : i32
    return %c0_i32, %c0_i32_0 : i32, i32
  }
  func.func @transform_5(%arg0: i32) -> (i32, i32) {
    %c0_i32 = arith.constant 0 : i32
    %c0_i32_0 = arith.constant 0 : i32
    %c0_i32_1 = arith.constant 0 : i32
    return %c0_i32, %c0_i32_0 : i32, i32
  }
  func.func @transform_6(%arg0: i32) -> (i32, i32) {
    %c0_i32 = arith.constant 0 : i32
    %c0_i32_0 = arith.constant 0 : i32
    %c0_i32_1 = arith.constant 0 : i32
    return %c0_i32, %c0_i32_0 : i32, i32
  }
  func.func @transform_7(%arg0: i32) -> (i32, i32) {
    %c0_i32 = arith.constant 0 : i32
    %c0_i32_0 = arith.constant 0 : i32
    %c0_i32_1 = arith.constant 0 : i32
    return %c0_i32, %c0_i32_0 : i32, i32
  }
  func.func @transform_8(%arg0: i32) -> (i32, i32) {
    %c0_i32 = arith.constant 0 : i32
    %c0_i32_0 = arith.constant 0 : i32
    %c0_i32_1 = arith.constant 0 : i32
    return %c0_i32, %c0_i32_0 : i32, i32
  }
  func.func @transform_9(%arg0: i32) -> (i32, i32) {
    %c0_i32 = arith.constant 0 : i32
    %c0_i32_0 = arith.constant 0 : i32
    %c0_i32_1 = arith.constant 0 : i32
    return %c0_i32, %c0_i32_0 : i32, i32
  }
  func.func @transform_10(%arg0: i32) -> (i32, i32) {
    %c0_i32 = arith.constant 0 : i32
    %c0_i32_0 = arith.constant 0 : i32
    %c0_i32_1 = arith.constant 0 : i32
    return %c0_i32, %c0_i32_0 : i32, i32
  }
  func.func @transform_11(%arg0: i32) -> (i32, i32, i32) {
    %c0_i32 = arith.constant 0 : i32
    %c0_i32_0 = arith.constant 0 : i32
    %c0_i32_1 = arith.constant 0 : i32
    return %arg0, %c0_i32, %c0_i32_0 : i32, i32, i32
  }
}

module attributes {stable_mosaic.version = 11 : i64} {
  func.func @_mbconv_full_kernel(%arg0: i32, %arg1: memref<1x16x8xf32, #tpu.memory_space<vmem>>, %arg2: memref<8x48xbf16, #tpu.memory_space<vmem>>, %arg3: memref<1x48xf32, #tpu.memory_space<vmem>>, %arg4: memref<1x48xf32, #tpu.memory_space<vmem>>, %arg5: memref<9x48xf32, #tpu.memory_space<vmem>>, %arg6: memref<1x48xf32, #tpu.memory_space<vmem>>, %arg7: memref<1x48xf32, #tpu.memory_space<vmem>>, %arg8: memref<48x2xf32, #tpu.memory_space<vmem>>, %arg9: memref<1x2xf32, #tpu.memory_space<vmem>>, %arg10: memref<2x48xf32, #tpu.memory_space<vmem>>, %arg11: memref<1x48xf32, #tpu.memory_space<vmem>>, %arg12: memref<48x8xbf16, #tpu.memory_space<vmem>>, %arg13: memref<1x8xf32, #tpu.memory_space<vmem>>, %arg14: memref<1x8xf32, #tpu.memory_space<vmem>>, %arg15: memref<1x16x8xf32, #tpu.memory_space<vmem>>, %arg16: memref<6x6x48xf32, #tpu.memory_space<vmem>>, %arg17: memref<16x48xf32, #tpu.memory_space<vmem>>) attributes {dimension_semantics = [#tpu.dimension_semantics<parallel>], iteration_bounds = array<i64: 2>, scalar_prefetch = 0 : i64, scratch_operands = 2 : i64, tpu.core_type = #tpu.core_type<tc>, window_params = [{transform_indices = @transform_0, window_bounds = array<i64: 1, 16, 8>}, {pipeline_mode = #tpu.pipeline_mode<synchronous>, transform_indices = @transform_1, window_bounds = array<i64: 8, 48>}, {pipeline_mode = #tpu.pipeline_mode<synchronous>, transform_indices = @transform_2, window_bounds = array<i64: 1, 48>}, {pipeline_mode = #tpu.pipeline_mode<synchronous>, transform_indices = @transform_3, window_bounds = array<i64: 1, 48>}, {pipeline_mode = #tpu.pipeline_mode<synchronous>, transform_indices = @transform_4, window_bounds = array<i64: 9, 48>}, {pipeline_mode = #tpu.pipeline_mode<synchronous>, transform_indices = @transform_5, window_bounds = array<i64: 1, 48>}, {pipeline_mode = #tpu.pipeline_mode<synchronous>, transform_indices = @transform_6, window_bounds = array<i64: 1, 48>}, {pipeline_mode = #tpu.pipeline_mode<synchronous>, transform_indices = @transform_7, window_bounds = array<i64: 48, 2>}, {pipeline_mode = #tpu.pipeline_mode<synchronous>, transform_indices = @transform_8, window_bounds = array<i64: 1, 2>}, {pipeline_mode = #tpu.pipeline_mode<synchronous>, transform_indices = @transform_9, window_bounds = array<i64: 2, 48>}, {pipeline_mode = #tpu.pipeline_mode<synchronous>, transform_indices = @transform_10, window_bounds = array<i64: 1, 48>}, {pipeline_mode = #tpu.pipeline_mode<synchronous>, transform_indices = @transform_11, window_bounds = array<i64: 48, 8>}, {pipeline_mode = #tpu.pipeline_mode<synchronous>, transform_indices = @transform_12, window_bounds = array<i64: 1, 8>}, {pipeline_mode = #tpu.pipeline_mode<synchronous>, transform_indices = @transform_13, window_bounds = array<i64: 1, 8>}, {transform_indices = @transform_14, window_bounds = array<i64: 1, 16, 8>}]} {
    %c0 = arith.constant 0 : index
    %c0_0 = arith.constant 0 : index
    %c0_1 = arith.constant 0 : index
    %0 = vector.load %arg1[%c0, %c0_0, %c0_1] : memref<1x16x8xf32, #tpu.memory_space<vmem>>, vector<1x16x8xf32>
    %1 = vector.shape_cast %0 : vector<1x16x8xf32> to vector<16x8xf32>
    %2 = arith.truncf %1 : vector<16x8xf32> to vector<16x8xbf16>
    %c0_2 = arith.constant 0 : index
    %c0_3 = arith.constant 0 : index
    %3 = vector.load %arg2[%c0_2, %c0_3] : memref<8x48xbf16, #tpu.memory_space<vmem>>, vector<8x48xbf16>
    %cst = arith.constant dense<0.000000e+00> : vector<16x48xf32>
    %4 = tpu.matmul %2, %3, %cst {dimension_numbers = #tpu.dot_dimension_numbers<[1], [0], [0], [1], [0, 0, 1, 1], [], []>} : vector<16x8xbf16>, vector<8x48xbf16>, vector<16x48xf32> -> vector<16x48xf32>
    %c0_4 = arith.constant 0 : index
    %c0_5 = arith.constant 0 : index
    %5 = vector.load %arg3[%c0_4, %c0_5] : memref<1x48xf32, #tpu.memory_space<vmem>>, vector<1x48xf32>
    %6 = vector.broadcast %5 : vector<1x48xf32> to vector<16x48xf32>
    %7 = arith.mulf %4, %6 : vector<16x48xf32>
    %c0_6 = arith.constant 0 : index
    %c0_7 = arith.constant 0 : index
    %8 = vector.load %arg4[%c0_6, %c0_7] : memref<1x48xf32, #tpu.memory_space<vmem>>, vector<1x48xf32>
    %9 = vector.broadcast %8 : vector<1x48xf32> to vector<16x48xf32>
    %10 = arith.addf %7, %9 : vector<16x48xf32>
    %11 = arith.negf %10 : vector<16x48xf32>
    %12 = math.exp %11 : vector<16x48xf32>
    %cst_8 = arith.constant 1.000000e+00 : f32
    %13 = vector.broadcast %cst_8 : f32 to vector<16x48xf32>
    %14 = arith.addf %13, %12 : vector<16x48xf32>
    %15 = arith.divf %13, %14 : vector<16x48xf32>
    %16 = arith.mulf %10, %15 : vector<16x48xf32>
    %cst_9 = arith.constant 0.000000e+00 : f32
    %17 = vector.broadcast %cst_9 : f32 to vector<6x6x48xf32>
    %c0_10 = arith.constant 0 : index
    %c0_11 = arith.constant 0 : index
    %c0_12 = arith.constant 0 : index
    %18 = vector.load %arg16[%c0_10, %c0_11, %c0_12] : memref<6x6x48xf32, #tpu.memory_space<vmem>>, vector<6x6x48xf32>
    tpu.vector_store %arg16[%c0_10, %c0_11, %c0_12], %17 {strides = array<i32>} : memref<6x6x48xf32, #tpu.memory_space<vmem>>, vector<6x6x48xf32>,
    %19 = vector.extract_strided_slice %16 {offsets = [0, 0], sizes = [4, 48], strides = [1, 1]} : vector<16x48xf32> to vector<4x48xf32>
    %c1 = arith.constant 1 : index
    %c1_13 = arith.constant 1 : index
    %c0_14 = arith.constant 0 : index
    %20 = vector.load %arg16[%c1, %c1_13, %c0_14] : memref<6x6x48xf32, #tpu.memory_space<vmem>>, vector<1x4x48xf32>
    %21 = vector.shape_cast %20 : vector<1x4x48xf32> to vector<4x48xf32>
    %22 = vector.shape_cast %19 : vector<4x48xf32> to vector<1x4x48xf32>
    tpu.vector_store %arg16[%c1, %c1_13, %c0_14], %22 {strides = array<i32>} : memref<6x6x48xf32, #tpu.memory_space<vmem>>, vector<1x4x48xf32>,
    %23 = vector.extract_strided_slice %16 {offsets = [4, 0], sizes = [4, 48], strides = [1, 1]} : vector<16x48xf32> to vector<4x48xf32>
    %c2 = arith.constant 2 : index
    %c1_15 = arith.constant 1 : index
    %c0_16 = arith.constant 0 : index
    %24 = vector.load %arg16[%c2, %c1_15, %c0_16] : memref<6x6x48xf32, #tpu.memory_space<vmem>>, vector<1x4x48xf32>
    %25 = vector.shape_cast %24 : vector<1x4x48xf32> to vector<4x48xf32>
    %26 = vector.shape_cast %23 : vector<4x48xf32> to vector<1x4x48xf32>
    tpu.vector_store %arg16[%c2, %c1_15, %c0_16], %26 {strides = array<i32>} : memref<6x6x48xf32, #tpu.memory_space<vmem>>, vector<1x4x48xf32>,
    %27 = vector.extract_strided_slice %16 {offsets = [8, 0], sizes = [4, 48], strides = [1, 1]} : vector<16x48xf32> to vector<4x48xf32>
    %c3 = arith.constant 3 : index
    %c1_17 = arith.constant 1 : index
    %c0_18 = arith.constant 0 : index
    %28 = vector.load %arg16[%c3, %c1_17, %c0_18] : memref<6x6x48xf32, #tpu.memory_space<vmem>>, vector<1x4x48xf32>
    %29 = vector.shape_cast %28 : vector<1x4x48xf32> to vector<4x48xf32>
    %30 = vector.shape_cast %27 : vector<4x48xf32> to vector<1x4x48xf32>
    tpu.vector_store %arg16[%c3, %c1_17, %c0_18], %30 {strides = array<i32>} : memref<6x6x48xf32, #tpu.memory_space<vmem>>, vector<1x4x48xf32>,
    %31 = vector.extract_strided_slice %16 {offsets = [12, 0], sizes = [4, 48], strides = [1, 1]} : vector<16x48xf32> to vector<4x48xf32>
    %c4 = arith.constant 4 : index
    %c1_19 = arith.constant 1 : index
    %c0_20 = arith.constant 0 : index
    %32 = vector.load %arg16[%c4, %c1_19, %c0_20] : memref<6x6x48xf32, #tpu.memory_space<vmem>>, vector<1x4x48xf32>
    %33 = vector.shape_cast %32 : vector<1x4x48xf32> to vector<4x48xf32>
    %34 = vector.shape_cast %31 : vector<4x48xf32> to vector<1x4x48xf32>
    tpu.vector_store %arg16[%c4, %c1_19, %c0_20], %34 {strides = array<i32>} : memref<6x6x48xf32, #tpu.memory_space<vmem>>, vector<1x4x48xf32>,
    %c0_21 = arith.constant 0 : index
    %c0_22 = arith.constant 0 : index
    %35 = vector.load %arg5[%c0_21, %c0_22] : memref<9x48xf32, #tpu.memory_space<vmem>>, vector<9x48xf32>
    %cst_23 = arith.constant 0.000000e+00 : f32
    %36 = vector.broadcast %cst_23 : f32 to vector<4x48xf32>
    %c0_24 = arith.constant 0 : index
    %c0_25 = arith.constant 0 : index
    %c0_26 = arith.constant 0 : index
    %37 = vector.load %arg16[%c0_24, %c0_25, %c0_26] : memref<6x6x48xf32, #tpu.memory_space<vmem>>, vector<1x4x48xf32>
    %38 = vector.shape_cast %37 : vector<1x4x48xf32> to vector<4x48xf32>
    %39 = vector.extract_strided_slice %35 {offsets = [0, 0], sizes = [1, 48], strides = [1, 1]} : vector<9x48xf32> to vector<1x48xf32>
    %40 = vector.broadcast %39 : vector<1x48xf32> to vector<4x48xf32>
    %41 = arith.mulf %38, %40 : vector<4x48xf32>
    %42 = arith.addf %36, %41 : vector<4x48xf32>
    %c0_27 = arith.constant 0 : index
    %c1_28 = arith.constant 1 : index
    %c0_29 = arith.constant 0 : index
    %43 = vector.load %arg16[%c0_27, %c1_28, %c0_29] : memref<6x6x48xf32, #tpu.memory_space<vmem>>, vector<1x4x48xf32>
    %44 = vector.shape_cast %43 : vector<1x4x48xf32> to vector<4x48xf32>
    %45 = vector.extract_strided_slice %35 {offsets = [1, 0], sizes = [1, 48], strides = [1, 1]} : vector<9x48xf32> to vector<1x48xf32>
    %46 = vector.broadcast %45 : vector<1x48xf32> to vector<4x48xf32>
    %47 = arith.mulf %44, %46 : vector<4x48xf32>
    %48 = arith.addf %42, %47 : vector<4x48xf32>
    %c0_30 = arith.constant 0 : index
    %c2_31 = arith.constant 2 : index
    %c0_32 = arith.constant 0 : index
    %49 = vector.load %arg16[%c0_30, %c2_31, %c0_32] : memref<6x6x48xf32, #tpu.memory_space<vmem>>, vector<1x4x48xf32>
    %50 = vector.shape_cast %49 : vector<1x4x48xf32> to vector<4x48xf32>
    %51 = vector.extract_strided_slice %35 {offsets = [2, 0], sizes = [1, 48], strides = [1, 1]} : vector<9x48xf32> to vector<1x48xf32>
    %52 = vector.broadcast %51 : vector<1x48xf32> to vector<4x48xf32>
    %53 = arith.mulf %50, %52 : vector<4x48xf32>
    %54 = arith.addf %48, %53 : vector<4x48xf32>
    %c1_33 = arith.constant 1 : index
    %c0_34 = arith.constant 0 : index
    %c0_35 = arith.constant 0 : index
    %55 = vector.load %arg16[%c1_33, %c0_34, %c0_35] : memref<6x6x48xf32, #tpu.memory_space<vmem>>, vector<1x4x48xf32>
    %56 = vector.shape_cast %55 : vector<1x4x48xf32> to vector<4x48xf32>
    %57 = vector.extract_strided_slice %35 {offsets = [3, 0], sizes = [1, 48], strides = [1, 1]} : vector<9x48xf32> to vector<1x48xf32>
    %58 = vector.broadcast %57 : vector<1x48xf32> to vector<4x48xf32>
    %59 = arith.mulf %56, %58 : vector<4x48xf32>
    %60 = arith.addf %54, %59 : vector<4x48xf32>
    %c1_36 = arith.constant 1 : index
    %c1_37 = arith.constant 1 : index
    %c0_38 = arith.constant 0 : index
    %61 = vector.load %arg16[%c1_36, %c1_37, %c0_38] : memref<6x6x48xf32, #tpu.memory_space<vmem>>, vector<1x4x48xf32>
    %62 = vector.shape_cast %61 : vector<1x4x48xf32> to vector<4x48xf32>
    %63 = vector.extract_strided_slice %35 {offsets = [4, 0], sizes = [1, 48], strides = [1, 1]} : vector<9x48xf32> to vector<1x48xf32>
    %64 = vector.broadcast %63 : vector<1x48xf32> to vector<4x48xf32>
    %65 = arith.mulf %62, %64 : vector<4x48xf32>
    %66 = arith.addf %60, %65 : vector<4x48xf32>
    %c1_39 = arith.constant 1 : index
    %c2_40 = arith.constant 2 : index
    %c0_41 = arith.constant 0 : index
    %67 = vector.load %arg16[%c1_39, %c2_40, %c0_41] : memref<6x6x48xf32, #tpu.memory_space<vmem>>, vector<1x4x48xf32>
    %68 = vector.shape_cast %67 : vector<1x4x48xf32> to vector<4x48xf32>
    %69 = vector.extract_strided_slice %35 {offsets = [5, 0], sizes = [1, 48], strides = [1, 1]} : vector<9x48xf32> to vector<1x48xf32>
    %70 = vector.broadcast %69 : vector<1x48xf32> to vector<4x48xf32>
    %71 = arith.mulf %68, %70 : vector<4x48xf32>
    %72 = arith.addf %66, %71 : vector<4x48xf32>
    %c2_42 = arith.constant 2 : index
    %c0_43 = arith.constant 0 : index
    %c0_44 = arith.constant 0 : index
    %73 = vector.load %arg16[%c2_42, %c0_43, %c0_44] : memref<6x6x48xf32, #tpu.memory_space<vmem>>, vector<1x4x48xf32>
    %74 = vector.shape_cast %73 : vector<1x4x48xf32> to vector<4x48xf32>
    %75 = vector.extract_strided_slice %35 {offsets = [6, 0], sizes = [1, 48], strides = [1, 1]} : vector<9x48xf32> to vector<1x48xf32>
    %76 = vector.broadcast %75 : vector<1x48xf32> to vector<4x48xf32>
    %77 = arith.mulf %74, %76 : vector<4x48xf32>
    %78 = arith.addf %72, %77 : vector<4x48xf32>
    %c2_45 = arith.constant 2 : index
    %c1_46 = arith.constant 1 : index
    %c0_47 = arith.constant 0 : index
    %79 = vector.load %arg16[%c2_45, %c1_46, %c0_47] : memref<6x6x48xf32, #tpu.memory_space<vmem>>, vector<1x4x48xf32>
    %80 = vector.shape_cast %79 : vector<1x4x48xf32> to vector<4x48xf32>
    %81 = vector.extract_strided_slice %35 {offsets = [7, 0], sizes = [1, 48], strides = [1, 1]} : vector<9x48xf32> to vector<1x48xf32>
    %82 = vector.broadcast %81 : vector<1x48xf32> to vector<4x48xf32>
    %83 = arith.mulf %80, %82 : vector<4x48xf32>
    %84 = arith.addf %78, %83 : vector<4x48xf32>
    %c2_48 = arith.constant 2 : index
    %c2_49 = arith.constant 2 : index
    %c0_50 = arith.constant 0 : index
    %85 = vector.load %arg16[%c2_48, %c2_49, %c0_50] : memref<6x6x48xf32, #tpu.memory_space<vmem>>, vector<1x4x48xf32>
    %86 = vector.shape_cast %85 : vector<1x4x48xf32> to vector<4x48xf32>
    %87 = vector.extract_strided_slice %35 {offsets = [8, 0], sizes = [1, 48], strides = [1, 1]} : vector<9x48xf32> to vector<1x48xf32>
    %88 = vector.broadcast %87 : vector<1x48xf32> to vector<4x48xf32>
    %89 = arith.mulf %86, %88 : vector<4x48xf32>
    %90 = arith.addf %84, %89 : vector<4x48xf32>
    %c0_51 = arith.constant 0 : index
    %c0_52 = arith.constant 0 : index
    %91 = vector.load %arg17[%c0_51, %c0_52] : memref<16x48xf32, #tpu.memory_space<vmem>>, vector<4x48xf32>
    tpu.vector_store %arg17[%c0_51, %c0_52], %90 {strides = array<i32>} : memref<16x48xf32, #tpu.memory_space<vmem>>, vector<4x48xf32>,
    %cst_53 = arith.constant 0.000000e+00 : f32
    %92 = vector.broadcast %cst_53 : f32 to vector<4x48xf32>
    %c1_54 = arith.constant 1 : index
    %c0_55 = arith.constant 0 : index
    %c0_56 = arith.constant 0 : index
    %93 = vector.load %arg16[%c1_54, %c0_55, %c0_56] : memref<6x6x48xf32, #tpu.memory_space<vmem>>, vector<1x4x48xf32>
    %94 = vector.shape_cast %93 : vector<1x4x48xf32> to vector<4x48xf32>
    %95 = vector.extract_strided_slice %35 {offsets = [0, 0], sizes = [1, 48], strides = [1, 1]} : vector<9x48xf32> to vector<1x48xf32>
    %96 = vector.broadcast %95 : vector<1x48xf32> to vector<4x48xf32>
    %97 = arith.mulf %94, %96 : vector<4x48xf32>
    %98 = arith.addf %92, %97 : vector<4x48xf32>
    %c1_57 = arith.constant 1 : index
    %c1_58 = arith.constant 1 : index
    %c0_59 = arith.constant 0 : index
    %99 = vector.load %arg16[%c1_57, %c1_58, %c0_59] : memref<6x6x48xf32, #tpu.memory_space<vmem>>, vector<1x4x48xf32>
    %100 = vector.shape_cast %99 : vector<1x4x48xf32> to vector<4x48xf32>
    %101 = vector.extract_strided_slice %35 {offsets = [1, 0], sizes = [1, 48], strides = [1, 1]} : vector<9x48xf32> to vector<1x48xf32>
    %102 = vector.broadcast %101 : vector<1x48xf32> to vector<4x48xf32>
    %103 = arith.mulf %100, %102 : vector<4x48xf32>
    %104 = arith.addf %98, %103 : vector<4x48xf32>
    %c1_60 = arith.constant 1 : index
    %c2_61 = arith.constant 2 : index
    %c0_62 = arith.constant 0 : index
    %105 = vector.load %arg16[%c1_60, %c2_61, %c0_62] : memref<6x6x48xf32, #tpu.memory_space<vmem>>, vector<1x4x48xf32>
    %106 = vector.shape_cast %105 : vector<1x4x48xf32> to vector<4x48xf32>
    %107 = vector.extract_strided_slice %35 {offsets = [2, 0], sizes = [1, 48], strides = [1, 1]} : vector<9x48xf32> to vector<1x48xf32>
    %108 = vector.broadcast %107 : vector<1x48xf32> to vector<4x48xf32>
    %109 = arith.mulf %106, %108 : vector<4x48xf32>
    %110 = arith.addf %104, %109 : vector<4x48xf32>
    %c2_63 = arith.constant 2 : index
    %c0_64 = arith.constant 0 : index
    %c0_65 = arith.constant 0 : index
    %111 = vector.load %arg16[%c2_63, %c0_64, %c0_65] : memref<6x6x48xf32, #tpu.memory_space<vmem>>, vector<1x4x48xf32>
    %112 = vector.shape_cast %111 : vector<1x4x48xf32> to vector<4x48xf32>
    %113 = vector.extract_strided_slice %35 {offsets = [3, 0], sizes = [1, 48], strides = [1, 1]} : vector<9x48xf32> to vector<1x48xf32>
    %114 = vector.broadcast %113 : vector<1x48xf32> to vector<4x48xf32>
    %115 = arith.mulf %112, %114 : vector<4x48xf32>
    %116 = arith.addf %110, %115 : vector<4x48xf32>
    %c2_66 = arith.constant 2 : index
    %c1_67 = arith.constant 1 : index
    %c0_68 = arith.constant 0 : index
    %117 = vector.load %arg16[%c2_66, %c1_67, %c0_68] : memref<6x6x48xf32, #tpu.memory_space<vmem>>, vector<1x4x48xf32>
    %118 = vector.shape_cast %117 : vector<1x4x48xf32> to vector<4x48xf32>
    %119 = vector.extract_strided_slice %35 {offsets = [4, 0], sizes = [1, 48], strides = [1, 1]} : vector<9x48xf32> to vector<1x48xf32>
    %120 = vector.broadcast %119 : vector<1x48xf32> to vector<4x48xf32>
    %121 = arith.mulf %118, %120 : vector<4x48xf32>
    %122 = arith.addf %116, %121 : vector<4x48xf32>
    %c2_69 = arith.constant 2 : index
    %c2_70 = arith.constant 2 : index
    %c0_71 = arith.constant 0 : index
    %123 = vector.load %arg16[%c2_69, %c2_70, %c0_71] : memref<6x6x48xf32, #tpu.memory_space<vmem>>, vector<1x4x48xf32>
    %124 = vector.shape_cast %123 : vector<1x4x48xf32> to vector<4x48xf32>
    %125 = vector.extract_strided_slice %35 {offsets = [5, 0], sizes = [1, 48], strides = [1, 1]} : vector<9x48xf32> to vector<1x48xf32>
    %126 = vector.broadcast %125 : vector<1x48xf32> to vector<4x48xf32>
    %127 = arith.mulf %124, %126 : vector<4x48xf32>
    %128 = arith.addf %122, %127 : vector<4x48xf32>
    %c3_72 = arith.constant 3 : index
    %c0_73 = arith.constant 0 : index
    %c0_74 = arith.constant 0 : index
    %129 = vector.load %arg16[%c3_72, %c0_73, %c0_74] : memref<6x6x48xf32, #tpu.memory_space<vmem>>, vector<1x4x48xf32>
    %130 = vector.shape_cast %129 : vector<1x4x48xf32> to vector<4x48xf32>
    %131 = vector.extract_strided_slice %35 {offsets = [6, 0], sizes = [1, 48], strides = [1, 1]} : vector<9x48xf32> to vector<1x48xf32>
    %132 = vector.broadcast %131 : vector<1x48xf32> to vector<4x48xf32>
    %133 = arith.mulf %130, %132 : vector<4x48xf32>
    %134 = arith.addf %128, %133 : vector<4x48xf32>
    %c3_75 = arith.constant 3 : index
    %c1_76 = arith.constant 1 : index
    %c0_77 = arith.constant 0 : index
    %135 = vector.load %arg16[%c3_75, %c1_76, %c0_77] : memref<6x6x48xf32, #tpu.memory_space<vmem>>, vector<1x4x48xf32>
    %136 = vector.shape_cast %135 : vector<1x4x48xf32> to vector<4x48xf32>
    %137 = vector.extract_strided_slice %35 {offsets = [7, 0], sizes = [1, 48], strides = [1, 1]} : vector<9x48xf32> to vector<1x48xf32>
    %138 = vector.broadcast %137 : vector<1x48xf32> to vector<4x48xf32>
    %139 = arith.mulf %136, %138 : vector<4x48xf32>
    %140 = arith.addf %134, %139 : vector<4x48xf32>
    %c3_78 = arith.constant 3 : index
    %c2_79 = arith.constant 2 : index
    %c0_80 = arith.constant 0 : index
    %141 = vector.load %arg16[%c3_78, %c2_79, %c0_80] : memref<6x6x48xf32, #tpu.memory_space<vmem>>, vector<1x4x48xf32>
    %142 = vector.shape_cast %141 : vector<1x4x48xf32> to vector<4x48xf32>
    %143 = vector.extract_strided_slice %35 {offsets = [8, 0], sizes = [1, 48], strides = [1, 1]} : vector<9x48xf32> to vector<1x48xf32>
    %144 = vector.broadcast %143 : vector<1x48xf32> to vector<4x48xf32>
    %145 = arith.mulf %142, %144 : vector<4x48xf32>
    %146 = arith.addf %140, %145 : vector<4x48xf32>
    %c4_81 = arith.constant 4 : index
    %c0_82 = arith.constant 0 : index
    %147 = vector.load %arg17[%c4_81, %c0_82] : memref<16x48xf32, #tpu.memory_space<vmem>>, vector<4x48xf32>
    tpu.vector_store %arg17[%c4_81, %c0_82], %146 {strides = array<i32>} : memref<16x48xf32, #tpu.memory_space<vmem>>, vector<4x48xf32>,
    %cst_83 = arith.constant 0.000000e+00 : f32
    %148 = vector.broadcast %cst_83 : f32 to vector<4x48xf32>
    %c2_84 = arith.constant 2 : index
    %c0_85 = arith.constant 0 : index
    %c0_86 = arith.constant 0 : index
    %149 = vector.load %arg16[%c2_84, %c0_85, %c0_86] : memref<6x6x48xf32, #tpu.memory_space<vmem>>, vector<1x4x48xf32>
    %150 = vector.shape_cast %149 : vector<1x4x48xf32> to vector<4x48xf32>
    %151 = vector.extract_strided_slice %35 {offsets = [0, 0], sizes = [1, 48], strides = [1, 1]} : vector<9x48xf32> to vector<1x48xf32>
    %152 = vector.broadcast %151 : vector<1x48xf32> to vector<4x48xf32>
    %153 = arith.mulf %150, %152 : vector<4x48xf32>
    %154 = arith.addf %148, %153 : vector<4x48xf32>
    %c2_87 = arith.constant 2 : index
    %c1_88 = arith.constant 1 : index
    %c0_89 = arith.constant 0 : index
    %155 = vector.load %arg16[%c2_87, %c1_88, %c0_89] : memref<6x6x48xf32, #tpu.memory_space<vmem>>, vector<1x4x48xf32>
    %156 = vector.shape_cast %155 : vector<1x4x48xf32> to vector<4x48xf32>
    %157 = vector.extract_strided_slice %35 {offsets = [1, 0], sizes = [1, 48], strides = [1, 1]} : vector<9x48xf32> to vector<1x48xf32>
    %158 = vector.broadcast %157 : vector<1x48xf32> to vector<4x48xf32>
    %159 = arith.mulf %156, %158 : vector<4x48xf32>
    %160 = arith.addf %154, %159 : vector<4x48xf32>
    %c2_90 = arith.constant 2 : index
    %c2_91 = arith.constant 2 : index
    %c0_92 = arith.constant 0 : index
    %161 = vector.load %arg16[%c2_90, %c2_91, %c0_92] : memref<6x6x48xf32, #tpu.memory_space<vmem>>, vector<1x4x48xf32>
    %162 = vector.shape_cast %161 : vector<1x4x48xf32> to vector<4x48xf32>
    %163 = vector.extract_strided_slice %35 {offsets = [2, 0], sizes = [1, 48], strides = [1, 1]} : vector<9x48xf32> to vector<1x48xf32>
    %164 = vector.broadcast %163 : vector<1x48xf32> to vector<4x48xf32>
    %165 = arith.mulf %162, %164 : vector<4x48xf32>
    %166 = arith.addf %160, %165 : vector<4x48xf32>
    %c3_93 = arith.constant 3 : index
    %c0_94 = arith.constant 0 : index
    %c0_95 = arith.constant 0 : index
    %167 = vector.load %arg16[%c3_93, %c0_94, %c0_95] : memref<6x6x48xf32, #tpu.memory_space<vmem>>, vector<1x4x48xf32>
    %168 = vector.shape_cast %167 : vector<1x4x48xf32> to vector<4x48xf32>
    %169 = vector.extract_strided_slice %35 {offsets = [3, 0], sizes = [1, 48], strides = [1, 1]} : vector<9x48xf32> to vector<1x48xf32>
    %170 = vector.broadcast %169 : vector<1x48xf32> to vector<4x48xf32>
    %171 = arith.mulf %168, %170 : vector<4x48xf32>
    %172 = arith.addf %166, %171 : vector<4x48xf32>
    %c3_96 = arith.constant 3 : index
    %c1_97 = arith.constant 1 : index
    %c0_98 = arith.constant 0 : index
    %173 = vector.load %arg16[%c3_96, %c1_97, %c0_98] : memref<6x6x48xf32, #tpu.memory_space<vmem>>, vector<1x4x48xf32>
    %174 = vector.shape_cast %173 : vector<1x4x48xf32> to vector<4x48xf32>
    %175 = vector.extract_strided_slice %35 {offsets = [4, 0], sizes = [1, 48], strides = [1, 1]} : vector<9x48xf32> to vector<1x48xf32>
    %176 = vector.broadcast %175 : vector<1x48xf32> to vector<4x48xf32>
    %177 = arith.mulf %174, %176 : vector<4x48xf32>
    %178 = arith.addf %172, %177 : vector<4x48xf32>
    %c3_99 = arith.constant 3 : index
    %c2_100 = arith.constant 2 : index
    %c0_101 = arith.constant 0 : index
    %179 = vector.load %arg16[%c3_99, %c2_100, %c0_101] : memref<6x6x48xf32, #tpu.memory_space<vmem>>, vector<1x4x48xf32>
    %180 = vector.shape_cast %179 : vector<1x4x48xf32> to vector<4x48xf32>
    %181 = vector.extract_strided_slice %35 {offsets = [5, 0], sizes = [1, 48], strides = [1, 1]} : vector<9x48xf32> to vector<1x48xf32>
    %182 = vector.broadcast %181 : vector<1x48xf32> to vector<4x48xf32>
    %183 = arith.mulf %180, %182 : vector<4x48xf32>
    %184 = arith.addf %178, %183 : vector<4x48xf32>
    %c4_102 = arith.constant 4 : index
    %c0_103 = arith.constant 0 : index
    %c0_104 = arith.constant 0 : index
    %185 = vector.load %arg16[%c4_102, %c0_103, %c0_104] : memref<6x6x48xf32, #tpu.memory_space<vmem>>, vector<1x4x48xf32>
    %186 = vector.shape_cast %185 : vector<1x4x48xf32> to vector<4x48xf32>
    %187 = vector.extract_strided_slice %35 {offsets = [6, 0], sizes = [1, 48], strides = [1, 1]} : vector<9x48xf32> to vector<1x48xf32>
    %188 = vector.broadcast %187 : vector<1x48xf32> to vector<4x48xf32>
    %189 = arith.mulf %186, %188 : vector<4x48xf32>
    %190 = arith.addf %184, %189 : vector<4x48xf32>
    %c4_105 = arith.constant 4 : index
    %c1_106 = arith.constant 1 : index
    %c0_107 = arith.constant 0 : index
    %191 = vector.load %arg16[%c4_105, %c1_106, %c0_107] : memref<6x6x48xf32, #tpu.memory_space<vmem>>, vector<1x4x48xf32>
    %192 = vector.shape_cast %191 : vector<1x4x48xf32> to vector<4x48xf32>
    %193 = vector.extract_strided_slice %35 {offsets = [7, 0], sizes = [1, 48], strides = [1, 1]} : vector<9x48xf32> to vector<1x48xf32>
    %194 = vector.broadcast %193 : vector<1x48xf32> to vector<4x48xf32>
    %195 = arith.mulf %192, %194 : vector<4x48xf32>
    %196 = arith.addf %190, %195 : vector<4x48xf32>
    %c4_108 = arith.constant 4 : index
    %c2_109 = arith.constant 2 : index
    %c0_110 = arith.constant 0 : index
    %197 = vector.load %arg16[%c4_108, %c2_109, %c0_110] : memref<6x6x48xf32, #tpu.memory_space<vmem>>, vector<1x4x48xf32>
    %198 = vector.shape_cast %197 : vector<1x4x48xf32> to vector<4x48xf32>
    %199 = vector.extract_strided_slice %35 {offsets = [8, 0], sizes = [1, 48], strides = [1, 1]} : vector<9x48xf32> to vector<1x48xf32>
    %200 = vector.broadcast %199 : vector<1x48xf32> to vector<4x48xf32>
    %201 = arith.mulf %198, %200 : vector<4x48xf32>
    %202 = arith.addf %196, %201 : vector<4x48xf32>
    %c8 = arith.constant 8 : index
    %c0_111 = arith.constant 0 : index
    %203 = vector.load %arg17[%c8, %c0_111] : memref<16x48xf32, #tpu.memory_space<vmem>>, vector<4x48xf32>
    tpu.vector_store %arg17[%c8, %c0_111], %202 {strides = array<i32>} : memref<16x48xf32, #tpu.memory_space<vmem>>, vector<4x48xf32>,
    %cst_112 = arith.constant 0.000000e+00 : f32
    %204 = vector.broadcast %cst_112 : f32 to vector<4x48xf32>
    %c3_113 = arith.constant 3 : index
    %c0_114 = arith.constant 0 : index
    %c0_115 = arith.constant 0 : index
    %205 = vector.load %arg16[%c3_113, %c0_114, %c0_115] : memref<6x6x48xf32, #tpu.memory_space<vmem>>, vector<1x4x48xf32>
    %206 = vector.shape_cast %205 : vector<1x4x48xf32> to vector<4x48xf32>
    %207 = vector.extract_strided_slice %35 {offsets = [0, 0], sizes = [1, 48], strides = [1, 1]} : vector<9x48xf32> to vector<1x48xf32>
    %208 = vector.broadcast %207 : vector<1x48xf32> to vector<4x48xf32>
    %209 = arith.mulf %206, %208 : vector<4x48xf32>
    %210 = arith.addf %204, %209 : vector<4x48xf32>
    %c3_116 = arith.constant 3 : index
    %c1_117 = arith.constant 1 : index
    %c0_118 = arith.constant 0 : index
    %211 = vector.load %arg16[%c3_116, %c1_117, %c0_118] : memref<6x6x48xf32, #tpu.memory_space<vmem>>, vector<1x4x48xf32>
    %212 = vector.shape_cast %211 : vector<1x4x48xf32> to vector<4x48xf32>
    %213 = vector.extract_strided_slice %35 {offsets = [1, 0], sizes = [1, 48], strides = [1, 1]} : vector<9x48xf32> to vector<1x48xf32>
    %214 = vector.broadcast %213 : vector<1x48xf32> to vector<4x48xf32>
    %215 = arith.mulf %212, %214 : vector<4x48xf32>
    %216 = arith.addf %210, %215 : vector<4x48xf32>
    %c3_119 = arith.constant 3 : index
    %c2_120 = arith.constant 2 : index
    %c0_121 = arith.constant 0 : index
    %217 = vector.load %arg16[%c3_119, %c2_120, %c0_121] : memref<6x6x48xf32, #tpu.memory_space<vmem>>, vector<1x4x48xf32>
    %218 = vector.shape_cast %217 : vector<1x4x48xf32> to vector<4x48xf32>
    %219 = vector.extract_strided_slice %35 {offsets = [2, 0], sizes = [1, 48], strides = [1, 1]} : vector<9x48xf32> to vector<1x48xf32>
    %220 = vector.broadcast %219 : vector<1x48xf32> to vector<4x48xf32>
    %221 = arith.mulf %218, %220 : vector<4x48xf32>
    %222 = arith.addf %216, %221 : vector<4x48xf32>
    %c4_122 = arith.constant 4 : index
    %c0_123 = arith.constant 0 : index
    %c0_124 = arith.constant 0 : index
    %223 = vector.load %arg16[%c4_122, %c0_123, %c0_124] : memref<6x6x48xf32, #tpu.memory_space<vmem>>, vector<1x4x48xf32>
    %224 = vector.shape_cast %223 : vector<1x4x48xf32> to vector<4x48xf32>
    %225 = vector.extract_strided_slice %35 {offsets = [3, 0], sizes = [1, 48], strides = [1, 1]} : vector<9x48xf32> to vector<1x48xf32>
    %226 = vector.broadcast %225 : vector<1x48xf32> to vector<4x48xf32>
    %227 = arith.mulf %224, %226 : vector<4x48xf32>
    %228 = arith.addf %222, %227 : vector<4x48xf32>
    %c4_125 = arith.constant 4 : index
    %c1_126 = arith.constant 1 : index
    %c0_127 = arith.constant 0 : index
    %229 = vector.load %arg16[%c4_125, %c1_126, %c0_127] : memref<6x6x48xf32, #tpu.memory_space<vmem>>, vector<1x4x48xf32>
    %230 = vector.shape_cast %229 : vector<1x4x48xf32> to vector<4x48xf32>
    %231 = vector.extract_strided_slice %35 {offsets = [4, 0], sizes = [1, 48], strides = [1, 1]} : vector<9x48xf32> to vector<1x48xf32>
    %232 = vector.broadcast %231 : vector<1x48xf32> to vector<4x48xf32>
    %233 = arith.mulf %230, %232 : vector<4x48xf32>
    %234 = arith.addf %228, %233 : vector<4x48xf32>
    %c4_128 = arith.constant 4 : index
    %c2_129 = arith.constant 2 : index
    %c0_130 = arith.constant 0 : index
    %235 = vector.load %arg16[%c4_128, %c2_129, %c0_130] : memref<6x6x48xf32, #tpu.memory_space<vmem>>, vector<1x4x48xf32>
    %236 = vector.shape_cast %235 : vector<1x4x48xf32> to vector<4x48xf32>
    %237 = vector.extract_strided_slice %35 {offsets = [5, 0], sizes = [1, 48], strides = [1, 1]} : vector<9x48xf32> to vector<1x48xf32>
    %238 = vector.broadcast %237 : vector<1x48xf32> to vector<4x48xf32>
    %239 = arith.mulf %236, %238 : vector<4x48xf32>
    %240 = arith.addf %234, %239 : vector<4x48xf32>
    %c5 = arith.constant 5 : index
    %c0_131 = arith.constant 0 : index
    %c0_132 = arith.constant 0 : index
    %241 = vector.load %arg16[%c5, %c0_131, %c0_132] : memref<6x6x48xf32, #tpu.memory_space<vmem>>, vector<1x4x48xf32>
    %242 = vector.shape_cast %241 : vector<1x4x48xf32> to vector<4x48xf32>
    %243 = vector.extract_strided_slice %35 {offsets = [6, 0], sizes = [1, 48], strides = [1, 1]} : vector<9x48xf32> to vector<1x48xf32>
    %244 = vector.broadcast %243 : vector<1x48xf32> to vector<4x48xf32>
    %245 = arith.mulf %242, %244 : vector<4x48xf32>
    %246 = arith.addf %240, %245 : vector<4x48xf32>
    %c5_133 = arith.constant 5 : index
    %c1_134 = arith.constant 1 : index
    %c0_135 = arith.constant 0 : index
    %247 = vector.load %arg16[%c5_133, %c1_134, %c0_135] : memref<6x6x48xf32, #tpu.memory_space<vmem>>, vector<1x4x48xf32>
    %248 = vector.shape_cast %247 : vector<1x4x48xf32> to vector<4x48xf32>
    %249 = vector.extract_strided_slice %35 {offsets = [7, 0], sizes = [1, 48], strides = [1, 1]} : vector<9x48xf32> to vector<1x48xf32>
    %250 = vector.broadcast %249 : vector<1x48xf32> to vector<4x48xf32>
    %251 = arith.mulf %248, %250 : vector<4x48xf32>
    %252 = arith.addf %246, %251 : vector<4x48xf32>
    %c5_136 = arith.constant 5 : index
    %c2_137 = arith.constant 2 : index
    %c0_138 = arith.constant 0 : index
    %253 = vector.load %arg16[%c5_136, %c2_137, %c0_138] : memref<6x6x48xf32, #tpu.memory_space<vmem>>, vector<1x4x48xf32>
    %254 = vector.shape_cast %253 : vector<1x4x48xf32> to vector<4x48xf32>
    %255 = vector.extract_strided_slice %35 {offsets = [8, 0], sizes = [1, 48], strides = [1, 1]} : vector<9x48xf32> to vector<1x48xf32>
    %256 = vector.broadcast %255 : vector<1x48xf32> to vector<4x48xf32>
    %257 = arith.mulf %254, %256 : vector<4x48xf32>
    %258 = arith.addf %252, %257 : vector<4x48xf32>
    %c12 = arith.constant 12 : index
    %c0_139 = arith.constant 0 : index
    %259 = vector.load %arg17[%c12, %c0_139] : memref<16x48xf32, #tpu.memory_space<vmem>>, vector<4x48xf32>
    tpu.vector_store %arg17[%c12, %c0_139], %258 {strides = array<i32>} : memref<16x48xf32, #tpu.memory_space<vmem>>, vector<4x48xf32>,
    %c0_140 = arith.constant 0 : index
    %c0_141 = arith.constant 0 : index
    %260 = vector.load %arg17[%c0_140, %c0_141] : memref<16x48xf32, #tpu.memory_space<vmem>>, vector<16x48xf32>
    %c0_142 = arith.constant 0 : index
    %c0_143 = arith.constant 0 : index
    %261 = vector.load %arg6[%c0_142, %c0_143] : memref<1x48xf32, #tpu.memory_space<vmem>>, vector<1x48xf32>
    %262 = vector.broadcast %261 : vector<1x48xf32> to vector<16x48xf32>
    %263 = arith.mulf %260, %262 : vector<16x48xf32>
    %c0_144 = arith.constant 0 : index
    %c0_145 = arith.constant 0 : index
    %264 = vector.load %arg7[%c0_144, %c0_145] : memref<1x48xf32, #tpu.memory_space<vmem>>, vector<1x48xf32>
    %265 = vector.broadcast %264 : vector<1x48xf32> to vector<16x48xf32>
    %266 = arith.addf %263, %265 : vector<16x48xf32>
    %267 = arith.negf %266 : vector<16x48xf32>
    %268 = math.exp %267 : vector<16x48xf32>
    %cst_146 = arith.constant 1.000000e+00 : f32
    %269 = vector.broadcast %cst_146 : f32 to vector<16x48xf32>
    %270 = arith.addf %269, %268 : vector<16x48xf32>
    %271 = arith.divf %269, %270 : vector<16x48xf32>
    %272 = arith.mulf %266, %271 : vector<16x48xf32>
    %cst_147 = arith.constant dense<0.000000e+00> : vector<48xf32>
    %273 = vector.multi_reduction <add>, %272, %cst_147 [0] : vector<16x48xf32> to vector<48xf32>
    %274 = vector.shape_cast %273 : vector<48xf32> to vector<1x48xf32>
    %cst_148 = arith.constant 1.600000e+01 : f32
    %275 = vector.broadcast %cst_148 : f32 to vector<1x48xf32>
    %276 = arith.divf %274, %275 : vector<1x48xf32>
    %c0_149 = arith.constant 0 : index
    %c0_150 = arith.constant 0 : index
    %277 = vector.load %arg8[%c0_149, %c0_150] : memref<48x2xf32, #tpu.memory_space<vmem>>, vector<48x2xf32>
    %cst_151 = arith.constant dense<0.000000e+00> : vector<1x2xf32>
    %278 = tpu.matmul %276, %277, %cst_151 {dimension_numbers = #tpu.dot_dimension_numbers<[1], [0], [0], [1], [0, 0, 1, 1], [], []>} : vector<1x48xf32>, vector<48x2xf32>, vector<1x2xf32> -> vector<1x2xf32>
    %c0_152 = arith.constant 0 : index
    %c0_153 = arith.constant 0 : index
    %279 = vector.load %arg9[%c0_152, %c0_153] : memref<1x2xf32, #tpu.memory_space<vmem>>, vector<1x2xf32>
    %280 = arith.addf %278, %279 : vector<1x2xf32>
    %281 = arith.negf %280 : vector<1x2xf32>
    %282 = math.exp %281 : vector<1x2xf32>
    %cst_154 = arith.constant 1.000000e+00 : f32
    %283 = vector.broadcast %cst_154 : f32 to vector<1x2xf32>
    %284 = arith.addf %283, %282 : vector<1x2xf32>
    %285 = arith.divf %283, %284 : vector<1x2xf32>
    %286 = arith.mulf %280, %285 : vector<1x2xf32>
    %c0_155 = arith.constant 0 : index
    %c0_156 = arith.constant 0 : index
    %287 = vector.load %arg10[%c0_155, %c0_156] : memref<2x48xf32, #tpu.memory_space<vmem>>, vector<2x48xf32>
    %cst_157 = arith.constant dense<0.000000e+00> : vector<1x48xf32>
    %288 = tpu.matmul %286, %287, %cst_157 {dimension_numbers = #tpu.dot_dimension_numbers<[1], [0], [0], [1], [0, 0, 1, 1], [], []>} : vector<1x2xf32>, vector<2x48xf32>, vector<1x48xf32> -> vector<1x48xf32>
    %c0_158 = arith.constant 0 : index
    %c0_159 = arith.constant 0 : index
    %289 = vector.load %arg11[%c0_158, %c0_159] : memref<1x48xf32, #tpu.memory_space<vmem>>, vector<1x48xf32>
    %290 = arith.addf %288, %289 : vector<1x48xf32>
    %291 = arith.negf %290 : vector<1x48xf32>
    %292 = math.exp %291 : vector<1x48xf32>
    %cst_160 = arith.constant 1.000000e+00 : f32
    %293 = vector.broadcast %cst_160 : f32 to vector<1x48xf32>
    %294 = arith.addf %293, %292 : vector<1x48xf32>
    %295 = arith.divf %293, %294 : vector<1x48xf32>
    %296 = vector.broadcast %295 : vector<1x48xf32> to vector<16x48xf32>
    %297 = arith.mulf %272, %296 : vector<16x48xf32>
    %298 = arith.truncf %297 : vector<16x48xf32> to vector<16x48xbf16>
    %c0_161 = arith.constant 0 : index
    %c0_162 = arith.constant 0 : index
    %299 = vector.load %arg12[%c0_161, %c0_162] : memref<48x8xbf16, #tpu.memory_space<vmem>>, vector<48x8xbf16>
    %cst_163 = arith.constant dense<0.000000e+00> : vector<16x8xf32>
    %300 = tpu.matmul %298, %299, %cst_163 {dimension_numbers = #tpu.dot_dimension_numbers<[1], [0], [0], [1], [0, 0, 1, 1], [], []>} : vector<16x48xbf16>, vector<48x8xbf16>, vector<16x8xf32> -> vector<16x8xf32>
    %c0_164 = arith.constant 0 : index
    %c0_165 = arith.constant 0 : index
    %301 = vector.load %arg13[%c0_164, %c0_165] : memref<1x8xf32, #tpu.memory_space<vmem>>, vector<1x8xf32>
    %302 = vector.broadcast %301 : vector<1x8xf32> to vector<16x8xf32>
    %303 = arith.mulf %300, %302 : vector<16x8xf32>
    %c0_166 = arith.constant 0 : index
    %c0_167 = arith.constant 0 : index
    %304 = vector.load %arg14[%c0_166, %c0_167] : memref<1x8xf32, #tpu.memory_space<vmem>>, vector<1x8xf32>
    %305 = vector.broadcast %304 : vector<1x8xf32> to vector<16x8xf32>
    %306 = arith.addf %303, %305 : vector<16x8xf32>
    %307 = arith.addf %306, %1 : vector<16x8xf32>
    %c0_168 = arith.constant 0 : index
    %c0_169 = arith.constant 0 : index
    %c0_170 = arith.constant 0 : index
    %308 = vector.load %arg15[%c0_168, %c0_169, %c0_170] : memref<1x16x8xf32, #tpu.memory_space<vmem>>, vector<1x16x8xf32>
    %309 = vector.shape_cast %308 : vector<1x16x8xf32> to vector<16x8xf32>
    %310 = vector.shape_cast %307 : vector<16x8xf32> to vector<1x16x8xf32>
    tpu.vector_store %arg15[%c0_168, %c0_169, %c0_170], %310 {strides = array<i32>} : memref<1x16x8xf32, #tpu.memory_space<vmem>>, vector<1x16x8xf32>,
    return
  }
  func.func @transform_0(%arg0: i32) -> (i32, i32, i32) {
    %c0_i32 = arith.constant 0 : i32
    %c0_i32_0 = arith.constant 0 : i32
    %c0_i32_1 = arith.constant 0 : i32
    return %arg0, %c0_i32, %c0_i32_0 : i32, i32, i32
  }
  func.func @transform_1(%arg0: i32) -> (i32, i32) {
    %c0_i32 = arith.constant 0 : i32
    %c0_i32_0 = arith.constant 0 : i32
    %c0_i32_1 = arith.constant 0 : i32
    return %c0_i32, %c0_i32_0 : i32, i32
  }
  func.func @transform_2(%arg0: i32) -> (i32, i32) {
    %c0_i32 = arith.constant 0 : i32
    %c0_i32_0 = arith.constant 0 : i32
    %c0_i32_1 = arith.constant 0 : i32
    return %c0_i32, %c0_i32_0 : i32, i32
  }
  func.func @transform_3(%arg0: i32) -> (i32, i32) {
    %c0_i32 = arith.constant 0 : i32
    %c0_i32_0 = arith.constant 0 : i32
    %c0_i32_1 = arith.constant 0 : i32
    return %c0_i32, %c0_i32_0 : i32, i32
  }
  func.func @transform_4(%arg0: i32) -> (i32, i32) {
    %c0_i32 = arith.constant 0 : i32
    %c0_i32_0 = arith.constant 0 : i32
    %c0_i32_1 = arith.constant 0 : i32
    return %c0_i32, %c0_i32_0 : i32, i32
  }
  func.func @transform_5(%arg0: i32) -> (i32, i32) {
    %c0_i32 = arith.constant 0 : i32
    %c0_i32_0 = arith.constant 0 : i32
    %c0_i32_1 = arith.constant 0 : i32
    return %c0_i32, %c0_i32_0 : i32, i32
  }
  func.func @transform_6(%arg0: i32) -> (i32, i32) {
    %c0_i32 = arith.constant 0 : i32
    %c0_i32_0 = arith.constant 0 : i32
    %c0_i32_1 = arith.constant 0 : i32
    return %c0_i32, %c0_i32_0 : i32, i32
  }
  func.func @transform_7(%arg0: i32) -> (i32, i32) {
    %c0_i32 = arith.constant 0 : i32
    %c0_i32_0 = arith.constant 0 : i32
    %c0_i32_1 = arith.constant 0 : i32
    return %c0_i32, %c0_i32_0 : i32, i32
  }
  func.func @transform_8(%arg0: i32) -> (i32, i32) {
    %c0_i32 = arith.constant 0 : i32
    %c0_i32_0 = arith.constant 0 : i32
    %c0_i32_1 = arith.constant 0 : i32
    return %c0_i32, %c0_i32_0 : i32, i32
  }
  func.func @transform_9(%arg0: i32) -> (i32, i32) {
    %c0_i32 = arith.constant 0 : i32
    %c0_i32_0 = arith.constant 0 : i32
    %c0_i32_1 = arith.constant 0 : i32
    return %c0_i32, %c0_i32_0 : i32, i32
  }
  func.func @transform_10(%arg0: i32) -> (i32, i32) {
    %c0_i32 = arith.constant 0 : i32
    %c0_i32_0 = arith.constant 0 : i32
    %c0_i32_1 = arith.constant 0 : i32
    return %c0_i32, %c0_i32_0 : i32, i32
  }
  func.func @transform_11(%arg0: i32) -> (i32, i32) {
    %c0_i32 = arith.constant 0 : i32
    %c0_i32_0 = arith.constant 0 : i32
    %c0_i32_1 = arith.constant 0 : i32
    return %c0_i32, %c0_i32_0 : i32, i32
  }
  func.func @transform_12(%arg0: i32) -> (i32, i32) {
    %c0_i32 = arith.constant 0 : i32
    %c0_i32_0 = arith.constant 0 : i32
    %c0_i32_1 = arith.constant 0 : i32
    return %c0_i32, %c0_i32_0 : i32, i32
  }
  func.func @transform_13(%arg0: i32) -> (i32, i32) {
    %c0_i32 = arith.constant 0 : i32
    %c0_i32_0 = arith.constant 0 : i32
    %c0_i32_1 = arith.constant 0 : i32
    return %c0_i32, %c0_i32_0 : i32, i32
  }
  func.func @transform_14(%arg0: i32) -> (i32, i32, i32) {
    %c0_i32 = arith.constant 0 : i32
    %c0_i32_0 = arith.constant 0 : i32
    %c0_i32_1 = arith.constant 0 : i32
    return %arg0, %c0_i32, %c0_i32_0 : i32, i32, i32
  }
}

</mosaic_0001>

<llo_original>
// kernel: _lambda_.5
$region0: #{_lambda_.5}
  #allocation0 [shape = 'u32[]', space=smem, size = 0x4, offset = 0x4, fixed_abs, tag = 'smem constant byte address 0x4 - core index']
  #allocation1 [shape = 'u32[144,128]{1,0:T(1,128)}', space=vmem, size = 0x12000, scoped, tag = 'internal scratch']
  %s0 = inlined_call_operand.vmem [shape: f32[128,27], index: 0, kind: input, shape index: {}]
  %s1 = inlined_call_operand.vmem [shape: bf16[27,8], index: 1, kind: input, shape index: {}]
  %s2 = inlined_call_operand.vmem [shape: f32[1,8], index: 2, kind: input, shape index: {}]
  %s3 = inlined_call_operand.vmem [shape: f32[1,8], index: 3, kind: input, shape index: {}]
  %s4 = inlined_call_operand.vmem [shape: f32[128,8], index: 4, kind: output, shape index: {}]
  %s5 = sld [smem:[#allocation0]]
  $region49: #{_lambda_.5} parent=0
    _
  %s7 = ssub.s32 1, %s5
  %s8 = scalar_select 0, %s7, %s5
  loop: start=0, step=1, limit=4
  $region2: #{_lambda_.5} parent=0 // loop_pre_header
    _
  $region3: #{_lambda_.5} parent=0 // loop_header
    %s10 = sphi 0, %s14
    %p11 = scmp.ge.s32.totalorder %s10, 4
    %s20 = sphi 0, %s22
    %s23 = sphi 0, %s20
    %s24 = sphi 0, %s23
    %s40 = sphi 0, %s24
    %s44 = sphi 0, %s44
    %s46 = sphi 0, %s44
    %s47 = sphi 0, %s46
    %s61 = sphi 0, %s47
    %s65 = sphi 0, %s65
    %s67 = sphi 0, %s65
    %s68 = sphi 0, %s67
    %s82 = sphi 0, %s68
    %s86 = sphi 0, %s86
    %s88 = sphi 0, %s86
    %s89 = sphi 0, %s88
    %s103 = sphi 0, %s89
    %s109 = sphi 0, %s111
    %s112 = sphi 0, %s109
    %s113 = sphi 0, %s112
    %s129 = sphi 0, %s113
  $region4: #{_lambda_.5} parent=0 // loop_header_branch
    %13 = sbr.rel (%p11) target = $region8
  $region5: #{_lambda_.5} parent=0 // loop_body
    %s15 = ssub.s32 %s10, 1
    %s16 = ssub.s32 %s10, 2
    %s17 = sadd.s32 %s10, 1
    %s18 = ssub.s32 %s10, %s17
    %p19 = scmp.eq.s32.totalorder %s18, 0
    %s21 = sadd.s32 %s20, 1
    %s22 = scalar_select %p19, %s20, %s21
    %p25 = pneg %p19
    %p26 = scmp.eq.s32.totalorder %s10, 1
    %p27 = por %p25, %p26
    %p28 = scmp.ne.s32.totalorder %s20, %s23
    %p29 = scmp.eq.s32.totalorder %s10, 0
    %p30 = por %p28, %p29
    %p31 = scmp.ne.s32.totalorder %s20, %s23
    %p32 = scmp.eq.s32.totalorder %s15, 1
    %p33 = por %p31, %p32
    %p34 = scmp.ne.s32.totalorder %s23, %s24
    %p35 = scmp.eq.s32.totalorder %s15, 0
    %p36 = por %p34, %p35
    %p37 = scmp.ne.s32.totalorder %s23, %s24
    %p38 = scmp.eq.s32.totalorder %s16, 1
    %p39 = por %p37, %p38
    %p41 = scmp.ne.s32.totalorder %s24, %s40
    %p42 = scmp.eq.s32.totalorder %s16, 0
    %p43 = por %p41, %p42
    %s45 = sadd.s32 %s44, 1
    %p48 = scmp.eq.s32.totalorder %s10, 1
    %p49 = scmp.ne.s32.totalorder %s44, %s46
    %p50 = scmp.eq.s32.totalorder %s10, 0
    %p51 = por %p49, %p50
    %p52 = scmp.ne.s32.totalorder %s44, %s46
    %p53 = scmp.eq.s32.totalorder %s15, 1
    %p54 = por %p52, %p53
    %p55 = scmp.ne.s32.totalorder %s46, %s47
    %p56 = scmp.eq.s32.totalorder %s15, 0
    %p57 = por %p55, %p56
    %p58 = scmp.ne.s32.totalorder %s46, %s47
    %p59 = scmp.eq.s32.totalorder %s16, 1
    %p60 = por %p58, %p59
    %p62 = scmp.ne.s32.totalorder %s47, %s61
    %p63 = scmp.eq.s32.totalorder %s16, 0
    %p64 = por %p62, %p63
    %s66 = sadd.s32 %s65, 1
    %p69 = scmp.eq.s32.totalorder %s10, 1
    %p70 = scmp.ne.s32.totalorder %s65, %s67
    %p71 = scmp.eq.s32.totalorder %s10, 0
    %p72 = por %p70, %p71
    %p73 = scmp.ne.s32.totalorder %s65, %s67
    %p74 = scmp.eq.s32.totalorder %s15, 1
    %p75 = por %p73, %p74
    %p76 = scmp.ne.s32.totalorder %s67, %s68
    %p77 = scmp.eq.s32.totalorder %s15, 0
    %p78 = por %p76, %p77
    %p79 = scmp.ne.s32.totalorder %s67, %s68
    %p80 = scmp.eq.s32.totalorder %s16, 1
    %p81 = por %p79, %p80
    %p83 = scmp.ne.s32.totalorder %s68, %s82
    %p84 = scmp.eq.s32.totalorder %s16, 0
    %p85 = por %p83, %p84
    %s87 = sadd.s32 %s86, 1
    %p90 = scmp.eq.s32.totalorder %s10, 1
    %p91 = scmp.ne.s32.totalorder %s86, %s88
    %p92 = scmp.eq.s32.totalorder %s10, 0
    %p93 = por %p91, %p92
    %p94 = scmp.ne.s32.totalorder %s86, %s88
    %p95 = scmp.eq.s32.totalorder %s15, 1
    %p96 = por %p94, %p95
    %p97 = scmp.ne.s32.totalorder %s88, %s89
    %p98 = scmp.eq.s32.totalorder %s15, 0
    %p99 = por %p97, %p98
    %p100 = scmp.ne.s32.totalorder %s88, %s89
    %p101 = scmp.eq.s32.totalorder %s16, 1
    %p102 = por %p100, %p101
    %p104 = scmp.ne.s32.totalorder %s89, %s103
    %p105 = scmp.eq.s32.totalorder %s16, 0
    %p106 = por %p104, %p105
    %s107 = ssub.s32 %s10, %s17
    %p108 = scmp.eq.s32.totalorder %s107, 0
    %s110 = sadd.s32 %s109, 1
    %s111 = scalar_select %p108, %s109, %s110
    %p114 = pneg %p108
    %p115 = scmp.eq.s32.totalorder %s10, 1
    %p116 = por %p114, %p115
    %p117 = scmp.ne.s32.totalorder %s109, %s112
    %p118 = scmp.eq.s32.totalorder %s10, 0
    %p119 = por %p117, %p118
    %p120 = scmp.ne.s32.totalorder %s109, %s112
    %p121 = scmp.eq.s32.totalorder %s15, 1
    %p122 = por %p120, %p121
    %p123 = scmp.ne.s32.totalorder %s112, %s113
    %p124 = scmp.eq.s32.totalorder %s15, 0
    %p125 = por %p123, %p124
    %p126 = scmp.ne.s32.totalorder %s112, %s113
    %p127 = scmp.eq.s32.totalorder %s16, 1
    %p128 = por %p126, %p127
    %p130 = scmp.ne.s32.totalorder %s113, %s129
    %p131 = scmp.eq.s32.totalorder %s16, 0
    %p132 = por %p130, %p131
    %p133 = scmp.le.s32.totalorder 1, %s10
    %p134 = scmp.lt.s32.totalorder %s10, 3
    %p135 = pnand %p133, %p134
    %p136 = pneg %p135
    // Predicated region
    $region9: #{_lambda_.5} parent=5 // pred_check
      _
    $region10: #{_lambda_.5} parent=5 // pred_check_branch
      %138 = sbr.rel (%p135) target = $region12
    $region11: #{_lambda_.5} parent=5 // pred_region
      %s139 = ssub.s32 %s10, 1
      // Predicated region
      $region13: #{_lambda_.5} parent=11 // pred_check
        %p140 = pneg %p57
      $region14: #{_lambda_.5} parent=11 // pred_check_branch
        %142 = sbr.rel (%p140) target = $region16
      $region15: #{_lambda_.5} parent=11 // pred_region
        _
      $region16: #{_lambda_.5} parent=11 // pred_fallthru
        _
      // Predicated region
      $region17: #{_lambda_.5} parent=11 // pred_check
        %p143 = pneg %p78
      $region18: #{_lambda_.5} parent=11 // pred_check_branch
        %145 = sbr.rel (%p143) target = $region20
      $region19: #{_lambda_.5} parent=11 // pred_region
        _
      $region20: #{_lambda_.5} parent=11 // pred_fallthru
        _
      // Predicated region
      $region21: #{_lambda_.5} parent=11 // pred_check
        %p146 = pneg %p99
      $region22: #{_lambda_.5} parent=11 // pred_check_branch
        %148 = sbr.rel (%p146) target = $region24
      $region23: #{_lambda_.5} parent=11 // pred_region
        _
      $region24: #{_lambda_.5} parent=11 // pred_fallthru
        _
    $region12: #{_lambda_.5} parent=5 // pred_fallthru
      _
    %p149 = scmp.lt.s32.totalorder %s10, 2
    // Predicated region
    $region25: #{_lambda_.5} parent=5 // pred_check
      %p150 = pneg %p149
    $region26: #{_lambda_.5} parent=5 // pred_check_branch
      %152 = sbr.rel (%p150) target = $region28
    $region27: #{_lambda_.5} parent=5 // pred_region
      // Predicated region
      $region29: #{_lambda_.5} parent=27 // pred_check
        %p153 = pneg %p30
      $region30: #{_lambda_.5} parent=27 // pred_check_branch
        %155 = sbr.rel (%p153) target = $region32
      $region31: #{_lambda_.5} parent=27 // pred_region
        %s156 = smul.u32 8, %s10
        %p157 = scmp.lt.s32.totalorder %s156, 15
        %s158 = scalar_select %p157, %s156, 15
        %s159 = smul.addr %s158, 8
        %s160 = scalar_lea.vmem %s0, %s159
        %s161 = smul.u32 8, %s10
      $region32: #{_lambda_.5} parent=27 // pred_fallthru
        _
    $region28: #{_lambda_.5} parent=5 // pred_fallthru
      _
    %p162 = scmp.le.s32.totalorder 1, %s10
    %p163 = scmp.lt.s32.totalorder %s10, 3
    %p164 = pnand %p162, %p163
    %p165 = pneg %p164
    // Predicated region
    $region33: #{_lambda_.5} parent=5 // pred_check
      _
    $region34: #{_lambda_.5} parent=5 // pred_check_branch
      %167 = sbr.rel (%p164) target = $region36
    $region35: #{_lambda_.5} parent=5 // pred_region
      %s168 = ssub.s32 %s10, 1
      %s169 = smul.u32 8, %s15
      %p170 = scmp.lt.s32.totalorder %s169, 15
      %s171 = scalar_select %p170, %s169, 15
      %s172 = smul.addr %s171, 8
      %s173 = scalar_lea.vmem %s0, %s172
      %p174 = pneg %p36
      %p175 = pneg %p33
      %p176 = pneg %p57
      %p177 = pneg %p54
      %p178 = pneg %p78
      %p179 = pneg %p75
      %p180 = pneg %p99
      %p181 = pneg %p96
      %p182 = pneg %p125
      %p183 = pneg %p122
      %s184 = smul.u32 8, %s15
      %p185 = scmp.lt.s32.totalorder %s184, 15
      %s186 = scalar_select %p185, %s184, 15
      %s187 = smul.addr %s186, 8
      %s188 = scalar_lea.vmem %s4, %s187
      %s189 = smul.u32 8, %s15
      %p190 = scmp.lt.s32.totalorder %s189, 15
      %s191 = scalar_select %p190, %s189, 15
      %s192 = smul.addr %s191, 8
      %s193 = scalar_lea.vmem %s0, %s192
      %s194 = smul.u32 8, %s15
      %s195 = smul.u32 8, %s15
      %p196 = scmp.lt.s32.totalorder %s195, 15
      %s197 = scalar_select %p196, %s195, 15
      %s198 = smul.addr %s197, 8
      %s199 = scalar_lea.vmem %s4, %s198
      %s200 = smul.u32 8, %s15
      %v202 = vld [vmem:[%s193] sm:$0xff]
      %v203 = vld [vmem:[%s193 + $0x8] sm:$0xff]
      %v204 = vld [vmem:[%s193 + $0x10] sm:$0xff]
      %v205 = vld [vmem:[%s193 + $0x18] sm:$0xff]
      %v206 = vld [vmem:[%s193 + $0x20] sm:$0xff]
      %v207 = vld [vmem:[%s193 + $0x28] sm:$0xff]
      %v208 = vld [vmem:[%s193 + $0x30] sm:$0xff]
      %v209 = vld [vmem:[%s193 + $0x38] sm:$0xff]
      %v210 = vpack.c.bf16 %v203, %v202
      %v211 = vpack.c.bf16 %v205, %v204
      %v212 = vpack.c.bf16 %v207, %v206
      %v213 = vpack.c.bf16 %v209, %v208
      %v214 = vld [vmem:[%s1] sm:$0xf]
      %v215 = vld [vmem:[%s1 + $0x4] sm:$0xf]
      %v216 = vld [vmem:[%s1 + $0x8] sm:$0xf]
      %v217 = vld [vmem:[%s1 + $0xc] sm:$0x3]
      %v222 = vunpack.c.l.b16 %v214
      %v223 = vunpack.c.l.b16 %v215
      %v224 = vunpack.c.l.b16 %v216
      %v225 = vunpack.c.l.b16 %v217
      %v226 = vpack.c.b16 %v223, %v222
      %v227 = vpack.c.b16 %v225, %v224
      %vm229 = vcmask 220160
      %v231 = vsel %vm229, %v210, 0
      %v234 = vsel %vm229, %v211, 0
      %v237 = vsel %vm229, %v212, 0
      %v240 = vsel %vm229, %v213, 0
      %vm242 = vcmask 1044480
      %vm243 = vcmask 1045504
      %v244 = vsel %vm242, 4294967295, 65535
      %v245 = vsel %vm243, %v244, 0
      %v247 = vand.u32 %v227, %v245
      %249 = vmatprep.subr.bf16.mxu0 0
      %250 = vmatpush1.bf16.msra.mxu0 %v226
      %251 = vmatprep.subr.bf16.mxu0 0
      %252 = vmatpush1.bf16.msra.mxu0 %v247
      %253 = vmatprep.subr.bf16.mxu0 0
      %254 = vmatpush1.bf16.msra.mxu0 0
      %255 = vmatprep.subr.bf16.mxu0 0
      %256 = vmatpush1.bf16.msra.mxu0 0
      %257 = vmatprep.subr.bf16.mxu0 0
      %258 = vmatpush1.bf16.msra.mxu0 0
      %259 = vmatprep.subr.bf16.mxu0 0
      %260 = vmatpush1.bf16.msra.mxu0 0
      %261 = vmatprep.subr.bf16.mxu0 0
      %262 = vmatpush1.bf16.msra.mxu0 0
      %263 = vmatprep.subr.bf16.mxu0 0
      %264 = vmatpush1.bf16.msra.mxu0 0
      %265 = vmatprep.subr.bf16.mxu0 0
      %266 = vmatpush1.bf16.msra.mxu0 0
      %267 = vmatprep.subr.bf16.mxu0 0
      %268 = vmatpush1.bf16.msra.mxu0 0
      %269 = vmatprep.subr.bf16.mxu0 0
      %270 = vmatpush1.bf16.msra.mxu0 0
      %271 = vmatprep.subr.bf16.mxu0 0
      %272 = vmatpush1.bf16.msra.mxu0 0
      %273 = vmatprep.subr.bf16.mxu0 0
      %274 = vmatpush1.bf16.msra.mxu0 0
      %275 = vmatprep.subr.bf16.mxu0 0
      %276 = vmatpush1.bf16.msra.mxu0 0
      %277 = vmatprep.subr.bf16.mxu0 0
      %278 = vmatpush1.bf16.msra.mxu0 0
      %279 = vmatprep.subr.bf16.mxu0 0
      %280 = vmatpush1.bf16.msra.mxu0 0
      %281 = vmatprep.mubr.bf16.mxu0 0
      %282 = vmatmul.mubr.bf16.gmra.mrb[0].mxu0 %v231
      %v283 = vpop.f32.mrb[0].mxu0
      %v284 = vadd.f32 0.0, %v283
      %v285 = vpop.f32.mrb[0].mxu0
      %v286 = vpop.f32.mrb[0].mxu0
      %v287 = vadd.f32 0.0, %v286
      %v288 = vpop.f32.mrb[0].mxu0
      %289 = vmatprep.mubr.bf16.mxu0 0
      %290 = vmatmul.mubr.bf16.gmra.mrb[0].mxu0 %v234
      %v291 = vpop.f32.mrb[0].mxu0
      %v292 = vadd.f32 0.0, %v291
      %v293 = vpop.f32.mrb[0].mxu0
      %v294 = vpop.f32.mrb[0].mxu0
      %v295 = vadd.f32 0.0, %v294
      %v296 = vpop.f32.mrb[0].mxu0
      %297 = vmatprep.mubr.bf16.mxu0 0
      %298 = vmatmul.mubr.bf16.gmra.mrb[0].mxu0 %v237
      %v299 = vpop.f32.mrb[0].mxu0
      %v300 = vadd.f32 0.0, %v299
      %v301 = vpop.f32.mrb[0].mxu0
      %v302 = vpop.f32.mrb[0].mxu0
      %v303 = vadd.f32 0.0, %v302
      %v304 = vpop.f32.mrb[0].mxu0
      %305 = vmatprep.mubr.bf16.mxu0 0
      %306 = vmatmul.mubr.bf16.gmra.mrb[0].mxu0 %v240
      %v307 = vpop.f32.mrb[0].mxu0
      %v308 = vadd.f32 0.0, %v307
      %v309 = vpop.f32.mrb[0].mxu0
      %v310 = vpop.f32.mrb[0].mxu0
      %v311 = vadd.f32 0.0, %v310
      %v312 = vpop.f32.mrb[0].mxu0
      %313 = vdwg.mxu0
      %v314 = vld [vmem:[%s2] sm:$0x1]
      %v316 = vlaneseq
      %v317 = vshrl.u32 %v316, 7
      %v318 = vsub.s32 0, %v317
      %v319 = vrot.slane %v314, %v318
      %v321 = vmul.f32 %v284, %v319
      %v322 = vmul.f32 %v287, %v319
      %v323 = vmul.f32 %v292, %v319
      %v324 = vmul.f32 %v295, %v319
      %v325 = vmul.f32 %v300, %v319
      %v326 = vmul.f32 %v303, %v319
      %v327 = vmul.f32 %v308, %v319
      %v328 = vmul.f32 %v311, %v319
      %v329 = vld [vmem:[%s3] sm:$0x1]
      %v331 = vlaneseq
      %v332 = vshrl.u32 %v331, 7
      %v333 = vsub.s32 0, %v332
      %v334 = vrot.slane %v329, %v333
      %v336 = vadd.f32 %v321, %v334
      %v337 = vadd.f32 %v322, %v334
      %v338 = vadd.f32 %v323, %v334
      %v339 = vadd.f32 %v324, %v334
      %v340 = vadd.f32 %v325, %v334
      %v341 = vadd.f32 %v326, %v334
      %v342 = vadd.f32 %v327, %v334
      %v343 = vadd.f32 %v328, %v334
      %v344 = vxor.u32 %v336, 2147483648
      %v345 = vxor.u32 %v337, 2147483648
      %v346 = vxor.u32 %v338, 2147483648
      %v347 = vxor.u32 %v339, 2147483648
      %v348 = vxor.u32 %v340, 2147483648
      %v349 = vxor.u32 %v341, 2147483648
      %v350 = vxor.u32 %v342, 2147483648
      %v351 = vxor.u32 %v343, 2147483648
      %v352 = vmul.f32 %v344, 1.442695
      %v353 = vpow.pop %v352
      %v354 = vmul.f32 %v345, 1.442695
      %v355 = vpow.pop %v354
      %v356 = vmul.f32 %v346, 1.442695
      %v357 = vpow.pop %v356
      %v358 = vmul.f32 %v347, 1.442695
      %v359 = vpow.pop %v358
      %v360 = vmul.f32 %v348, 1.442695
      %v361 = vpow.pop %v360
      %v362 = vmul.f32 %v349, 1.442695
      %v363 = vpow.pop %v362
      %v364 = vmul.f32 %v350, 1.442695
      %v365 = vpow.pop %v364
      %v366 = vmul.f32 %v351, 1.442695
      %v367 = vpow.pop %v366
      %v368 = vadd.f32 %v353, 1.0
      %v369 = vadd.f32 %v355, 1.0
      %v370 = vadd.f32 %v357, 1.0
      %v371 = vadd.f32 %v359, 1.0
      %v372 = vadd.f32 %v361, 1.0
      %v373 = vadd.f32 %v363, 1.0
      %v374 = vadd.f32 %v365, 1.0
      %v375 = vadd.f32 %v367, 1.0
      %v376 = vrcp.pop %v368
      %v377 = vmul.f32 1.0, %v376
      %v378 = vrcp.pop %v369
      %v379 = vmul.f32 1.0, %v378
      %v380 = vrcp.pop %v370
      %v381 = vmul.f32 1.0, %v380
      %v382 = vrcp.pop %v371
      %v383 = vmul.f32 1.0, %v382
      %v384 = vrcp.pop %v372
      %v385 = vmul.f32 1.0, %v384
      %v386 = vrcp.pop %v373
      %v387 = vmul.f32 1.0, %v386
      %v388 = vrcp.pop %v374
      %v389 = vmul.f32 1.0, %v388
      %v390 = vrcp.pop %v375
      %v391 = vmul.f32 1.0, %v390
      %v392 = vmul.f32 %v336, %v377
      %v393 = vmul.f32 %v337, %v379
      %v394 = vmul.f32 %v338, %v381
      %v395 = vmul.f32 %v339, %v383
      %v396 = vmul.f32 %v340, %v385
      %v397 = vmul.f32 %v341, %v387
      %v398 = vmul.f32 %v342, %v389
      %v399 = vmul.f32 %v343, %v391
      %vm400 = vcmask 64512
      %401 = vst.msk [vmem:[%s199] sm:$0xff] %vm400, %v392
      %402 = vst.msk [vmem:[%s199 + $0x8] sm:$0xff] %vm400, %v393
      %403 = vst.msk [vmem:[%s199 + $0x10] sm:$0xff] %vm400, %v394
      %404 = vst.msk [vmem:[%s199 + $0x18] sm:$0xff] %vm400, %v395
      %405 = vst.msk [vmem:[%s199 + $0x20] sm:$0xff] %vm400, %v396
      %406 = vst.msk [vmem:[%s199 + $0x28] sm:$0xff] %vm400, %v397
      %407 = vst.msk [vmem:[%s199 + $0x30] sm:$0xff] %vm400, %v398
      %408 = vst.msk [vmem:[%s199 + $0x38] sm:$0xff] %vm400, %v399
      %s409 = smul.u32 8, %s15
      %p410 = scmp.lt.s32.totalorder %s409, 15
      %s411 = scalar_select %p410, %s409, 15
      %s412 = smul.addr %s411, 8
      %s413 = scalar_lea.vmem %s4, %s412
      // Predicated region
      $region37: #{_lambda_.5} parent=35 // pred_check
        %p414 = pneg %p122
      $region38: #{_lambda_.5} parent=35 // pred_check_branch
        %416 = sbr.rel (%p414) target = $region40
      $region39: #{_lambda_.5} parent=35 // pred_region
        %s417 = smul.u32 8, %s15
      $region40: #{_lambda_.5} parent=35 // pred_fallthru
        _
    $region36: #{_lambda_.5} parent=5 // pred_fallthru
      _
    %p418 = scmp.le.s32.totalorder 2, %s10
    // Predicated region
    $region41: #{_lambda_.5} parent=5 // pred_check
      %p419 = pneg %p418
    $region42: #{_lambda_.5} parent=5 // pred_check_branch
      %421 = sbr.rel (%p419) target = $region44
    $region43: #{_lambda_.5} parent=5 // pred_region
      %s422 = ssub.s32 %s10, 2
      // Predicated region
      $region45: #{_lambda_.5} parent=43 // pred_check
        %p423 = pneg %p128
      $region46: #{_lambda_.5} parent=43 // pred_check_branch
        %425 = sbr.rel (%p423) target = $region48
      $region47: #{_lambda_.5} parent=43 // pred_region
        %s426 = smul.u32 8, %s16
        %p427 = scmp.lt.s32.totalorder %s426, 15
        %s428 = scalar_select %p427, %s426, 15
        %s429 = smul.addr %s428, 8
        %s430 = scalar_lea.vmem %s4, %s429
      $region48: #{_lambda_.5} parent=43 // pred_fallthru
        _
    $region44: #{_lambda_.5} parent=5 // pred_fallthru
      _
  $region6: #{_lambda_.5} parent=0 // loop_footer
    %s14 = sadd.s32 1, %s10
  $region7: #{_lambda_.5} parent=0 // loop_footer_branch
    %9 = sbr.rel target = $region3
  $region8: #{_lambda_.5} parent=0 // loop_exit
    _

// kernel: _lambda_.9
$region0: #{_lambda_.9}
  #allocation0 [shape = 'u32[]', space=smem, size = 0x4, offset = 0x4, fixed_abs, tag = 'smem constant byte address 0x4 - core index']
  #allocation1 [shape = 'u32[144,128]{1,0:T(1,128)}', space=vmem, size = 0x12000, scoped, tag = 'internal scratch']
  %s0 = inlined_call_operand.vmem [shape: f32[32,8], index: 0, kind: input, shape index: {}]
  %s1 = inlined_call_operand.vmem [shape: bf16[8,320], index: 1, kind: input, shape index: {}]
  %s2 = inlined_call_operand.vmem [shape: f32[1,320], index: 2, kind: input, shape index: {}]
  %s3 = inlined_call_operand.vmem [shape: f32[1,320], index: 3, kind: input, shape index: {}]
  %s4 = inlined_call_operand.vmem [shape: f32[32,320], index: 4, kind: output, shape index: {}]
  %s5 = sld [smem:[#allocation0]]
  $region49: #{_lambda_.9} parent=0
    _
  %s7 = ssub.s32 1, %s5
  %s8 = scalar_select 0, %s7, %s5
  loop: start=0, step=1, limit=4
  $region2: #{_lambda_.9} parent=0 // loop_pre_header
    _
  $region3: #{_lambda_.9} parent=0 // loop_header
    %s10 = sphi 0, %s14
    %p11 = scmp.ge.s32.totalorder %s10, 4
    %s20 = sphi 0, %s22
    %s23 = sphi 0, %s20
    %s24 = sphi 0, %s23
    %s40 = sphi 0, %s24
    %s44 = sphi 0, %s44
    %s46 = sphi 0, %s44
    %s47 = sphi 0, %s46
    %s61 = sphi 0, %s47
    %s65 = sphi 0, %s65
    %s67 = sphi 0, %s65
    %s68 = sphi 0, %s67
    %s82 = sphi 0, %s68
    %s86 = sphi 0, %s86
    %s88 = sphi 0, %s86
    %s89 = sphi 0, %s88
    %s103 = sphi 0, %s89
    %s109 = sphi 0, %s111
    %s112 = sphi 0, %s109
    %s113 = sphi 0, %s112
    %s129 = sphi 0, %s113
  $region4: #{_lambda_.9} parent=0 // loop_header_branch
    %13 = sbr.rel (%p11) target = $region8
  $region5: #{_lambda_.9} parent=0 // loop_body
    %s15 = ssub.s32 %s10, 1
    %s16 = ssub.s32 %s10, 2
    %s17 = sadd.s32 %s10, 1
    %s18 = ssub.s32 %s10, %s17
    %p19 = scmp.eq.s32.totalorder %s18, 0
    %s21 = sadd.s32 %s20, 1
    %s22 = scalar_select %p19, %s20, %s21
    %p25 = pneg %p19
    %p26 = scmp.eq.s32.totalorder %s10, 1
    %p27 = por %p25, %p26
    %p28 = scmp.ne.s32.totalorder %s20, %s23
    %p29 = scmp.eq.s32.totalorder %s10, 0
    %p30 = por %p28, %p29
    %p31 = scmp.ne.s32.totalorder %s20, %s23
    %p32 = scmp.eq.s32.totalorder %s15, 1
    %p33 = por %p31, %p32
    %p34 = scmp.ne.s32.totalorder %s23, %s24
    %p35 = scmp.eq.s32.totalorder %s15, 0
    %p36 = por %p34, %p35
    %p37 = scmp.ne.s32.totalorder %s23, %s24
    %p38 = scmp.eq.s32.totalorder %s16, 1
    %p39 = por %p37, %p38
    %p41 = scmp.ne.s32.totalorder %s24, %s40
    %p42 = scmp.eq.s32.totalorder %s16, 0
    %p43 = por %p41, %p42
    %s45 = sadd.s32 %s44, 1
    %p48 = scmp.eq.s32.totalorder %s10, 1
    %p49 = scmp.ne.s32.totalorder %s44, %s46
    %p50 = scmp.eq.s32.totalorder %s10, 0
    %p51 = por %p49, %p50
    %p52 = scmp.ne.s32.totalorder %s44, %s46
    %p53 = scmp.eq.s32.totalorder %s15, 1
    %p54 = por %p52, %p53
    %p55 = scmp.ne.s32.totalorder %s46, %s47
    %p56 = scmp.eq.s32.totalorder %s15, 0
    %p57 = por %p55, %p56
    %p58 = scmp.ne.s32.totalorder %s46, %s47
    %p59 = scmp.eq.s32.totalorder %s16, 1
    %p60 = por %p58, %p59
    %p62 = scmp.ne.s32.totalorder %s47, %s61
    %p63 = scmp.eq.s32.totalorder %s16, 0
    %p64 = por %p62, %p63
    %s66 = sadd.s32 %s65, 1
    %p69 = scmp.eq.s32.totalorder %s10, 1
    %p70 = scmp.ne.s32.totalorder %s65, %s67
    %p71 = scmp.eq.s32.totalorder %s10, 0
    %p72 = por %p70, %p71
    %p73 = scmp.ne.s32.totalorder %s65, %s67
    %p74 = scmp.eq.s32.totalorder %s15, 1
    %p75 = por %p73, %p74
    %p76 = scmp.ne.s32.totalorder %s67, %s68
    %p77 = scmp.eq.s32.totalorder %s15, 0
    %p78 = por %p76, %p77
    %p79 = scmp.ne.s32.totalorder %s67, %s68
    %p80 = scmp.eq.s32.totalorder %s16, 1
    %p81 = por %p79, %p80
    %p83 = scmp.ne.s32.totalorder %s68, %s82
    %p84 = scmp.eq.s32.totalorder %s16, 0
    %p85 = por %p83, %p84
    %s87 = sadd.s32 %s86, 1
    %p90 = scmp.eq.s32.totalorder %s10, 1
    %p91 = scmp.ne.s32.totalorder %s86, %s88
    %p92 = scmp.eq.s32.totalorder %s10, 0
    %p93 = por %p91, %p92
    %p94 = scmp.ne.s32.totalorder %s86, %s88
    %p95 = scmp.eq.s32.totalorder %s15, 1
    %p96 = por %p94, %p95
    %p97 = scmp.ne.s32.totalorder %s88, %s89
    %p98 = scmp.eq.s32.totalorder %s15, 0
    %p99 = por %p97, %p98
    %p100 = scmp.ne.s32.totalorder %s88, %s89
    %p101 = scmp.eq.s32.totalorder %s16, 1
    %p102 = por %p100, %p101
    %p104 = scmp.ne.s32.totalorder %s89, %s103
    %p105 = scmp.eq.s32.totalorder %s16, 0
    %p106 = por %p104, %p105
    %s107 = ssub.s32 %s10, %s17
    %p108 = scmp.eq.s32.totalorder %s107, 0
    %s110 = sadd.s32 %s109, 1
    %s111 = scalar_select %p108, %s109, %s110
    %p114 = pneg %p108
    %p115 = scmp.eq.s32.totalorder %s10, 1
    %p116 = por %p114, %p115
    %p117 = scmp.ne.s32.totalorder %s109, %s112
    %p118 = scmp.eq.s32.totalorder %s10, 0
    %p119 = por %p117, %p118
    %p120 = scmp.ne.s32.totalorder %s109, %s112
    %p121 = scmp.eq.s32.totalorder %s15, 1
    %p122 = por %p120, %p121
    %p123 = scmp.ne.s32.totalorder %s112, %s113
    %p124 = scmp.eq.s32.totalorder %s15, 0
    %p125 = por %p123, %p124
    %p126 = scmp.ne.s32.totalorder %s112, %s113
    %p127 = scmp.eq.s32.totalorder %s16, 1
    %p128 = por %p126, %p127
    %p130 = scmp.ne.s32.totalorder %s113, %s129
    %p131 = scmp.eq.s32.totalorder %s16, 0
    %p132 = por %p130, %p131
    %p133 = scmp.le.s32.totalorder 1, %s10
    %p134 = scmp.lt.s32.totalorder %s10, 3
    %p135 = pnand %p133, %p134
    %p136 = pneg %p135
    // Predicated region
    $region9: #{_lambda_.9} parent=5 // pred_check
      _
    $region10: #{_lambda_.9} parent=5 // pred_check_branch
      %138 = sbr.rel (%p135) target = $region12
    $region11: #{_lambda_.9} parent=5 // pred_region
      %s139 = ssub.s32 %s10, 1
      // Predicated region
      $region13: #{_lambda_.9} parent=11 // pred_check
        %p140 = pneg %p57
      $region14: #{_lambda_.9} parent=11 // pred_check_branch
        %142 = sbr.rel (%p140) target = $region16
      $region15: #{_lambda_.9} parent=11 // pred_region
        _
      $region16: #{_lambda_.9} parent=11 // pred_fallthru
        _
      // Predicated region
      $region17: #{_lambda_.9} parent=11 // pred_check
        %p143 = pneg %p78
      $region18: #{_lambda_.9} parent=11 // pred_check_branch
        %145 = sbr.rel (%p143) target = $region20
      $region19: #{_lambda_.9} parent=11 // pred_region
        _
      $region20: #{_lambda_.9} parent=11 // pred_fallthru
        _
      // Predicated region
      $region21: #{_lambda_.9} parent=11 // pred_check
        %p146 = pneg %p99
      $region22: #{_lambda_.9} parent=11 // pred_check_branch
        %148 = sbr.rel (%p146) target = $region24
      $region23: #{_lambda_.9} parent=11 // pred_region
        _
      $region24: #{_lambda_.9} parent=11 // pred_fallthru
        _
    $region12: #{_lambda_.9} parent=5 // pred_fallthru
      _
    %p149 = scmp.lt.s32.totalorder %s10, 2
    // Predicated region
    $region25: #{_lambda_.9} parent=5 // pred_check
      %p150 = pneg %p149
    $region26: #{_lambda_.9} parent=5 // pred_check_branch
      %152 = sbr.rel (%p150) target = $region28
    $region27: #{_lambda_.9} parent=5 // pred_region
      // Predicated region
      $region29: #{_lambda_.9} parent=27 // pred_check
        %p153 = pneg %p30
      $region30: #{_lambda_.9} parent=27 // pred_check_branch
        %155 = sbr.rel (%p153) target = $region32
      $region31: #{_lambda_.9} parent=27 // pred_region
        %s156 = smul.u32 2, %s10
        %p157 = scmp.lt.s32.totalorder %s156, 3
        %s158 = scalar_select %p157, %s156, 3
        %s159 = smul.addr %s158, 8
        %s160 = scalar_lea.vmem %s0, %s159
        %s161 = smul.u32 2, %s10
      $region32: #{_lambda_.9} parent=27 // pred_fallthru
        _
    $region28: #{_lambda_.9} parent=5 // pred_fallthru
      _
    %p162 = scmp.le.s32.totalorder 1, %s10
    %p163 = scmp.lt.s32.totalorder %s10, 3
    %p164 = pnand %p162, %p163
    %p165 = pneg %p164
    // Predicated region
    $region33: #{_lambda_.9} parent=5 // pred_check
      _
    $region34: #{_lambda_.9} parent=5 // pred_check_branch
      %167 = sbr.rel (%p164) target = $region36
    $region35: #{_lambda_.9} parent=5 // pred_region
      %s168 = ssub.s32 %s10, 1
      %s169 = smul.u32 2, %s15
      %p170 = scmp.lt.s32.totalorder %s169, 3
      %s171 = scalar_select %p170, %s169, 3
      %s172 = smul.addr %s171, 8
      %s173 = scalar_lea.vmem %s0, %s172
      %p174 = pneg %p36
      %p175 = pneg %p33
      %p176 = pneg %p57
      %p177 = pneg %p54
      %p178 = pneg %p78
      %p179 = pneg %p75
      %p180 = pneg %p99
      %p181 = pneg %p96
      %p182 = pneg %p125
      %p183 = pneg %p122
      %s184 = smul.u32 2, %s15
      %p185 = scmp.lt.s32.totalorder %s184, 3
      %s186 = scalar_select %p185, %s184, 3
      %s187 = smul.addr %s186, 3
      %s188 = smul.addr %s187, 8
      %s189 = scalar_lea.vmem %s4, %s188
      %s190 = smul.u32 2, %s15
      %p191 = scmp.lt.s32.totalorder %s190, 3
      %s192 = scalar_select %p191, %s190, 3
      %s193 = smul.addr %s192, 8
      %s194 = scalar_lea.vmem %s0, %s193
      %s195 = smul.u32 2, %s15
      %s196 = smul.u32 2, %s15
      %p197 = scmp.lt.s32.totalorder %s196, 3
      %s198 = scalar_select %p197, %s196, 3
      %s199 = smul.addr %s198, 3
      %s200 = smul.addr %s199, 8
      %s201 = scalar_lea.vmem %s4, %s200
      %s202 = smul.u32 2, %s15
      %v204 = vld [vmem:[%s194] sm:$0xff]
      %v205 = vld [vmem:[%s194 + $0x8] sm:$0xff]
      %v206 = vpack.c.bf16 %v205, %v204
      %v207 = vld [vmem:[%s1] sm:$0xff]
      %v208 = vld [vmem:[%s1 + $0x8] sm:$0xf]
      %v211 = vunpack.c.l.b16 %v207
      %v212 = vunpack.c.h.b16 %v207
      %v213 = vunpack.c.l.b16 %v208
      %v214 = vpack.c.b16 %v211, %v211
      %v215 = vpack.c.b16 %v212, %v212
      %v216 = vpack.c.b16 %v213, %v213
      %vm217 = vcmask 64512
      %v219 = vsel %vm217, %v206, 0
      %vm221 = vcmask 1043456
      %v223 = vsel %vm221, %v214, 0
      %v226 = vsel %vm221, %v215, 0
      %v229 = vsel %vm221, %v216, 0
      %231 = vmatprep.subr.bf16.mxu0 %v226
      %232 = vmatpush1.bf16.msra.mxu0 %v223
      %233 = vmatprep.subr.bf16.mxu0 0
      %234 = vmatpush1.bf16.msra.mxu0 0
      %235 = vmatprep.subr.bf16.mxu0 0
      %236 = vmatpush1.bf16.msra.mxu0 0
      %237 = vmatprep.subr.bf16.mxu0 0
      %238 = vmatpush1.bf16.msra.mxu0 0
      %239 = vmatprep.subr.bf16.mxu0 0
      %240 = vmatpush1.bf16.msra.mxu0 0
      %241 = vmatprep.subr.bf16.mxu0 0
      %242 = vmatpush1.bf16.msra.mxu0 0
      %243 = vmatprep.subr.bf16.mxu0 0
      %244 = vmatpush1.bf16.msra.mxu0 0
      %245 = vmatprep.subr.bf16.mxu0 0
      %246 = vmatpush1.bf16.msra.mxu0 0
      %247 = vmatprep.subr.bf16.mxu0 0
      %248 = vmatpush1.bf16.msra.mxu0 0
      %249 = vmatprep.subr.bf16.mxu0 0
      %250 = vmatpush1.bf16.msra.mxu0 0
      %251 = vmatprep.subr.bf16.mxu0 0
      %252 = vmatpush1.bf16.msra.mxu0 0
      %253 = vmatprep.subr.bf16.mxu0 0
      %254 = vmatpush1.bf16.msra.mxu0 0
      %255 = vmatprep.subr.bf16.mxu0 0
      %256 = vmatpush1.bf16.msra.mxu0 0
      %257 = vmatprep.subr.bf16.mxu0 0
      %258 = vmatpush1.bf16.msra.mxu0 0
      %259 = vmatprep.subr.bf16.mxu0 0
      %260 = vmatpush1.bf16.msra.mxu0 0
      %261 = vmatprep.subr.bf16.mxu0 0
      %262 = vmatpush1.bf16.msra.mxu0 0
      %263 = vmatprep.mubr.bf16.mxu0 0
      %264 = vmatmul.mubr.bf16.gmra.mrb[0].mxu0 %v219
      %v265 = vpop.f32.mrb[0].mxu0
      %v266 = vadd.f32 0.0, %v265
      %v267 = vpop.f32.mrb[0].mxu0
      %v268 = vadd.f32 0.0, %v267
      %v269 = vpop.f32.mrb[0].mxu0
      %v270 = vadd.f32 0.0, %v269
      %v271 = vpop.f32.mrb[0].mxu0
      %v272 = vadd.f32 0.0, %v271
      %273 = vdwg.mxu0
      %274 = vmatprep.subr.bf16.mxu0 0
      %275 = vmatpush1.bf16.msra.mxu0 %v229
      %276 = vmatprep.subr.bf16.mxu0 0
      %277 = vmatpush1.bf16.msra.mxu0 0
      %278 = vmatprep.subr.bf16.mxu0 0
      %279 = vmatpush1.bf16.msra.mxu0 0
      %280 = vmatprep.subr.bf16.mxu0 0
      %281 = vmatpush1.bf16.msra.mxu0 0
      %282 = vmatprep.subr.bf16.mxu0 0
      %283 = vmatpush1.bf16.msra.mxu0 0
      %284 = vmatprep.subr.bf16.mxu0 0
      %285 = vmatpush1.bf16.msra.mxu0 0
      %286 = vmatprep.subr.bf16.mxu0 0
      %287 = vmatpush1.bf16.msra.mxu0 0
      %288 = vmatprep.subr.bf16.mxu0 0
      %289 = vmatpush1.bf16.msra.mxu0 0
      %290 = vmatprep.subr.bf16.mxu0 0
      %291 = vmatpush1.bf16.msra.mxu0 0
      %292 = vmatprep.subr.bf16.mxu0 0
      %293 = vmatpush1.bf16.msra.mxu0 0
      %294 = vmatprep.subr.bf16.mxu0 0
      %295 = vmatpush1.bf16.msra.mxu0 0
      %296 = vmatprep.subr.bf16.mxu0 0
      %297 = vmatpush1.bf16.msra.mxu0 0
      %298 = vmatprep.subr.bf16.mxu0 0
      %299 = vmatpush1.bf16.msra.mxu0 0
      %300 = vmatprep.subr.bf16.mxu0 0
      %301 = vmatpush1.bf16.msra.mxu0 0
      %302 = vmatprep.subr.bf16.mxu0 0
      %303 = vmatpush1.bf16.msra.mxu0 0
      %304 = vmatprep.subr.bf16.mxu0 0
      %305 = vmatpush1.bf16.msra.mxu0 0
      %306 = vmatprep.mubr.bf16.mxu0 0
      %307 = vmatmul.mubr.bf16.gmra.mrb[0].mxu0 %v219
      %v308 = vpop.f32.mrb[0].mxu0
      %v309 = vadd.f32 0.0, %v308
      %v310 = vpop.f32.mrb[0].mxu0
      %v311 = vpop.f32.mrb[0].mxu0
      %v312 = vadd.f32 0.0, %v311
      %v313 = vpop.f32.mrb[0].mxu0
      %314 = vdwg.mxu0
      %v315 = vld [vmem:[%s2] sm:$0x7]
      %v317 = vlaneseq
      %v318 = vshrl.u32 %v317, 7
      %v319 = vsub.s32 0, %v318
      %v320 = vrot.slane %v315, %v319
      %v321 = vlaneseq
      %v322 = vshrl.u32 %v321, 7
      %v323 = vsub.s32 1, %v322
      %v324 = vrot.slane %v315, %v323
      %v325 = vlaneseq
      %v326 = vshrl.u32 %v325, 7
      %v327 = vsub.s32 2, %v326
      %v328 = vrot.slane %v315, %v327
      %v332 = vmul.f32 %v266, %v320
      %v333 = vmul.f32 %v268, %v324
      %v334 = vmul.f32 %v309, %v328
      %v335 = vmul.f32 %v270, %v320
      %v336 = vmul.f32 %v272, %v324
      %v337 = vmul.f32 %v312, %v328
      %v338 = vld [vmem:[%s3] sm:$0x7]
      %v340 = vlaneseq
      %v341 = vshrl.u32 %v340, 7
      %v342 = vsub.s32 0, %v341
      %v343 = vrot.slane %v338, %v342
      %v344 = vlaneseq
      %v345 = vshrl.u32 %v344, 7
      %v346 = vsub.s32 1, %v345
      %v347 = vrot.slane %v338, %v346
      %v348 = vlaneseq
      %v349 = vshrl.u32 %v348, 7
      %v350 = vsub.s32 2, %v349
      %v351 = vrot.slane %v338, %v350
      %v355 = vadd.f32 %v332, %v343
      %v356 = vadd.f32 %v333, %v347
      %v357 = vadd.f32 %v334, %v351
      %v358 = vadd.f32 %v335, %v343
      %v359 = vadd.f32 %v336, %v347
      %v360 = vadd.f32 %v337, %v351
      %v361 = vxor.u32 %v355, 2147483648
      %v362 = vxor.u32 %v356, 2147483648
      %v363 = vxor.u32 %v357, 2147483648
      %v364 = vxor.u32 %v358, 2147483648
      %v365 = vxor.u32 %v359, 2147483648
      %v366 = vxor.u32 %v360, 2147483648
      %v367 = vmul.f32 %v361, 1.442695
      %v368 = vpow.pop %v367
      %v369 = vmul.f32 %v362, 1.442695
      %v370 = vpow.pop %v369
      %v371 = vmul.f32 %v363, 1.442695
      %v372 = vpow.pop %v371
      %v373 = vmul.f32 %v364, 1.442695
      %v374 = vpow.pop %v373
      %v375 = vmul.f32 %v365, 1.442695
      %v376 = vpow.pop %v375
      %v377 = vmul.f32 %v366, 1.442695
      %v378 = vpow.pop %v377
      %v379 = vadd.f32 %v368, 1.0
      %v380 = vadd.f32 %v370, 1.0
      %v381 = vadd.f32 %v372, 1.0
      %v382 = vadd.f32 %v374, 1.0
      %v383 = vadd.f32 %v376, 1.0
      %v384 = vadd.f32 %v378, 1.0
      %v385 = vrcp.pop %v379
      %v386 = vmul.f32 1.0, %v385
      %v387 = vrcp.pop %v380
      %v388 = vmul.f32 1.0, %v387
      %v389 = vrcp.pop %v381
      %v390 = vmul.f32 1.0, %v389
      %v391 = vrcp.pop %v382
      %v392 = vmul.f32 1.0, %v391
      %v393 = vrcp.pop %v383
      %v394 = vmul.f32 1.0, %v393
      %v395 = vrcp.pop %v384
      %v396 = vmul.f32 1.0, %v395
      %v397 = vmul.f32 %v355, %v386
      %v398 = vmul.f32 %v356, %v388
      %v399 = vmul.f32 %v357, %v390
      %v400 = vmul.f32 %v358, %v392
      %v401 = vmul.f32 %v359, %v394
      %v402 = vmul.f32 %v360, %v396
      %403 = vst [vmem:[%s201] sm:$0xff] %v397
      %404 = vst [vmem:[%s201 + $0x8] sm:$0xff] %v398
      %vm405 = vcmask 523264
      %406 = vst.msk [vmem:[%s201 + $0x10] sm:$0xff] %vm405, %v399
      %407 = vst [vmem:[%s201 + $0x18] sm:$0xff] %v400
      %408 = vst [vmem:[%s201 + $0x20] sm:$0xff] %v401
      %409 = vst.msk [vmem:[%s201 + $0x28] sm:$0xff] %vm405, %v402
      %s410 = smul.u32 2, %s15
      %p411 = scmp.lt.s32.totalorder %s410, 3
      %s412 = scalar_select %p411, %s410, 3
      %s413 = smul.addr %s412, 3
      %s414 = smul.addr %s413, 8
      %s415 = scalar_lea.vmem %s4, %s414
      // Predicated region
      $region37: #{_lambda_.9} parent=35 // pred_check
        %p416 = pneg %p122
      $region38: #{_lambda_.9} parent=35 // pred_check_branch
        %418 = sbr.rel (%p416) target = $region40
      $region39: #{_lambda_.9} parent=35 // pred_region
        %s419 = smul.u32 2, %s15
      $region40: #{_lambda_.9} parent=35 // pred_fallthru
        _
    $region36: #{_lambda_.9} parent=5 // pred_fallthru
      _
    %p420 = scmp.le.s32.totalorder 2, %s10
    // Predicated region
    $region41: #{_lambda_.9} parent=5 // pred_check
      %p421 = pneg %p420
    $region42: #{_lambda_.9} parent=5 // pred_check_branch
      %423 = sbr.rel (%p421) target = $region44
    $region43: #{_lambda_.9} parent=5 // pred_region
      %s424 = ssub.s32 %s10, 2
      // Predicated region
      $region45: #{_lambda_.9} parent=43 // pred_check
        %p425 = pneg %p128
      $region46: #{_lambda_.9} parent=43 // pred_check_branch
        %427 = sbr.rel (%p425) target = $region48
      $region47: #{_lambda_.9} parent=43 // pred_region
        %s428 = smul.u32 2, %s16
        %p429 = scmp.lt.s32.totalorder %s428, 3
        %s430 = scalar_select %p429, %s428, 3
        %s431 = smul.addr %s430, 3
        %s432 = smul.addr %s431, 8
        %s433 = scalar_lea.vmem %s4, %s432
      $region48: #{_lambda_.9} parent=43 // pred_fallthru
        _
    $region44: #{_lambda_.9} parent=5 // pred_fallthru
      _
  $region6: #{_lambda_.9} parent=0 // loop_footer
    %s14 = sadd.s32 1, %s10
  $region7: #{_lambda_.9} parent=0 // loop_footer_branch
    %9 = sbr.rel target = $region3
  $region8: #{_lambda_.9} parent=0 // loop_exit
    _

// kernel: _lambda_.6
$region0: #{_lambda_.6}
  #allocation0 [shape = 'u32[]', space=smem, size = 0x4, offset = 0x4, fixed_abs, tag = 'smem constant byte address 0x4 - core index']
  #allocation1 [shape = 'u32[144,128]{1,0:T(1,128)}', space=vmem, size = 0x12000, scoped, tag = 'internal scratch']
  %s0 = inlined_call_operand.vmem [shape: f32[2,9,16,8], index: 0, kind: input, shape index: {}]
  %s1 = inlined_call_operand.vmem [shape: f32[9,8], index: 1, kind: input, shape index: {}]
  %s2 = inlined_call_operand.vmem [shape: f32[1,8], index: 2, kind: input, shape index: {}]
  %s3 = inlined_call_operand.vmem [shape: f32[1,8], index: 3, kind: input, shape index: {}]
  %s4 = inlined_call_operand.vmem [shape: f32[8,2], index: 4, kind: input, shape index: {}]
  %s5 = inlined_call_operand.vmem [shape: f32[1,2], index: 5, kind: input, shape index: {}]
  %s6 = inlined_call_operand.vmem [shape: f32[2,8], index: 6, kind: input, shape index: {}]
  %s7 = inlined_call_operand.vmem [shape: f32[1,8], index: 7, kind: input, shape index: {}]
  %s8 = inlined_call_operand.vmem [shape: bf16[8,8], index: 8, kind: input, shape index: {}]
  %s9 = inlined_call_operand.vmem [shape: f32[1,8], index: 9, kind: input, shape index: {}]
  %s10 = inlined_call_operand.vmem [shape: f32[1,8], index: 10, kind: input, shape index: {}]
  %s11 = inlined_call_operand.vmem [shape: f32[2,16,8], index: 11, kind: output, shape index: {}]
  %s12 = sld [smem:[#allocation0]]
  $region77: #{_lambda_.6} parent=0
    _
  %s14 = ssub.s32 1, %s12
  %s15 = scalar_select 0, %s14, %s12
  loop: start=0, step=1, limit=4
  $region2: #{_lambda_.6} parent=0 // loop_pre_header
    _
  $region3: #{_lambda_.6} parent=0 // loop_header
    %s17 = sphi 0, %s21
    %p18 = scmp.ge.s32.totalorder %s17, 4
    %s27 = sphi 0, %s29
    %s30 = sphi 0, %s27
    %s31 = sphi 0, %s30
    %s47 = sphi 0, %s31
    %s51 = sphi 0, %s51
    %s53 = sphi 0, %s51
    %s54 = sphi 0, %s53
    %s68 = sphi 0, %s54
    %s72 = sphi 0, %s72
    %s74 = sphi 0, %s72
    %s75 = sphi 0, %s74
    %s89 = sphi 0, %s75
    %s93 = sphi 0, %s93
    %s95 = sphi 0, %s93
    %s96 = sphi 0, %s95
    %s110 = sphi 0, %s96
    %s114 = sphi 0, %s114
    %s116 = sphi 0, %s114
    %s117 = sphi 0, %s116
    %s131 = sphi 0, %s117
    %s135 = sphi 0, %s135
    %s137 = sphi 0, %s135
    %s138 = sphi 0, %s137
    %s152 = sphi 0, %s138
    %s156 = sphi 0, %s156
    %s158 = sphi 0, %s156
    %s159 = sphi 0, %s158
    %s173 = sphi 0, %s159
    %s177 = sphi 0, %s177
    %s179 = sphi 0, %s177
    %s180 = sphi 0, %s179
    %s194 = sphi 0, %s180
    %s198 = sphi 0, %s198
    %s200 = sphi 0, %s198
    %s201 = sphi 0, %s200
    %s215 = sphi 0, %s201
    %s219 = sphi 0, %s219
    %s221 = sphi 0, %s219
    %s222 = sphi 0, %s221
    %s236 = sphi 0, %s222
    %s240 = sphi 0, %s240
    %s242 = sphi 0, %s240
    %s243 = sphi 0, %s242
    %s257 = sphi 0, %s243
    %s263 = sphi 0, %s265
    %s266 = sphi 0, %s263
    %s267 = sphi 0, %s266
    %s283 = sphi 0, %s267
  $region4: #{_lambda_.6} parent=0 // loop_header_branch
    %20 = sbr.rel (%p18) target = $region8
  $region5: #{_lambda_.6} parent=0 // loop_body
    %s22 = ssub.s32 %s17, 1
    %s23 = ssub.s32 %s17, 2
    %s24 = sadd.s32 %s17, 1
    %s25 = ssub.s32 %s17, %s24
    %p26 = scmp.eq.s32.totalorder %s25, 0
    %s28 = sadd.s32 %s27, 1
    %s29 = scalar_select %p26, %s27, %s28
    %p32 = pneg %p26
    %p33 = scmp.eq.s32.totalorder %s17, 1
    %p34 = por %p32, %p33
    %p35 = scmp.ne.s32.totalorder %s27, %s30
    %p36 = scmp.eq.s32.totalorder %s17, 0
    %p37 = por %p35, %p36
    %p38 = scmp.ne.s32.totalorder %s27, %s30
    %p39 = scmp.eq.s32.totalorder %s22, 1
    %p40 = por %p38, %p39
    %p41 = scmp.ne.s32.totalorder %s30, %s31
    %p42 = scmp.eq.s32.totalorder %s22, 0
    %p43 = por %p41, %p42
    %p44 = scmp.ne.s32.totalorder %s30, %s31
    %p45 = scmp.eq.s32.totalorder %s23, 1
    %p46 = por %p44, %p45
    %p48 = scmp.ne.s32.totalorder %s31, %s47
    %p49 = scmp.eq.s32.totalorder %s23, 0
    %p50 = por %p48, %p49
    %s52 = sadd.s32 %s51, 1
    %p55 = scmp.eq.s32.totalorder %s17, 1
    %p56 = scmp.ne.s32.totalorder %s51, %s53
    %p57 = scmp.eq.s32.totalorder %s17, 0
    %p58 = por %p56, %p57
    %p59 = scmp.ne.s32.totalorder %s51, %s53
    %p60 = scmp.eq.s32.totalorder %s22, 1
    %p61 = por %p59, %p60
    %p62 = scmp.ne.s32.totalorder %s53, %s54
    %p63 = scmp.eq.s32.totalorder %s22, 0
    %p64 = por %p62, %p63
    %p65 = scmp.ne.s32.totalorder %s53, %s54
    %p66 = scmp.eq.s32.totalorder %s23, 1
    %p67 = por %p65, %p66
    %p69 = scmp.ne.s32.totalorder %s54, %s68
    %p70 = scmp.eq.s32.totalorder %s23, 0
    %p71 = por %p69, %p70
    %s73 = sadd.s32 %s72, 1
    %p76 = scmp.eq.s32.totalorder %s17, 1
    %p77 = scmp.ne.s32.totalorder %s72, %s74
    %p78 = scmp.eq.s32.totalorder %s17, 0
    %p79 = por %p77, %p78
    %p80 = scmp.ne.s32.totalorder %s72, %s74
    %p81 = scmp.eq.s32.totalorder %s22, 1
    %p82 = por %p80, %p81
    %p83 = scmp.ne.s32.totalorder %s74, %s75
    %p84 = scmp.eq.s32.totalorder %s22, 0
    %p85 = por %p83, %p84
    %p86 = scmp.ne.s32.totalorder %s74, %s75
    %p87 = scmp.eq.s32.totalorder %s23, 1
    %p88 = por %p86, %p87
    %p90 = scmp.ne.s32.totalorder %s75, %s89
    %p91 = scmp.eq.s32.totalorder %s23, 0
    %p92 = por %p90, %p91
    %s94 = sadd.s32 %s93, 1
    %p97 = scmp.eq.s32.totalorder %s17, 1
    %p98 = scmp.ne.s32.totalorder %s93, %s95
    %p99 = scmp.eq.s32.totalorder %s17, 0
    %p100 = por %p98, %p99
    %p101 = scmp.ne.s32.totalorder %s93, %s95
    %p102 = scmp.eq.s32.totalorder %s22, 1
    %p103 = por %p101, %p102
    %p104 = scmp.ne.s32.totalorder %s95, %s96
    %p105 = scmp.eq.s32.totalorder %s22, 0
    %p106 = por %p104, %p105
    %p107 = scmp.ne.s32.totalorder %s95, %s96
    %p108 = scmp.eq.s32.totalorder %s23, 1
    %p109 = por %p107, %p108
    %p111 = scmp.ne.s32.totalorder %s96, %s110
    %p112 = scmp.eq.s32.totalorder %s23, 0
    %p113 = por %p111, %p112
    %s115 = sadd.s32 %s114, 1
    %p118 = scmp.eq.s32.totalorder %s17, 1
    %p119 = scmp.ne.s32.totalorder %s114, %s116
    %p120 = scmp.eq.s32.totalorder %s17, 0
    %p121 = por %p119, %p120
    %p122 = scmp.ne.s32.totalorder %s114, %s116
    %p123 = scmp.eq.s32.totalorder %s22, 1
    %p124 = por %p122, %p123
    %p125 = scmp.ne.s32.totalorder %s116, %s117
    %p126 = scmp.eq.s32.totalorder %s22, 0
    %p127 = por %p125, %p126
    %p128 = scmp.ne.s32.totalorder %s116, %s117
    %p129 = scmp.eq.s32.totalorder %s23, 1
    %p130 = por %p128, %p129
    %p132 = scmp.ne.s32.totalorder %s117, %s131
    %p133 = scmp.eq.s32.totalorder %s23, 0
    %p134 = por %p132, %p133
    %s136 = sadd.s32 %s135, 1
    %p139 = scmp.eq.s32.totalorder %s17, 1
    %p140 = scmp.ne.s32.totalorder %s135, %s137
    %p141 = scmp.eq.s32.totalorder %s17, 0
    %p142 = por %p140, %p141
    %p143 = scmp.ne.s32.totalorder %s135, %s137
    %p144 = scmp.eq.s32.totalorder %s22, 1
    %p145 = por %p143, %p144
    %p146 = scmp.ne.s32.totalorder %s137, %s138
    %p147 = scmp.eq.s32.totalorder %s22, 0
    %p148 = por %p146, %p147
    %p149 = scmp.ne.s32.totalorder %s137, %s138
    %p150 = scmp.eq.s32.totalorder %s23, 1
    %p151 = por %p149, %p150
    %p153 = scmp.ne.s32.totalorder %s138, %s152
    %p154 = scmp.eq.s32.totalorder %s23, 0
    %p155 = por %p153, %p154
    %s157 = sadd.s32 %s156, 1
    %p160 = scmp.eq.s32.totalorder %s17, 1
    %p161 = scmp.ne.s32.totalorder %s156, %s158
    %p162 = scmp.eq.s32.totalorder %s17, 0
    %p163 = por %p161, %p162
    %p164 = scmp.ne.s32.totalorder %s156, %s158
    %p165 = scmp.eq.s32.totalorder %s22, 1
    %p166 = por %p164, %p165
    %p167 = scmp.ne.s32.totalorder %s158, %s159
    %p168 = scmp.eq.s32.totalorder %s22, 0
    %p169 = por %p167, %p168
    %p170 = scmp.ne.s32.totalorder %s158, %s159
    %p171 = scmp.eq.s32.totalorder %s23, 1
    %p172 = por %p170, %p171
    %p174 = scmp.ne.s32.totalorder %s159, %s173
    %p175 = scmp.eq.s32.totalorder %s23, 0
    %p176 = por %p174, %p175
    %s178 = sadd.s32 %s177, 1
    %p181 = scmp.eq.s32.totalorder %s17, 1
    %p182 = scmp.ne.s32.totalorder %s177, %s179
    %p183 = scmp.eq.s32.totalorder %s17, 0
    %p184 = por %p182, %p183
    %p185 = scmp.ne.s32.totalorder %s177, %s179
    %p186 = scmp.eq.s32.totalorder %s22, 1
    %p187 = por %p185, %p186
    %p188 = scmp.ne.s32.totalorder %s179, %s180
    %p189 = scmp.eq.s32.totalorder %s22, 0
    %p190 = por %p188, %p189
    %p191 = scmp.ne.s32.totalorder %s179, %s180
    %p192 = scmp.eq.s32.totalorder %s23, 1
    %p193 = por %p191, %p192
    %p195 = scmp.ne.s32.totalorder %s180, %s194
    %p196 = scmp.eq.s32.totalorder %s23, 0
    %p197 = por %p195, %p196
    %s199 = sadd.s32 %s198, 1
    %p202 = scmp.eq.s32.totalorder %s17, 1
    %p203 = scmp.ne.s32.totalorder %s198, %s200
    %p204 = scmp.eq.s32.totalorder %s17, 0
    %p205 = por %p203, %p204
    %p206 = scmp.ne.s32.totalorder %s198, %s200
    %p207 = scmp.eq.s32.totalorder %s22, 1
    %p208 = por %p206, %p207
    %p209 = scmp.ne.s32.totalorder %s200, %s201
    %p210 = scmp.eq.s32.totalorder %s22, 0
    %p211 = por %p209, %p210
    %p212 = scmp.ne.s32.totalorder %s200, %s201
    %p213 = scmp.eq.s32.totalorder %s23, 1
    %p214 = por %p212, %p213
    %p216 = scmp.ne.s32.totalorder %s201, %s215
    %p217 = scmp.eq.s32.totalorder %s23, 0
    %p218 = por %p216, %p217
    %s220 = sadd.s32 %s219, 1
    %p223 = scmp.eq.s32.totalorder %s17, 1
    %p224 = scmp.ne.s32.totalorder %s219, %s221
    %p225 = scmp.eq.s32.totalorder %s17, 0
    %p226 = por %p224, %p225
    %p227 = scmp.ne.s32.totalorder %s219, %s221
    %p228 = scmp.eq.s32.totalorder %s22, 1
    %p229 = por %p227, %p228
    %p230 = scmp.ne.s32.totalorder %s221, %s222
    %p231 = scmp.eq.s32.totalorder %s22, 0
    %p232 = por %p230, %p231
    %p233 = scmp.ne.s32.totalorder %s221, %s222
    %p234 = scmp.eq.s32.totalorder %s23, 1
    %p235 = por %p233, %p234
    %p237 = scmp.ne.s32.totalorder %s222, %s236
    %p238 = scmp.eq.s32.totalorder %s23, 0
    %p239 = por %p237, %p238
    %s241 = sadd.s32 %s240, 1
    %p244 = scmp.eq.s32.totalorder %s17, 1
    %p245 = scmp.ne.s32.totalorder %s240, %s242
    %p246 = scmp.eq.s32.totalorder %s17, 0
    %p247 = por %p245, %p246
    %p248 = scmp.ne.s32.totalorder %s240, %s242
    %p249 = scmp.eq.s32.totalorder %s22, 1
    %p250 = por %p248, %p249
    %p251 = scmp.ne.s32.totalorder %s242, %s243
    %p252 = scmp.eq.s32.totalorder %s22, 0
    %p253 = por %p251, %p252
    %p254 = scmp.ne.s32.totalorder %s242, %s243
    %p255 = scmp.eq.s32.totalorder %s23, 1
    %p256 = por %p254, %p255
    %p258 = scmp.ne.s32.totalorder %s243, %s257
    %p259 = scmp.eq.s32.totalorder %s23, 0
    %p260 = por %p258, %p259
    %s261 = ssub.s32 %s17, %s24
    %p262 = scmp.eq.s32.totalorder %s261, 0
    %s264 = sadd.s32 %s263, 1
    %s265 = scalar_select %p262, %s263, %s264
    %p268 = pneg %p262
    %p269 = scmp.eq.s32.totalorder %s17, 1
    %p270 = por %p268, %p269
    %p271 = scmp.ne.s32.totalorder %s263, %s266
    %p272 = scmp.eq.s32.totalorder %s17, 0
    %p273 = por %p271, %p272
    %p274 = scmp.ne.s32.totalorder %s263, %s266
    %p275 = scmp.eq.s32.totalorder %s22, 1
    %p276 = por %p274, %p275
    %p277 = scmp.ne.s32.totalorder %s266, %s267
    %p278 = scmp.eq.s32.totalorder %s22, 0
    %p279 = por %p277, %p278
    %p280 = scmp.ne.s32.totalorder %s266, %s267
    %p281 = scmp.eq.s32.totalorder %s23, 1
    %p282 = por %p280, %p281
    %p284 = scmp.ne.s32.totalorder %s267, %s283
    %p285 = scmp.eq.s32.totalorder %s23, 0
    %p286 = por %p284, %p285
    %p287 = scmp.le.s32.totalorder 1, %s17
    %p288 = scmp.lt.s32.totalorder %s17, 3
    %p289 = pnand %p287, %p288
    %p290 = pneg %p289
    // Predicated region
    $region9: #{_lambda_.6} parent=5 // pred_check
      _
    $region10: #{_lambda_.6} parent=5 // pred_check_branch
      %292 = sbr.rel (%p289) target = $region12
    $region11: #{_lambda_.6} parent=5 // pred_region
      %s293 = ssub.s32 %s17, 1
      // Predicated region
      $region13: #{_lambda_.6} parent=11 // pred_check
        %p294 = pneg %p64
      $region14: #{_lambda_.6} parent=11 // pred_check_branch
        %296 = sbr.rel (%p294) target = $region16
      $region15: #{_lambda_.6} parent=11 // pred_region
        _
      $region16: #{_lambda_.6} parent=11 // pred_fallthru
        _
      // Predicated region
      $region17: #{_lambda_.6} parent=11 // pred_check
        %p297 = pneg %p85
      $region18: #{_lambda_.6} parent=11 // pred_check_branch
        %299 = sbr.rel (%p297) target = $region20
      $region19: #{_lambda_.6} parent=11 // pred_region
        _
      $region20: #{_lambda_.6} parent=11 // pred_fallthru
        _
      // Predicated region
      $region21: #{_lambda_.6} parent=11 // pred_check
        %p300 = pneg %p106
      $region22: #{_lambda_.6} parent=11 // pred_check_branch
        %302 = sbr.rel (%p300) target = $region24
      $region23: #{_lambda_.6} parent=11 // pred_region
        _
      $region24: #{_lambda_.6} parent=11 // pred_fallthru
        _
      // Predicated region
      $region25: #{_lambda_.6} parent=11 // pred_check
        %p303 = pneg %p127
      $region26: #{_lambda_.6} parent=11 // pred_check_branch
        %305 = sbr.rel (%p303) target = $region28
      $region27: #{_lambda_.6} parent=11 // pred_region
        _
      $region28: #{_lambda_.6} parent=11 // pred_fallthru
        _
      // Predicated region
      $region29: #{_lambda_.6} parent=11 // pred_check
        %p306 = pneg %p148
      $region30: #{_lambda_.6} parent=11 // pred_check_branch
        %308 = sbr.rel (%p306) target = $region32
      $region31: #{_lambda_.6} parent=11 // pred_region
        _
      $region32: #{_lambda_.6} parent=11 // pred_fallthru
        _
      // Predicated region
      $region33: #{_lambda_.6} parent=11 // pred_check
        %p309 = pneg %p169
      $region34: #{_lambda_.6} parent=11 // pred_check_branch
        %311 = sbr.rel (%p309) target = $region36
      $region35: #{_lambda_.6} parent=11 // pred_region
        _
      $region36: #{_lambda_.6} parent=11 // pred_fallthru
        _
      // Predicated region
      $region37: #{_lambda_.6} parent=11 // pred_check
        %p312 = pneg %p190
      $region38: #{_lambda_.6} parent=11 // pred_check_branch
        %314 = sbr.rel (%p312) target = $region40
      $region39: #{_lambda_.6} parent=11 // pred_region
        _
      $region40: #{_lambda_.6} parent=11 // pred_fallthru
        _
      // Predicated region
      $region41: #{_lambda_.6} parent=11 // pred_check
        %p315 = pneg %p211
      $region42: #{_lambda_.6} parent=11 // pred_check_branch
        %317 = sbr.rel (%p315) target = $region44
      $region43: #{_lambda_.6} parent=11 // pred_region
        _
      $region44: #{_lambda_.6} parent=11 // pred_fallthru
        _
      // Predicated region
      $region45: #{_lambda_.6} parent=11 // pred_check
        %p318 = pneg %p232
      $region46: #{_lambda_.6} parent=11 // pred_check_branch
        %320 = sbr.rel (%p318) target = $region48
      $region47: #{_lambda_.6} parent=11 // pred_region
        _
      $region48: #{_lambda_.6} parent=11 // pred_fallthru
        _
      // Predicated region
      $region49: #{_lambda_.6} parent=11 // pred_check
        %p321 = pneg %p253
      $region50: #{_lambda_.6} parent=11 // pred_check_branch
        %323 = sbr.rel (%p321) target = $region52
      $region51: #{_lambda_.6} parent=11 // pred_region
        _
      $region52: #{_lambda_.6} parent=11 // pred_fallthru
        _
    $region12: #{_lambda_.6} parent=5 // pred_fallthru
      _
    %p324 = scmp.lt.s32.totalorder %s17, 2
    // Predicated region
    $region53: #{_lambda_.6} parent=5 // pred_check
      %p325 = pneg %p324
    $region54: #{_lambda_.6} parent=5 // pred_check_branch
      %327 = sbr.rel (%p325) target = $region56
    $region55: #{_lambda_.6} parent=5 // pred_region
      // Predicated region
      $region57: #{_lambda_.6} parent=55 // pred_check
        %p328 = pneg %p37
      $region58: #{_lambda_.6} parent=55 // pred_check_branch
        %330 = sbr.rel (%p328) target = $region60
      $region59: #{_lambda_.6} parent=55 // pred_region
        %p331 = scmp.lt.s32.totalorder %s17, 1
        %s332 = scalar_select %p331, %s17, 1
        %s333 = smul.addr %s332, 18
        %s334 = smul.addr %s333, 8
        %s335 = scalar_lea.vmem %s0, %s334
      $region60: #{_lambda_.6} parent=55 // pred_fallthru
        _
    $region56: #{_lambda_.6} parent=5 // pred_fallthru
      _
    %p336 = scmp.le.s32.totalorder 1, %s17
    %p337 = scmp.lt.s32.totalorder %s17, 3
    %p338 = pnand %p336, %p337
    %p339 = pneg %p338
    // Predicated region
    $region61: #{_lambda_.6} parent=5 // pred_check
      _
    $region62: #{_lambda_.6} parent=5 // pred_check_branch
      %341 = sbr.rel (%p338) target = $region64
    $region63: #{_lambda_.6} parent=5 // pred_region
      %s342 = ssub.s32 %s17, 1
      %p343 = scmp.lt.s32.totalorder %s22, 1
      %s344 = scalar_select %p343, %s22, 1
      %s345 = smul.addr %s344, 18
      %s346 = smul.addr %s345, 8
      %s347 = scalar_lea.vmem %s0, %s346
      %p348 = pneg %p43
      %p349 = pneg %p40
      %p350 = pneg %p64
      %p351 = pneg %p61
      %p352 = pneg %p85
      %p353 = pneg %p82
      %p354 = pneg %p106
      %p355 = pneg %p103
      %p356 = pneg %p127
      %p357 = pneg %p124
      %p358 = pneg %p148
      %p359 = pneg %p145
      %p360 = pneg %p169
      %p361 = pneg %p166
      %p362 = pneg %p190
      %p363 = pneg %p187
      %p364 = pneg %p211
      %p365 = pneg %p208
      %p366 = pneg %p232
      %p367 = pneg %p229
      %p368 = pneg %p253
      %p369 = pneg %p250
      %p370 = pneg %p279
      %p371 = pneg %p276
      %p372 = scmp.lt.s32.totalorder %s22, 1
      %s373 = scalar_select %p372, %s22, 1
      %s374 = smul.addr %s373, 2
      %s375 = smul.addr %s374, 8
      %s376 = scalar_lea.vmem %s11, %s375
      %p377 = scmp.lt.s32.totalorder %s22, 1
      %s378 = scalar_select %p377, %s22, 1
      %s379 = smul.addr %s378, 18
      %s380 = smul.addr %s379, 8
      %s381 = scalar_lea.vmem %s0, %s380
      %p382 = scmp.lt.s32.totalorder %s22, 1
      %s383 = scalar_select %p382, %s22, 1
      %s384 = smul.addr %s383, 2
      %s385 = smul.addr %s384, 8
      %s386 = scalar_lea.vmem %s11, %s385
      %v388 = vld [vmem:[%s1] sm:$0xff]
      %v389 = vld [vmem:[%s1 + $0x8] sm:$0x1]
      %v390 = vld [vmem:[%s381] sm:$0xff]
      %v391 = vld [vmem:[%s381 + $0x8] sm:$0xff]
      %v392 = vlaneseq
      %v393 = vshrl.u32 %v392, 7
      %v394 = vsub.s32 0, %v393
      %v395 = vrot.slane %v388, %v394
      %v396 = vmul.f32 %v390, %v395
      %v397 = vmul.f32 %v391, %v395
      %v398 = vadd.f32 %v396, 0.0
      %v399 = vadd.f32 %v397, 0.0
      %s400 = scalar_lea.vmem %s381, 16
      %v401 = vld [vmem:[%s400] sm:$0xff]
      %v402 = vld [vmem:[%s400 + $0x8] sm:$0xff]
      %v403 = vlaneseq
      %v404 = vshrl.u32 %v403, 7
      %v405 = vsub.s32 1, %v404
      %v406 = vrot.slane %v388, %v405
      %v407 = vmul.f32 %v401, %v406
      %v408 = vmul.f32 %v402, %v406
      %v409 = vadd.f32 %v398, %v407
      %v410 = vadd.f32 %v399, %v408
      %s411 = scalar_lea.vmem %s381, 32
      %v412 = vld [vmem:[%s411] sm:$0xff]
      %v413 = vld [vmem:[%s411 + $0x8] sm:$0xff]
      %v414 = vlaneseq
      %v415 = vshrl.u32 %v414, 7
      %v416 = vsub.s32 2, %v415
      %v417 = vrot.slane %v388, %v416
      %v418 = vmul.f32 %v412, %v417
      %v419 = vmul.f32 %v413, %v417
      %v420 = vadd.f32 %v409, %v418
      %v421 = vadd.f32 %v410, %v419
      %s422 = scalar_lea.vmem %s381, 48
      %v423 = vld [vmem:[%s422] sm:$0xff]
      %v424 = vld [vmem:[%s422 + $0x8] sm:$0xff]
      %v425 = vlaneseq
      %v426 = vshrl.u32 %v425, 7
      %v427 = vsub.s32 3, %v426
      %v428 = vrot.slane %v388, %v427
      %v429 = vmul.f32 %v423, %v428
      %v430 = vmul.f32 %v424, %v428
      %v431 = vadd.f32 %v420, %v429
      %v432 = vadd.f32 %v421, %v430
      %s433 = scalar_lea.vmem %s381, 64
      %v434 = vld [vmem:[%s433] sm:$0xff]
      %v435 = vld [vmem:[%s433 + $0x8] sm:$0xff]
      %v436 = vlaneseq
      %v437 = vshrl.u32 %v436, 7
      %v438 = vsub.s32 4, %v437
      %v439 = vrot.slane %v388, %v438
      %v440 = vmul.f32 %v434, %v439
      %v441 = vmul.f32 %v435, %v439
      %v442 = vadd.f32 %v431, %v440
      %v443 = vadd.f32 %v432, %v441
      %s444 = scalar_lea.vmem %s381, 80
      %v445 = vld [vmem:[%s444] sm:$0xff]
      %v446 = vld [vmem:[%s444 + $0x8] sm:$0xff]
      %v447 = vlaneseq
      %v448 = vshrl.u32 %v447, 7
      %v449 = vsub.s32 5, %v448
      %v450 = vrot.slane %v388, %v449
      %v451 = vmul.f32 %v445, %v450
      %v452 = vmul.f32 %v446, %v450
      %v453 = vadd.f32 %v442, %v451
      %v454 = vadd.f32 %v443, %v452
      %s455 = scalar_lea.vmem %s381, 96
      %v456 = vld [vmem:[%s455] sm:$0xff]
      %v457 = vld [vmem:[%s455 + $0x8] sm:$0xff]
      %v458 = vlaneseq
      %v459 = vshrl.u32 %v458, 7
      %v460 = vsub.s32 6, %v459
      %v461 = vrot.slane %v388, %v460
      %v462 = vmul.f32 %v456, %v461
      %v463 = vmul.f32 %v457, %v461
      %v464 = vadd.f32 %v453, %v462
      %v465 = vadd.f32 %v454, %v463
      %s466 = scalar_lea.vmem %s381, 112
      %v467 = vld [vmem:[%s466] sm:$0xff]
      %v468 = vld [vmem:[%s466 + $0x8] sm:$0xff]
      %v469 = vlaneseq
      %v470 = vshrl.u32 %v469, 7
      %v471 = vsub.s32 7, %v470
      %v472 = vrot.slane %v388, %v471
      %v473 = vmul.f32 %v467, %v472
      %v474 = vmul.f32 %v468, %v472
      %v475 = vadd.f32 %v464, %v473
      %v476 = vadd.f32 %v465, %v474
      %s477 = scalar_lea.vmem %s381, 128
      %v478 = vld [vmem:[%s477] sm:$0xff]
      %v479 = vld [vmem:[%s477 + $0x8] sm:$0xff]
      %v480 = vlaneseq
      %v481 = vshrl.u32 %v480, 7
      %v482 = vsub.s32 0, %v481
      %v483 = vrot.slane %v389, %v482
      %v484 = vmul.f32 %v478, %v483
      %v485 = vmul.f32 %v479, %v483
      %v486 = vadd.f32 %v475, %v484
      %v487 = vadd.f32 %v476, %v485
      %v488 = vld [vmem:[%s2] sm:$0x1]
      %v490 = vlaneseq
      %v491 = vshrl.u32 %v490, 7
      %v492 = vsub.s32 0, %v491
      %v493 = vrot.slane %v488, %v492
      %v495 = vmul.f32 %v486, %v493
      %v496 = vmul.f32 %v487, %v493
      %v497 = vld [vmem:[%s3] sm:$0x1]
      %v499 = vlaneseq
      %v500 = vshrl.u32 %v499, 7
      %v501 = vsub.s32 0, %v500
      %v502 = vrot.slane %v497, %v501
      %v504 = vadd.f32 %v495, %v502
      %v505 = vadd.f32 %v496, %v502
      %v506 = vxor.u32 %v504, 2147483648
      %v507 = vxor.u32 %v505, 2147483648
      %v508 = vmul.f32 %v506, 1.442695
      %v509 = vpow.pop %v508
      %v510 = vmul.f32 %v507, 1.442695
      %v511 = vpow.pop %v510
      %v512 = vadd.f32 %v509, 1.0
      %v513 = vadd.f32 %v511, 1.0
      %v514 = vrcp.pop %v512
      %v515 = vmul.f32 1.0, %v514
      %v516 = vrcp.pop %v513
      %v517 = vmul.f32 1.0, %v516
      %v518 = vmul.f32 %v504, %v515
      %v519 = vmul.f32 %v505, %v517
      %vm520 = vcmask 64512
      %v521 = vsel %vm520, %v518, 0.0
      %v522 = vsel %vm520, %v519, 0.0
      %v523 = vadd.f32 %v521, %v522
      %v524 = vrot.slane %v523, 4
      %v525 = vadd.f32 %v523, %v524
      %v526 = vrot.slane %v525, 2
      %v527 = vadd.f32 %v525, %v526
      %v528 = vrot.slane %v527, 1
      %v529 = vadd.f32 %v527, %v528
      %v530 = vrcp.pop 16.0
      %v531 = vmul.f32 %v529, %v530
      %v532 = vld [vmem:[%s4] sm:$0xff]
      %v533 = vld [vmem:[%s5] sm:$0x1]
      %v535 = vsel %vm520, %v531, 0
      %537 = vmatprep.subr.mxu0 0.0
      %538 = vmatpush1.msra.mxu0 %v532
      %539 = vmatprep.subr.mxu0 0.0
      %540 = vmatpush1.msra.mxu0 0.0
      %541 = vmatprep.subr.mxu0 0.0
      %542 = vmatpush1.msra.mxu0 0.0
      %543 = vmatprep.subr.mxu0 0.0
      %544 = vmatpush1.msra.mxu0 0.0
      %545 = vmatprep.subr.mxu0 0.0
      %546 = vmatpush1.msra.mxu0 0.0
      %547 = vmatprep.subr.mxu0 0.0
      %548 = vmatpush1.msra.mxu0 0.0
      %549 = vmatprep.subr.mxu0 0.0
      %550 = vmatpush1.msra.mxu0 0.0
      %551 = vmatprep.subr.mxu0 0.0
      %552 = vmatpush1.msra.mxu0 0.0
      %553 = vmatprep.subr.mxu0 0.0
      %554 = vmatpush1.msra.mxu0 0.0
      %555 = vmatprep.subr.mxu0 0.0
      %556 = vmatpush1.msra.mxu0 0.0
      %557 = vmatprep.subr.mxu0 0.0
      %558 = vmatpush1.msra.mxu0 0.0
      %559 = vmatprep.subr.mxu0 0.0
      %560 = vmatpush1.msra.mxu0 0.0
      %561 = vmatprep.subr.mxu0 0.0
      %562 = vmatpush1.msra.mxu0 0.0
      %563 = vmatprep.subr.mxu0 0.0
      %564 = vmatpush1.msra.mxu0 0.0
      %565 = vmatprep.subr.mxu0 0.0
      %566 = vmatpush1.msra.mxu0 0.0
      %567 = vmatprep.subr.mxu0 0.0
      %568 = vmatpush1.msra.mxu0 0.0
      %569 = vmatprep.subr.mxu0 0.0
      %570 = vmatpush1.msra.mxu0 0.0
      %571 = vmatprep.subr.mxu0 0.0
      %572 = vmatpush1.msra.mxu0 0.0
      %573 = vmatprep.subr.mxu0 0.0
      %574 = vmatpush1.msra.mxu0 0.0
      %575 = vmatprep.subr.mxu0 0.0
      %576 = vmatpush1.msra.mxu0 0.0
      %577 = vmatprep.subr.mxu0 0.0
      %578 = vmatpush1.msra.mxu0 0.0
      %579 = vmatprep.subr.mxu0 0.0
      %580 = vmatpush1.msra.mxu0 0.0
      %581 = vmatprep.subr.mxu0 0.0
      %582 = vmatpush1.msra.mxu0 0.0
      %583 = vmatprep.subr.mxu0 0.0
      %584 = vmatpush1.msra.mxu0 0.0
      %585 = vmatprep.subr.mxu0 0.0
      %586 = vmatpush1.msra.mxu0 0.0
      %587 = vmatprep.subr.mxu0 0.0
      %588 = vmatpush1.msra.mxu0 0.0
      %589 = vmatprep.subr.mxu0 0.0
      %590 = vmatpush1.msra.mxu0 0.0
      %591 = vmatprep.subr.mxu0 0.0
      %592 = vmatpush1.msra.mxu0 0.0
      %593 = vmatprep.subr.mxu0 0.0
      %594 = vmatpush1.msra.mxu0 0.0
      %595 = vmatprep.subr.mxu0 0.0
      %596 = vmatpush1.msra.mxu0 0.0
      %597 = vmatprep.subr.mxu0 0.0
      %598 = vmatpush1.msra.mxu0 0.0
      %599 = vmatprep.subr.mxu0 0.0
      %600 = vmatpush1.msra.mxu0 0.0
      %601 = vmatprep.mubr.f32.mxu0 0.0
      %602 = vmatmul.mubr.f32.gmra.mrb[0].mxu0 %v535
      %v603 = vpop.f32.mrb[0].mxu0
      %v604 = vadd.f32 %v533, %v603
      %v605 = vpop.f32.mrb[0].mxu0
      %606 = vdwg.mxu0
      %v607 = vxor.u32 %v604, 2147483648
      %v608 = vmul.f32 %v607, 1.442695
      %v609 = vpow.pop %v608
      %v610 = vadd.f32 %v609, 1.0
      %v611 = vrcp.pop %v610
      %v612 = vmul.f32 1.0, %v611
      %v613 = vmul.f32 %v604, %v612
      %v614 = vld [vmem:[%s6] sm:$0x3]
      %v615 = vld [vmem:[%s7] sm:$0x1]
      %vm616 = vcmask 15360
      %v618 = vsel %vm616, %v613, 0
      %vm620 = vcmask 1041408
      %v622 = vsel %vm620, %v614, 0
      %624 = vmatprep.subr.mxu0 0.0
      %625 = vmatpush1.msra.mxu0 %v622
      %626 = vmatprep.subr.mxu0 0.0
      %627 = vmatpush1.msra.mxu0 0.0
      %628 = vmatprep.subr.mxu0 0.0
      %629 = vmatpush1.msra.mxu0 0.0
      %630 = vmatprep.subr.mxu0 0.0
      %631 = vmatpush1.msra.mxu0 0.0
      %632 = vmatprep.subr.mxu0 0.0
      %633 = vmatpush1.msra.mxu0 0.0
      %634 = vmatprep.subr.mxu0 0.0
      %635 = vmatpush1.msra.mxu0 0.0
      %636 = vmatprep.subr.mxu0 0.0
      %637 = vmatpush1.msra.mxu0 0.0
      %638 = vmatprep.subr.mxu0 0.0
      %639 = vmatpush1.msra.mxu0 0.0
      %640 = vmatprep.subr.mxu0 0.0
      %641 = vmatpush1.msra.mxu0 0.0
      %642 = vmatprep.subr.mxu0 0.0
      %643 = vmatpush1.msra.mxu0 0.0
      %644 = vmatprep.subr.mxu0 0.0
      %645 = vmatpush1.msra.mxu0 0.0
      %646 = vmatprep.subr.mxu0 0.0
      %647 = vmatpush1.msra.mxu0 0.0
      %648 = vmatprep.subr.mxu0 0.0
      %649 = vmatpush1.msra.mxu0 0.0
      %650 = vmatprep.subr.mxu0 0.0
      %651 = vmatpush1.msra.mxu0 0.0
      %652 = vmatprep.subr.mxu0 0.0
      %653 = vmatpush1.msra.mxu0 0.0
      %654 = vmatprep.subr.mxu0 0.0
      %655 = vmatpush1.msra.mxu0 0.0
      %656 = vmatprep.subr.mxu0 0.0
      %657 = vmatpush1.msra.mxu0 0.0
      %658 = vmatprep.subr.mxu0 0.0
      %659 = vmatpush1.msra.mxu0 0.0
      %660 = vmatprep.subr.mxu0 0.0
      %661 = vmatpush1.msra.mxu0 0.0
      %662 = vmatprep.subr.mxu0 0.0
      %663 = vmatpush1.msra.mxu0 0.0
      %664 = vmatprep.subr.mxu0 0.0
      %665 = vmatpush1.msra.mxu0 0.0
      %666 = vmatprep.subr.mxu0 0.0
      %667 = vmatpush1.msra.mxu0 0.0
      %668 = vmatprep.subr.mxu0 0.0
      %669 = vmatpush1.msra.mxu0 0.0
      %670 = vmatprep.subr.mxu0 0.0
      %671 = vmatpush1.msra.mxu0 0.0
      %672 = vmatprep.subr.mxu0 0.0
      %673 = vmatpush1.msra.mxu0 0.0
      %674 = vmatprep.subr.mxu0 0.0
      %675 = vmatpush1.msra.mxu0 0.0
      %676 = vmatprep.subr.mxu0 0.0
      %677 = vmatpush1.msra.mxu0 0.0
      %678 = vmatprep.subr.mxu0 0.0
      %679 = vmatpush1.msra.mxu0 0.0
      %680 = vmatprep.subr.mxu0 0.0
      %681 = vmatpush1.msra.mxu0 0.0
      %682 = vmatprep.subr.mxu0 0.0
      %683 = vmatpush1.msra.mxu0 0.0
      %684 = vmatprep.subr.mxu0 0.0
      %685 = vmatpush1.msra.mxu0 0.0
      %686 = vmatprep.subr.mxu0 0.0
      %687 = vmatpush1.msra.mxu0 0.0
      %688 = vmatprep.mubr.f32.mxu0 0.0
      %689 = vmatmul.mubr.f32.gmra.mrb[0].mxu0 %v618
      %v690 = vpop.f32.mrb[0].mxu0
      %v691 = vadd.f32 %v615, %v690
      %v692 = vpop.f32.mrb[0].mxu0
      %693 = vdwg.mxu0
      %v694 = vxor.u32 %v691, 2147483648
      %v695 = vmul.f32 %v694, 1.442695
      %v696 = vpow.pop %v695
      %v697 = vadd.f32 %v696, 1.0
      %v698 = vrcp.pop %v697
      %v699 = vmul.f32 1.0, %v698
      %v700 = vlaneseq
      %v701 = vshrl.u32 %v700, 7
      %v702 = vsub.s32 0, %v701
      %v703 = vrot.slane %v699, %v702
      %v704 = vmul.f32 %v518, %v703
      %v705 = vmul.f32 %v519, %v703
      %v706 = vpack.c.bf16 %v705, %v704
      %v707 = vld [vmem:[%s8] sm:$0xf]
      %v709 = vsel %vm520, %v706, 0
      %vm711 = vcmask 1043456
      %v713 = vsel %vm711, %v707, 0
      %715 = vmatprep.subr.bf16.mxu0 0
      %716 = vmatpush1.bf16.msra.mxu0 %v713
      %717 = vmatprep.subr.bf16.mxu0 0
      %718 = vmatpush1.bf16.msra.mxu0 0
      %719 = vmatprep.subr.bf16.mxu0 0
      %720 = vmatpush1.bf16.msra.mxu0 0
      %721 = vmatprep.subr.bf16.mxu0 0
      %722 = vmatpush1.bf16.msra.mxu0 0
      %723 = vmatprep.subr.bf16.mxu0 0
      %724 = vmatpush1.bf16.msra.mxu0 0
      %725 = vmatprep.subr.bf16.mxu0 0
      %726 = vmatpush1.bf16.msra.mxu0 0
      %727 = vmatprep.subr.bf16.mxu0 0
      %728 = vmatpush1.bf16.msra.mxu0 0
      %729 = vmatprep.subr.bf16.mxu0 0
      %730 = vmatpush1.bf16.msra.mxu0 0
      %731 = vmatprep.subr.bf16.mxu0 0
      %732 = vmatpush1.bf16.msra.mxu0 0
      %733 = vmatprep.subr.bf16.mxu0 0
      %734 = vmatpush1.bf16.msra.mxu0 0
      %735 = vmatprep.subr.bf16.mxu0 0
      %736 = vmatpush1.bf16.msra.mxu0 0
      %737 = vmatprep.subr.bf16.mxu0 0
      %738 = vmatpush1.bf16.msra.mxu0 0
      %739 = vmatprep.subr.bf16.mxu0 0
      %740 = vmatpush1.bf16.msra.mxu0 0
      %741 = vmatprep.subr.bf16.mxu0 0
      %742 = vmatpush1.bf16.msra.mxu0 0
      %743 = vmatprep.subr.bf16.mxu0 0
      %744 = vmatpush1.bf16.msra.mxu0 0
      %745 = vmatprep.subr.bf16.mxu0 0
      %746 = vmatpush1.bf16.msra.mxu0 0
      %747 = vmatprep.mubr.bf16.mxu0 0
      %748 = vmatmul.mubr.bf16.gmra.mrb[0].mxu0 %v709
      %v749 = vpop.f32.mrb[0].mxu0
      %v750 = vadd.f32 0.0, %v749
      %v751 = vpop.f32.mrb[0].mxu0
      %v752 = vpop.f32.mrb[0].mxu0
      %v753 = vadd.f32 0.0, %v752
      %v754 = vpop.f32.mrb[0].mxu0
      %755 = vdwg.mxu0
      %v756 = vld [vmem:[%s9] sm:$0x1]
      %v758 = vlaneseq
      %v759 = vshrl.u32 %v758, 7
      %v760 = vsub.s32 0, %v759
      %v761 = vrot.slane %v756, %v760
      %v763 = vmul.f32 %v750, %v761
      %v764 = vmul.f32 %v753, %v761
      %v765 = vld [vmem:[%s10] sm:$0x1]
      %v767 = vlaneseq
      %v768 = vshrl.u32 %v767, 7
      %v769 = vsub.s32 0, %v768
      %v770 = vrot.slane %v765, %v769
      %v772 = vadd.f32 %v763, %v770
      %v773 = vadd.f32 %v764, %v770
      %774 = vst.msk [vmem:[%s386] sm:$0xff] %vm520, %v772
      %775 = vst.msk [vmem:[%s386 + $0x8] sm:$0xff] %vm520, %v773
      %p776 = scmp.lt.s32.totalorder %s22, 1
      %s777 = scalar_select %p776, %s22, 1
      %s778 = smul.addr %s777, 2
      %s779 = smul.addr %s778, 8
      %s780 = scalar_lea.vmem %s11, %s779
      // Predicated region
      $region65: #{_lambda_.6} parent=63 // pred_check
        %p781 = pneg %p276
      $region66: #{_lambda_.6} parent=63 // pred_check_branch
        %783 = sbr.rel (%p781) target = $region68
      $region67: #{_lambda_.6} parent=63 // pred_region
        _
      $region68: #{_lambda_.6} parent=63 // pred_fallthru
        _
    $region64: #{_lambda_.6} parent=5 // pred_fallthru
      _
    %p784 = scmp.le.s32.totalorder 2, %s17
    // Predicated region
    $region69: #{_lambda_.6} parent=5 // pred_check
      %p785 = pneg %p784
    $region70: #{_lambda_.6} parent=5 // pred_check_branch
      %787 = sbr.rel (%p785) target = $region72
    $region71: #{_lambda_.6} parent=5 // pred_region
      %s788 = ssub.s32 %s17, 2
      // Predicated region
      $region73: #{_lambda_.6} parent=71 // pred_check
        %p789 = pneg %p282
      $region74: #{_lambda_.6} parent=71 // pred_check_branch
        %791 = sbr.rel (%p789) target = $region76
      $region75: #{_lambda_.6} parent=71 // pred_region
        %p792 = scmp.lt.s32.totalorder %s23, 1
        %s793 = scalar_select %p792, %s23, 1
        %s794 = smul.addr %s793, 2
        %s795 = smul.addr %s794, 8
        %s796 = scalar_lea.vmem %s11, %s795
      $region76: #{_lambda_.6} parent=71 // pred_fallthru
        _
    $region72: #{_lambda_.6} parent=5 // pred_fallthru
      _
  $region6: #{_lambda_.6} parent=0 // loop_footer
    %s21 = sadd.s32 1, %s17
  $region7: #{_lambda_.6} parent=0 // loop_footer_branch
    %16 = sbr.rel target = $region3
  $region8: #{_lambda_.6} parent=0 // loop_exit
    _

// kernel: _lambda_.7
$region0: #{_lambda_.7}
  #allocation0 [shape = 'u32[]', space=smem, size = 0x4, offset = 0x4, fixed_abs, tag = 'smem constant byte address 0x4 - core index']
  #allocation1 [shape = 'u32[144,128]{1,0:T(1,128)}', space=vmem, size = 0x12000, scoped, tag = 'internal scratch']
  #allocation2 [shape = 'f32[6,6,48]{2,1,0:T(8,128)}', space=vmem, size = 0x6000, scoped, tag = 'scratch operand']
  #allocation3 [shape = 'f32[16,48]{1,0:T(8,128)}', space=vmem, size = 0x2000, scoped, tag = 'scratch operand']
  %s0 = inlined_call_operand.vmem [shape: f32[2,16,8], index: 0, kind: input, shape index: {}]
  %s1 = inlined_call_operand.vmem [shape: bf16[8,48], index: 1, kind: input, shape index: {}]
  %s2 = inlined_call_operand.vmem [shape: f32[1,48], index: 2, kind: input, shape index: {}]
  %s3 = inlined_call_operand.vmem [shape: f32[1,48], index: 3, kind: input, shape index: {}]
  %s4 = inlined_call_operand.vmem [shape: f32[9,48], index: 4, kind: input, shape index: {}]
  %s5 = inlined_call_operand.vmem [shape: f32[1,48], index: 5, kind: input, shape index: {}]
  %s6 = inlined_call_operand.vmem [shape: f32[1,48], index: 6, kind: input, shape index: {}]
  %s7 = inlined_call_operand.vmem [shape: f32[48,2], index: 7, kind: input, shape index: {}]
  %s8 = inlined_call_operand.vmem [shape: f32[1,2], index: 8, kind: input, shape index: {}]
  %s9 = inlined_call_operand.vmem [shape: f32[2,48], index: 9, kind: input, shape index: {}]
  %s10 = inlined_call_operand.vmem [shape: f32[1,48], index: 10, kind: input, shape index: {}]
  %s11 = inlined_call_operand.vmem [shape: bf16[48,8], index: 11, kind: input, shape index: {}]
  %s12 = inlined_call_operand.vmem [shape: f32[1,8], index: 12, kind: input, shape index: {}]
  %s13 = inlined_call_operand.vmem [shape: f32[1,8], index: 13, kind: input, shape index: {}]
  %s14 = inlined_call_operand.vmem [shape: f32[2,16,8], index: 14, kind: output, shape index: {}]
  %s15 = sld [smem:[#allocation0]]
  $region89: #{_lambda_.7} parent=0
    _
  %s17 = ssub.s32 1, %s15
  %s18 = scalar_select 0, %s17, %s15
  loop: start=0, step=1, limit=4
  $region2: #{_lambda_.7} parent=0 // loop_pre_header
    _
  $region3: #{_lambda_.7} parent=0 // loop_header
    %s20 = sphi 0, %s24
    %p21 = scmp.ge.s32.totalorder %s20, 4
    %s30 = sphi 0, %s32
    %s33 = sphi 0, %s30
    %s34 = sphi 0, %s33
    %s50 = sphi 0, %s34
    %s54 = sphi 0, %s54
    %s56 = sphi 0, %s54
    %s57 = sphi 0, %s56
    %s71 = sphi 0, %s57
    %s75 = sphi 0, %s75
    %s77 = sphi 0, %s75
    %s78 = sphi 0, %s77
    %s92 = sphi 0, %s78
    %s96 = sphi 0, %s96
    %s98 = sphi 0, %s96
    %s99 = sphi 0, %s98
    %s113 = sphi 0, %s99
    %s117 = sphi 0, %s117
    %s119 = sphi 0, %s117
    %s120 = sphi 0, %s119
    %s134 = sphi 0, %s120
    %s138 = sphi 0, %s138
    %s140 = sphi 0, %s138
    %s141 = sphi 0, %s140
    %s155 = sphi 0, %s141
    %s159 = sphi 0, %s159
    %s161 = sphi 0, %s159
    %s162 = sphi 0, %s161
    %s176 = sphi 0, %s162
    %s180 = sphi 0, %s180
    %s182 = sphi 0, %s180
    %s183 = sphi 0, %s182
    %s197 = sphi 0, %s183
    %s201 = sphi 0, %s201
    %s203 = sphi 0, %s201
    %s204 = sphi 0, %s203
    %s218 = sphi 0, %s204
    %s222 = sphi 0, %s222
    %s224 = sphi 0, %s222
    %s225 = sphi 0, %s224
    %s239 = sphi 0, %s225
    %s243 = sphi 0, %s243
    %s245 = sphi 0, %s243
    %s246 = sphi 0, %s245
    %s260 = sphi 0, %s246
    %s264 = sphi 0, %s264
    %s266 = sphi 0, %s264
    %s267 = sphi 0, %s266
    %s281 = sphi 0, %s267
    %s285 = sphi 0, %s285
    %s287 = sphi 0, %s285
    %s288 = sphi 0, %s287
    %s302 = sphi 0, %s288
    %s306 = sphi 0, %s306
    %s308 = sphi 0, %s306
    %s309 = sphi 0, %s308
    %s323 = sphi 0, %s309
    %s329 = sphi 0, %s331
    %s332 = sphi 0, %s329
    %s333 = sphi 0, %s332
    %s349 = sphi 0, %s333
  $region4: #{_lambda_.7} parent=0 // loop_header_branch
    %23 = sbr.rel (%p21) target = $region8
  $region5: #{_lambda_.7} parent=0 // loop_body
    %s25 = ssub.s32 %s20, 1
    %s26 = ssub.s32 %s20, 2
    %s27 = sadd.s32 %s20, 1
    %s28 = ssub.s32 %s20, %s27
    %p29 = scmp.eq.s32.totalorder %s28, 0
    %s31 = sadd.s32 %s30, 1
    %s32 = scalar_select %p29, %s30, %s31
    %p35 = pneg %p29
    %p36 = scmp.eq.s32.totalorder %s20, 1
    %p37 = por %p35, %p36
    %p38 = scmp.ne.s32.totalorder %s30, %s33
    %p39 = scmp.eq.s32.totalorder %s20, 0
    %p40 = por %p38, %p39
    %p41 = scmp.ne.s32.totalorder %s30, %s33
    %p42 = scmp.eq.s32.totalorder %s25, 1
    %p43 = por %p41, %p42
    %p44 = scmp.ne.s32.totalorder %s33, %s34
    %p45 = scmp.eq.s32.totalorder %s25, 0
    %p46 = por %p44, %p45
    %p47 = scmp.ne.s32.totalorder %s33, %s34
    %p48 = scmp.eq.s32.totalorder %s26, 1
    %p49 = por %p47, %p48
    %p51 = scmp.ne.s32.totalorder %s34, %s50
    %p52 = scmp.eq.s32.totalorder %s26, 0
    %p53 = por %p51, %p52
    %s55 = sadd.s32 %s54, 1
    %p58 = scmp.eq.s32.totalorder %s20, 1
    %p59 = scmp.ne.s32.totalorder %s54, %s56
    %p60 = scmp.eq.s32.totalorder %s20, 0
    %p61 = por %p59, %p60
    %p62 = scmp.ne.s32.totalorder %s54, %s56
    %p63 = scmp.eq.s32.totalorder %s25, 1
    %p64 = por %p62, %p63
    %p65 = scmp.ne.s32.totalorder %s56, %s57
    %p66 = scmp.eq.s32.totalorder %s25, 0
    %p67 = por %p65, %p66
    %p68 = scmp.ne.s32.totalorder %s56, %s57
    %p69 = scmp.eq.s32.totalorder %s26, 1
    %p70 = por %p68, %p69
    %p72 = scmp.ne.s32.totalorder %s57, %s71
    %p73 = scmp.eq.s32.totalorder %s26, 0
    %p74 = por %p72, %p73
    %s76 = sadd.s32 %s75, 1
    %p79 = scmp.eq.s32.totalorder %s20, 1
    %p80 = scmp.ne.s32.totalorder %s75, %s77
    %p81 = scmp.eq.s32.totalorder %s20, 0
    %p82 = por %p80, %p81
    %p83 = scmp.ne.s32.totalorder %s75, %s77
    %p84 = scmp.eq.s32.totalorder %s25, 1
    %p85 = por %p83, %p84
    %p86 = scmp.ne.s32.totalorder %s77, %s78
    %p87 = scmp.eq.s32.totalorder %s25, 0
    %p88 = por %p86, %p87
    %p89 = scmp.ne.s32.totalorder %s77, %s78
    %p90 = scmp.eq.s32.totalorder %s26, 1
    %p91 = por %p89, %p90
    %p93 = scmp.ne.s32.totalorder %s78, %s92
    %p94 = scmp.eq.s32.totalorder %s26, 0
    %p95 = por %p93, %p94
    %s97 = sadd.s32 %s96, 1
    %p100 = scmp.eq.s32.totalorder %s20, 1
    %p101 = scmp.ne.s32.totalorder %s96, %s98
    %p102 = scmp.eq.s32.totalorder %s20, 0
    %p103 = por %p101, %p102
    %p104 = scmp.ne.s32.totalorder %s96, %s98
    %p105 = scmp.eq.s32.totalorder %s25, 1
    %p106 = por %p104, %p105
    %p107 = scmp.ne.s32.totalorder %s98, %s99
    %p108 = scmp.eq.s32.totalorder %s25, 0
    %p109 = por %p107, %p108
    %p110 = scmp.ne.s32.totalorder %s98, %s99
    %p111 = scmp.eq.s32.totalorder %s26, 1
    %p112 = por %p110, %p111
    %p114 = scmp.ne.s32.totalorder %s99, %s113
    %p115 = scmp.eq.s32.totalorder %s26, 0
    %p116 = por %p114, %p115
    %s118 = sadd.s32 %s117, 1
    %p121 = scmp.eq.s32.totalorder %s20, 1
    %p122 = scmp.ne.s32.totalorder %s117, %s119
    %p123 = scmp.eq.s32.totalorder %s20, 0
    %p124 = por %p122, %p123
    %p125 = scmp.ne.s32.totalorder %s117, %s119
    %p126 = scmp.eq.s32.totalorder %s25, 1
    %p127 = por %p125, %p126
    %p128 = scmp.ne.s32.totalorder %s119, %s120
    %p129 = scmp.eq.s32.totalorder %s25, 0
    %p130 = por %p128, %p129
    %p131 = scmp.ne.s32.totalorder %s119, %s120
    %p132 = scmp.eq.s32.totalorder %s26, 1
    %p133 = por %p131, %p132
    %p135 = scmp.ne.s32.totalorder %s120, %s134
    %p136 = scmp.eq.s32.totalorder %s26, 0
    %p137 = por %p135, %p136
    %s139 = sadd.s32 %s138, 1
    %p142 = scmp.eq.s32.totalorder %s20, 1
    %p143 = scmp.ne.s32.totalorder %s138, %s140
    %p144 = scmp.eq.s32.totalorder %s20, 0
    %p145 = por %p143, %p144
    %p146 = scmp.ne.s32.totalorder %s138, %s140
    %p147 = scmp.eq.s32.totalorder %s25, 1
    %p148 = por %p146, %p147
    %p149 = scmp.ne.s32.totalorder %s140, %s141
    %p150 = scmp.eq.s32.totalorder %s25, 0
    %p151 = por %p149, %p150
    %p152 = scmp.ne.s32.totalorder %s140, %s141
    %p153 = scmp.eq.s32.totalorder %s26, 1
    %p154 = por %p152, %p153
    %p156 = scmp.ne.s32.totalorder %s141, %s155
    %p157 = scmp.eq.s32.totalorder %s26, 0
    %p158 = por %p156, %p157
    %s160 = sadd.s32 %s159, 1
    %p163 = scmp.eq.s32.totalorder %s20, 1
    %p164 = scmp.ne.s32.totalorder %s159, %s161
    %p165 = scmp.eq.s32.totalorder %s20, 0
    %p166 = por %p164, %p165
    %p167 = scmp.ne.s32.totalorder %s159, %s161
    %p168 = scmp.eq.s32.totalorder %s25, 1
    %p169 = por %p167, %p168
    %p170 = scmp.ne.s32.totalorder %s161, %s162
    %p171 = scmp.eq.s32.totalorder %s25, 0
    %p172 = por %p170, %p171
    %p173 = scmp.ne.s32.totalorder %s161, %s162
    %p174 = scmp.eq.s32.totalorder %s26, 1
    %p175 = por %p173, %p174
    %p177 = scmp.ne.s32.totalorder %s162, %s176
    %p178 = scmp.eq.s32.totalorder %s26, 0
    %p179 = por %p177, %p178
    %s181 = sadd.s32 %s180, 1
    %p184 = scmp.eq.s32.totalorder %s20, 1
    %p185 = scmp.ne.s32.totalorder %s180, %s182
    %p186 = scmp.eq.s32.totalorder %s20, 0
    %p187 = por %p185, %p186
    %p188 = scmp.ne.s32.totalorder %s180, %s182
    %p189 = scmp.eq.s32.totalorder %s25, 1
    %p190 = por %p188, %p189
    %p191 = scmp.ne.s32.totalorder %s182, %s183
    %p192 = scmp.eq.s32.totalorder %s25, 0
    %p193 = por %p191, %p192
    %p194 = scmp.ne.s32.totalorder %s182, %s183
    %p195 = scmp.eq.s32.totalorder %s26, 1
    %p196 = por %p194, %p195
    %p198 = scmp.ne.s32.totalorder %s183, %s197
    %p199 = scmp.eq.s32.totalorder %s26, 0
    %p200 = por %p198, %p199
    %s202 = sadd.s32 %s201, 1
    %p205 = scmp.eq.s32.totalorder %s20, 1
    %p206 = scmp.ne.s32.totalorder %s201, %s203
    %p207 = scmp.eq.s32.totalorder %s20, 0
    %p208 = por %p206, %p207
    %p209 = scmp.ne.s32.totalorder %s201, %s203
    %p210 = scmp.eq.s32.totalorder %s25, 1
    %p211 = por %p209, %p210
    %p212 = scmp.ne.s32.totalorder %s203, %s204
    %p213 = scmp.eq.s32.totalorder %s25, 0
    %p214 = por %p212, %p213
    %p215 = scmp.ne.s32.totalorder %s203, %s204
    %p216 = scmp.eq.s32.totalorder %s26, 1
    %p217 = por %p215, %p216
    %p219 = scmp.ne.s32.totalorder %s204, %s218
    %p220 = scmp.eq.s32.totalorder %s26, 0
    %p221 = por %p219, %p220
    %s223 = sadd.s32 %s222, 1
    %p226 = scmp.eq.s32.totalorder %s20, 1
    %p227 = scmp.ne.s32.totalorder %s222, %s224
    %p228 = scmp.eq.s32.totalorder %s20, 0
    %p229 = por %p227, %p228
    %p230 = scmp.ne.s32.totalorder %s222, %s224
    %p231 = scmp.eq.s32.totalorder %s25, 1
    %p232 = por %p230, %p231
    %p233 = scmp.ne.s32.totalorder %s224, %s225
    %p234 = scmp.eq.s32.totalorder %s25, 0
    %p235 = por %p233, %p234
    %p236 = scmp.ne.s32.totalorder %s224, %s225
    %p237 = scmp.eq.s32.totalorder %s26, 1
    %p238 = por %p236, %p237
    %p240 = scmp.ne.s32.totalorder %s225, %s239
    %p241 = scmp.eq.s32.totalorder %s26, 0
    %p242 = por %p240, %p241
    %s244 = sadd.s32 %s243, 1
    %p247 = scmp.eq.s32.totalorder %s20, 1
    %p248 = scmp.ne.s32.totalorder %s243, %s245
    %p249 = scmp.eq.s32.totalorder %s20, 0
    %p250 = por %p248, %p249
    %p251 = scmp.ne.s32.totalorder %s243, %s245
    %p252 = scmp.eq.s32.totalorder %s25, 1
    %p253 = por %p251, %p252
    %p254 = scmp.ne.s32.totalorder %s245, %s246
    %p255 = scmp.eq.s32.totalorder %s25, 0
    %p256 = por %p254, %p255
    %p257 = scmp.ne.s32.totalorder %s245, %s246
    %p258 = scmp.eq.s32.totalorder %s26, 1
    %p259 = por %p257, %p258
    %p261 = scmp.ne.s32.totalorder %s246, %s260
    %p262 = scmp.eq.s32.totalorder %s26, 0
    %p263 = por %p261, %p262
    %s265 = sadd.s32 %s264, 1
    %p268 = scmp.eq.s32.totalorder %s20, 1
    %p269 = scmp.ne.s32.totalorder %s264, %s266
    %p270 = scmp.eq.s32.totalorder %s20, 0
    %p271 = por %p269, %p270
    %p272 = scmp.ne.s32.totalorder %s264, %s266
    %p273 = scmp.eq.s32.totalorder %s25, 1
    %p274 = por %p272, %p273
    %p275 = scmp.ne.s32.totalorder %s266, %s267
    %p276 = scmp.eq.s32.totalorder %s25, 0
    %p277 = por %p275, %p276
    %p278 = scmp.ne.s32.totalorder %s266, %s267
    %p279 = scmp.eq.s32.totalorder %s26, 1
    %p280 = por %p278, %p279
    %p282 = scmp.ne.s32.totalorder %s267, %s281
    %p283 = scmp.eq.s32.totalorder %s26, 0
    %p284 = por %p282, %p283
    %s286 = sadd.s32 %s285, 1
    %p289 = scmp.eq.s32.totalorder %s20, 1
    %p290 = scmp.ne.s32.totalorder %s285, %s287
    %p291 = scmp.eq.s32.totalorder %s20, 0
    %p292 = por %p290, %p291
    %p293 = scmp.ne.s32.totalorder %s285, %s287
    %p294 = scmp.eq.s32.totalorder %s25, 1
    %p295 = por %p293, %p294
    %p296 = scmp.ne.s32.totalorder %s287, %s288
    %p297 = scmp.eq.s32.totalorder %s25, 0
    %p298 = por %p296, %p297
    %p299 = scmp.ne.s32.totalorder %s287, %s288
    %p300 = scmp.eq.s32.totalorder %s26, 1
    %p301 = por %p299, %p300
    %p303 = scmp.ne.s32.totalorder %s288, %s302
    %p304 = scmp.eq.s32.totalorder %s26, 0
    %p305 = por %p303, %p304
    %s307 = sadd.s32 %s306, 1
    %p310 = scmp.eq.s32.totalorder %s20, 1
    %p311 = scmp.ne.s32.totalorder %s306, %s308
    %p312 = scmp.eq.s32.totalorder %s20, 0
    %p313 = por %p311, %p312
    %p314 = scmp.ne.s32.totalorder %s306, %s308
    %p315 = scmp.eq.s32.totalorder %s25, 1
    %p316 = por %p314, %p315
    %p317 = scmp.ne.s32.totalorder %s308, %s309
    %p318 = scmp.eq.s32.totalorder %s25, 0
    %p319 = por %p317, %p318
    %p320 = scmp.ne.s32.totalorder %s308, %s309
    %p321 = scmp.eq.s32.totalorder %s26, 1
    %p322 = por %p320, %p321
    %p324 = scmp.ne.s32.totalorder %s309, %s323
    %p325 = scmp.eq.s32.totalorder %s26, 0
    %p326 = por %p324, %p325
    %s327 = ssub.s32 %s20, %s27
    %p328 = scmp.eq.s32.totalorder %s327, 0
    %s330 = sadd.s32 %s329, 1
    %s331 = scalar_select %p328, %s329, %s330
    %p334 = pneg %p328
    %p335 = scmp.eq.s32.totalorder %s20, 1
    %p336 = por %p334, %p335
    %p337 = scmp.ne.s32.totalorder %s329, %s332
    %p338 = scmp.eq.s32.totalorder %s20, 0
    %p339 = por %p337, %p338
    %p340 = scmp.ne.s32.totalorder %s329, %s332
    %p341 = scmp.eq.s32.totalorder %s25, 1
    %p342 = por %p340, %p341
    %p343 = scmp.ne.s32.totalorder %s332, %s333
    %p344 = scmp.eq.s32.totalorder %s25, 0
    %p345 = por %p343, %p344
    %p346 = scmp.ne.s32.totalorder %s332, %s333
    %p347 = scmp.eq.s32.totalorder %s26, 1
    %p348 = por %p346, %p347
    %p350 = scmp.ne.s32.totalorder %s333, %s349
    %p351 = scmp.eq.s32.totalorder %s26, 0
    %p352 = por %p350, %p351
    %p353 = scmp.le.s32.totalorder 1, %s20
    %p354 = scmp.lt.s32.totalorder %s20, 3
    %p355 = pnand %p353, %p354
    %p356 = pneg %p355
    // Predicated region
    $region9: #{_lambda_.7} parent=5 // pred_check
      _
    $region10: #{_lambda_.7} parent=5 // pred_check_branch
      %358 = sbr.rel (%p355) target = $region12
    $region11: #{_lambda_.7} parent=5 // pred_region
      %s359 = ssub.s32 %s20, 1
      // Predicated region
      $region13: #{_lambda_.7} parent=11 // pred_check
        %p360 = pneg %p67
      $region14: #{_lambda_.7} parent=11 // pred_check_branch
        %362 = sbr.rel (%p360) target = $region16
      $region15: #{_lambda_.7} parent=11 // pred_region
        _
      $region16: #{_lambda_.7} parent=11 // pred_fallthru
        _
      // Predicated region
      $region17: #{_lambda_.7} parent=11 // pred_check
        %p363 = pneg %p88
      $region18: #{_lambda_.7} parent=11 // pred_check_branch
        %365 = sbr.rel (%p363) target = $region20
      $region19: #{_lambda_.7} parent=11 // pred_region
        _
      $region20: #{_lambda_.7} parent=11 // pred_fallthru
        _
      // Predicated region
      $region21: #{_lambda_.7} parent=11 // pred_check
        %p366 = pneg %p109
      $region22: #{_lambda_.7} parent=11 // pred_check_branch
        %368 = sbr.rel (%p366) target = $region24
      $region23: #{_lambda_.7} parent=11 // pred_region
        _
      $region24: #{_lambda_.7} parent=11 // pred_fallthru
        _
      // Predicated region
      $region25: #{_lambda_.7} parent=11 // pred_check
        %p369 = pneg %p130
      $region26: #{_lambda_.7} parent=11 // pred_check_branch
        %371 = sbr.rel (%p369) target = $region28
      $region27: #{_lambda_.7} parent=11 // pred_region
        _
      $region28: #{_lambda_.7} parent=11 // pred_fallthru
        _
      // Predicated region
      $region29: #{_lambda_.7} parent=11 // pred_check
        %p372 = pneg %p151
      $region30: #{_lambda_.7} parent=11 // pred_check_branch
        %374 = sbr.rel (%p372) target = $region32
      $region31: #{_lambda_.7} parent=11 // pred_region
        _
      $region32: #{_lambda_.7} parent=11 // pred_fallthru
        _
      // Predicated region
      $region33: #{_lambda_.7} parent=11 // pred_check
        %p375 = pneg %p172
      $region34: #{_lambda_.7} parent=11 // pred_check_branch
        %377 = sbr.rel (%p375) target = $region36
      $region35: #{_lambda_.7} parent=11 // pred_region
        _
      $region36: #{_lambda_.7} parent=11 // pred_fallthru
        _
      // Predicated region
      $region37: #{_lambda_.7} parent=11 // pred_check
        %p378 = pneg %p193
      $region38: #{_lambda_.7} parent=11 // pred_check_branch
        %380 = sbr.rel (%p378) target = $region40
      $region39: #{_lambda_.7} parent=11 // pred_region
        _
      $region40: #{_lambda_.7} parent=11 // pred_fallthru
        _
      // Predicated region
      $region41: #{_lambda_.7} parent=11 // pred_check
        %p381 = pneg %p214
      $region42: #{_lambda_.7} parent=11 // pred_check_branch
        %383 = sbr.rel (%p381) target = $region44
      $region43: #{_lambda_.7} parent=11 // pred_region
        _
      $region44: #{_lambda_.7} parent=11 // pred_fallthru
        _
      // Predicated region
      $region45: #{_lambda_.7} parent=11 // pred_check
        %p384 = pneg %p235
      $region46: #{_lambda_.7} parent=11 // pred_check_branch
        %386 = sbr.rel (%p384) target = $region48
      $region47: #{_lambda_.7} parent=11 // pred_region
        _
      $region48: #{_lambda_.7} parent=11 // pred_fallthru
        _
      // Predicated region
      $region49: #{_lambda_.7} parent=11 // pred_check
        %p387 = pneg %p256
      $region50: #{_lambda_.7} parent=11 // pred_check_branch
        %389 = sbr.rel (%p387) target = $region52
      $region51: #{_lambda_.7} parent=11 // pred_region
        _
      $region52: #{_lambda_.7} parent=11 // pred_fallthru
        _
      // Predicated region
      $region53: #{_lambda_.7} parent=11 // pred_check
        %p390 = pneg %p277
      $region54: #{_lambda_.7} parent=11 // pred_check_branch
        %392 = sbr.rel (%p390) target = $region56
      $region55: #{_lambda_.7} parent=11 // pred_region
        _
      $region56: #{_lambda_.7} parent=11 // pred_fallthru
        _
      // Predicated region
      $region57: #{_lambda_.7} parent=11 // pred_check
        %p393 = pneg %p298
      $region58: #{_lambda_.7} parent=11 // pred_check_branch
        %395 = sbr.rel (%p393) target = $region60
      $region59: #{_lambda_.7} parent=11 // pred_region
        _
      $region60: #{_lambda_.7} parent=11 // pred_fallthru
        _
      // Predicated region
      $region61: #{_lambda_.7} parent=11 // pred_check
        %p396 = pneg %p319
      $region62: #{_lambda_.7} parent=11 // pred_check_branch
        %398 = sbr.rel (%p396) target = $region64
      $region63: #{_lambda_.7} parent=11 // pred_region
        _
      $region64: #{_lambda_.7} parent=11 // pred_fallthru
        _
    $region12: #{_lambda_.7} parent=5 // pred_fallthru
      _
    %p399 = scmp.lt.s32.totalorder %s20, 2
    // Predicated region
    $region65: #{_lambda_.7} parent=5 // pred_check
      %p400 = pneg %p399
    $region66: #{_lambda_.7} parent=5 // pred_check_branch
      %402 = sbr.rel (%p400) target = $region68
    $region67: #{_lambda_.7} parent=5 // pred_region
      // Predicated region
      $region69: #{_lambda_.7} parent=67 // pred_check
        %p403 = pneg %p40
      $region70: #{_lambda_.7} parent=67 // pred_check_branch
        %405 = sbr.rel (%p403) target = $region72
      $region71: #{_lambda_.7} parent=67 // pred_region
        %p406 = scmp.lt.s32.totalorder %s20, 1
        %s407 = scalar_select %p406, %s20, 1
        %s408 = smul.addr %s407, 2
        %s409 = smul.addr %s408, 8
        %s410 = scalar_lea.vmem %s0, %s409
      $region72: #{_lambda_.7} parent=67 // pred_fallthru
        _
    $region68: #{_lambda_.7} parent=5 // pred_fallthru
      _
    %p411 = scmp.le.s32.totalorder 1, %s20
    %p412 = scmp.lt.s32.totalorder %s20, 3
    %p413 = pnand %p411, %p412
    %p414 = pneg %p413
    // Predicated region
    $region73: #{_lambda_.7} parent=5 // pred_check
      _
    $region74: #{_lambda_.7} parent=5 // pred_check_branch
      %416 = sbr.rel (%p413) target = $region76
    $region75: #{_lambda_.7} parent=5 // pred_region
      %s417 = ssub.s32 %s20, 1
      %p418 = scmp.lt.s32.totalorder %s25, 1
      %s419 = scalar_select %p418, %s25, 1
      %s420 = smul.addr %s419, 2
      %s421 = smul.addr %s420, 8
      %s422 = scalar_lea.vmem %s0, %s421
      %p423 = pneg %p46
      %p424 = pneg %p43
      %p425 = pneg %p67
      %p426 = pneg %p64
      %p427 = pneg %p88
      %p428 = pneg %p85
      %p429 = pneg %p109
      %p430 = pneg %p106
      %p431 = pneg %p130
      %p432 = pneg %p127
      %p433 = pneg %p151
      %p434 = pneg %p148
      %p435 = pneg %p172
      %p436 = pneg %p169
      %p437 = pneg %p193
      %p438 = pneg %p190
      %p439 = pneg %p214
      %p440 = pneg %p211
      %p441 = pneg %p235
      %p442 = pneg %p232
      %p443 = pneg %p256
      %p444 = pneg %p253
      %p445 = pneg %p277
      %p446 = pneg %p274
      %p447 = pneg %p298
      %p448 = pneg %p295
      %p449 = pneg %p319
      %p450 = pneg %p316
      %p451 = pneg %p345
      %p452 = pneg %p342
      %p453 = scmp.lt.s32.totalorder %s25, 1
      %s454 = scalar_select %p453, %s25, 1
      %s455 = smul.addr %s454, 2
      %s456 = smul.addr %s455, 8
      %s457 = scalar_lea.vmem %s14, %s456
      %p458 = scmp.lt.s32.totalorder %s25, 1
      %s459 = scalar_select %p458, %s25, 1
      %s460 = smul.addr %s459, 2
      %s461 = smul.addr %s460, 8
      %s462 = scalar_lea.vmem %s0, %s461
      %p463 = scmp.lt.s32.totalorder %s25, 1
      %s464 = scalar_select %p463, %s25, 1
      %s465 = smul.addr %s464, 2
      %s466 = smul.addr %s465, 8
      %s467 = scalar_lea.vmem %s14, %s466
      %v469 = vld [vmem:[%s462] sm:$0xff]
      %v470 = vld [vmem:[%s462 + $0x8] sm:$0xff]
      %v471 = vpack.c.bf16 %v470, %v469
      %v472 = vld [vmem:[%s1] sm:$0xf]
      %vm473 = vcmask 64512
      %v475 = vsel %vm473, %v471, 0
      %vm477 = vcmask 1043456
      %v479 = vsel %vm477, %v472, 0
      %481 = vmatprep.subr.bf16.mxu0 0
      %482 = vmatpush1.bf16.msra.mxu0 %v479
      %483 = vmatprep.subr.bf16.mxu0 0
      %484 = vmatpush1.bf16.msra.mxu0 0
      %485 = vmatprep.subr.bf16.mxu0 0
      %486 = vmatpush1.bf16.msra.mxu0 0
      %487 = vmatprep.subr.bf16.mxu0 0
      %488 = vmatpush1.bf16.msra.mxu0 0
      %489 = vmatprep.subr.bf16.mxu0 0
      %490 = vmatpush1.bf16.msra.mxu0 0
      %491 = vmatprep.subr.bf16.mxu0 0
      %492 = vmatpush1.bf16.msra.mxu0 0
      %493 = vmatprep.subr.bf16.mxu0 0
      %494 = vmatpush1.bf16.msra.mxu0 0
      %495 = vmatprep.subr.bf16.mxu0 0
      %496 = vmatpush1.bf16.msra.mxu0 0
      %497 = vmatprep.subr.bf16.mxu0 0
      %498 = vmatpush1.bf16.msra.mxu0 0
      %499 = vmatprep.subr.bf16.mxu0 0
      %500 = vmatpush1.bf16.msra.mxu0 0
      %501 = vmatprep.subr.bf16.mxu0 0
      %502 = vmatpush1.bf16.msra.mxu0 0
      %503 = vmatprep.subr.bf16.mxu0 0
      %504 = vmatpush1.bf16.msra.mxu0 0
      %505 = vmatprep.subr.bf16.mxu0 0
      %506 = vmatpush1.bf16.msra.mxu0 0
      %507 = vmatprep.subr.bf16.mxu0 0
      %508 = vmatpush1.bf16.msra.mxu0 0
      %509 = vmatprep.subr.bf16.mxu0 0
      %510 = vmatpush1.bf16.msra.mxu0 0
      %511 = vmatprep.subr.bf16.mxu0 0
      %512 = vmatpush1.bf16.msra.mxu0 0
      %513 = vmatprep.mubr.bf16.mxu0 0
      %514 = vmatmul.mubr.bf16.gmra.mrb[0].mxu0 %v475
      %v515 = vpop.f32.mrb[0].mxu0
      %v516 = vadd.f32 0.0, %v515
      %v517 = vpop.f32.mrb[0].mxu0
      %v518 = vpop.f32.mrb[0].mxu0
      %v519 = vadd.f32 0.0, %v518
      %v520 = vpop.f32.mrb[0].mxu0
      %521 = vdwg.mxu0
      %v522 = vld [vmem:[%s2] sm:$0x1]
      %v524 = vlaneseq
      %v525 = vshrl.u32 %v524, 7
      %v526 = vsub.s32 0, %v525
      %v527 = vrot.slane %v522, %v526
      %v529 = vmul.f32 %v516, %v527
      %v530 = vmul.f32 %v519, %v527
      %v531 = vld [vmem:[%s3] sm:$0x1]
      %v533 = vlaneseq
      %v534 = vshrl.u32 %v533, 7
      %v535 = vsub.s32 0, %v534
      %v536 = vrot.slane %v531, %v535
      %v538 = vadd.f32 %v529, %v536
      %v539 = vadd.f32 %v530, %v536
      %v540 = vxor.u32 %v538, 2147483648
      %v541 = vxor.u32 %v539, 2147483648
      %v542 = vmul.f32 %v540, 1.442695
      %v543 = vpow.pop %v542
      %v544 = vmul.f32 %v541, 1.442695
      %v545 = vpow.pop %v544
      %v546 = vadd.f32 %v543, 1.0
      %v547 = vadd.f32 %v545, 1.0
      %v548 = vrcp.pop %v546
      %v549 = vmul.f32 1.0, %v548
      %v550 = vrcp.pop %v547
      %v551 = vmul.f32 1.0, %v550
      %v552 = vmul.f32 %v538, %v549
      %v553 = vmul.f32 %v539, %v551
      %vm554 = vcmask 390144
      %555 = vst.msk [vmem:[#allocation2] sm:$0x3f] %vm554, 0.0
      %556 = vst.msk [vmem:[#allocation2 + $0x8] sm:$0x3f] %vm554, 0.0
      %557 = vst.msk [vmem:[#allocation2 + $0x10] sm:$0x3f] %vm554, 0.0
      %558 = vst.msk [vmem:[#allocation2 + $0x18] sm:$0x3f] %vm554, 0.0
      %559 = vst.msk [vmem:[#allocation2 + $0x20] sm:$0x3f] %vm554, 0.0
      %560 = vst.msk [vmem:[#allocation2 + $0x28] sm:$0x3f] %vm554, 0.0
      %s561 = scalar_lea.vmem [#allocation2], 8
      %vm562 = vcmask 388096
      %563 = vst.msk [vmem:[%s561 + $0x1] sm:$0xf] %vm562, %v552
      %s564 = scalar_lea.vmem [#allocation2], 16
      %vm565 = vcmask 392196
      %566 = vst.msk [vmem:[%s564 - $0x3] sm:$0xf0] %vm565, %v552
      %s567 = scalar_lea.vmem [#allocation2], 24
      %568 = vst.msk [vmem:[%s567 + $0x1] sm:$0xf] %vm562, %v553
      %s569 = scalar_lea.vmem [#allocation2], 32
      %570 = vst.msk [vmem:[%s569 - $0x3] sm:$0xf0] %vm565, %v553
      %v571 = vld [vmem:[%s4] sm:$0xff]
      %v572 = vld [vmem:[%s4 + $0x8] sm:$0x1]
      %v573 = vld [vmem:[#allocation2] sm:$0xf]
      %v574 = vlaneseq
      %v575 = vshrl.u32 %v574, 7
      %v576 = vsub.s32 0, %v575
      %v577 = vrot.slane %v571, %v576
      %v578 = vmul.f32 %v573, %v577
      %v579 = vadd.f32 %v578, 0.0
      %v580 = vld [vmem:[#allocation2 + $0x1] sm:$0xf]
      %v581 = vlaneseq
      %v582 = vshrl.u32 %v581, 7
      %v583 = vsub.s32 1, %v582
      %v584 = vrot.slane %v571, %v583
      %v585 = vmul.f32 %v580, %v584
      %v586 = vadd.f32 %v579, %v585
      %v587 = vld [vmem:[#allocation2 + $0x2] sm:$0xf]
      %v588 = vlaneseq
      %v589 = vshrl.u32 %v588, 7
      %v590 = vsub.s32 2, %v589
      %v591 = vrot.slane %v571, %v590
      %v592 = vmul.f32 %v587, %v591
      %v593 = vadd.f32 %v586, %v592
      %v594 = vld [vmem:[%s561] sm:$0xf]
      %v595 = vlaneseq
      %v596 = vshrl.u32 %v595, 7
      %v597 = vsub.s32 3, %v596
      %v598 = vrot.slane %v571, %v597
      %v599 = vmul.f32 %v594, %v598
      %v600 = vadd.f32 %v593, %v599
      %v601 = vld [vmem:[%s561 + $0x1] sm:$0xf]
      %v602 = vlaneseq
      %v603 = vshrl.u32 %v602, 7
      %v604 = vsub.s32 4, %v603
      %v605 = vrot.slane %v571, %v604
      %v606 = vmul.f32 %v601, %v605
      %v607 = vadd.f32 %v600, %v606
      %v608 = vld [vmem:[%s561 + $0x2] sm:$0xf]
      %v609 = vlaneseq
      %v610 = vshrl.u32 %v609, 7
      %v611 = vsub.s32 5, %v610
      %v612 = vrot.slane %v571, %v611
      %v613 = vmul.f32 %v608, %v612
      %v614 = vadd.f32 %v607, %v613
      %v615 = vld [vmem:[%s564] sm:$0xf]
      %v616 = vlaneseq
      %v617 = vshrl.u32 %v616, 7
      %v618 = vsub.s32 6, %v617
      %v619 = vrot.slane %v571, %v618
      %v620 = vmul.f32 %v615, %v619
      %v621 = vadd.f32 %v614, %v620
      %v622 = vld [vmem:[%s564 + $0x1] sm:$0xf]
      %v623 = vlaneseq
      %v624 = vshrl.u32 %v623, 7
      %v625 = vsub.s32 7, %v624
      %v626 = vrot.slane %v571, %v625
      %v627 = vmul.f32 %v622, %v626
      %v628 = vadd.f32 %v621, %v627
      %v629 = vld [vmem:[%s564 + $0x2] sm:$0xf]
      %v630 = vlaneseq
      %v631 = vshrl.u32 %v630, 7
      %v632 = vsub.s32 0, %v631
      %v633 = vrot.slane %v572, %v632
      %v634 = vmul.f32 %v629, %v633
      %v635 = vadd.f32 %v628, %v634
      %636 = vst.msk [vmem:[#allocation3] sm:$0xf] %vm562, %v635
      %v637 = vld [vmem:[%s561] sm:$0xf]
      %v638 = vmul.f32 %v637, %v577
      %v639 = vadd.f32 %v638, 0.0
      %v640 = vld [vmem:[%s561 + $0x1] sm:$0xf]
      %v641 = vmul.f32 %v640, %v584
      %v642 = vadd.f32 %v639, %v641
      %v643 = vld [vmem:[%s561 + $0x2] sm:$0xf]
      %v644 = vmul.f32 %v643, %v591
      %v645 = vadd.f32 %v642, %v644
      %v646 = vld [vmem:[%s564] sm:$0xf]
      %v647 = vmul.f32 %v646, %v598
      %v648 = vadd.f32 %v645, %v647
      %v649 = vld [vmem:[%s564 + $0x1] sm:$0xf]
      %v650 = vmul.f32 %v649, %v605
      %v651 = vadd.f32 %v648, %v650
      %v652 = vld [vmem:[%s564 + $0x2] sm:$0xf]
      %v653 = vmul.f32 %v652, %v612
      %v654 = vadd.f32 %v651, %v653
      %v655 = vld [vmem:[%s567] sm:$0xf]
      %v656 = vmul.f32 %v655, %v619
      %v657 = vadd.f32 %v654, %v656
      %v658 = vld [vmem:[%s567 + $0x1] sm:$0xf]
      %v659 = vmul.f32 %v658, %v626
      %v660 = vadd.f32 %v657, %v659
      %v661 = vld [vmem:[%s567 + $0x2] sm:$0xf]
      %v662 = vmul.f32 %v661, %v633
      %v663 = vadd.f32 %v660, %v662
      %664 = vst.msk [vmem:[#allocation3 + $0x4] sm:$0xf] %vm562, %v663
      %v665 = vld [vmem:[%s564] sm:$0xf]
      %v666 = vmul.f32 %v665, %v577
      %v667 = vadd.f32 %v666, 0.0
      %v668 = vld [vmem:[%s564 + $0x1] sm:$0xf]
      %v669 = vmul.f32 %v668, %v584
      %v670 = vadd.f32 %v667, %v669
      %v671 = vld [vmem:[%s564 + $0x2] sm:$0xf]
      %v672 = vmul.f32 %v671, %v591
      %v673 = vadd.f32 %v670, %v672
      %v674 = vld [vmem:[%s567] sm:$0xf]
      %v675 = vmul.f32 %v674, %v598
      %v676 = vadd.f32 %v673, %v675
      %v677 = vld [vmem:[%s567 + $0x1] sm:$0xf]
      %v678 = vmul.f32 %v677, %v605
      %v679 = vadd.f32 %v676, %v678
      %v680 = vld [vmem:[%s567 + $0x2] sm:$0xf]
      %v681 = vmul.f32 %v680, %v612
      %v682 = vadd.f32 %v679, %v681
      %v683 = vld [vmem:[%s569] sm:$0xf]
      %v684 = vmul.f32 %v683, %v619
      %v685 = vadd.f32 %v682, %v684
      %v686 = vld [vmem:[%s569 + $0x1] sm:$0xf]
      %v687 = vmul.f32 %v686, %v626
      %v688 = vadd.f32 %v685, %v687
      %v689 = vld [vmem:[%s569 + $0x2] sm:$0xf]
      %v690 = vmul.f32 %v689, %v633
      %v691 = vadd.f32 %v688, %v690
      %692 = vst.msk [vmem:[#allocation3 + $0x8] sm:$0xf] %vm562, %v691
      %v693 = vld [vmem:[%s567] sm:$0xf]
      %v694 = vmul.f32 %v693, %v577
      %v695 = vadd.f32 %v694, 0.0
      %v696 = vld [vmem:[%s567 + $0x1] sm:$0xf]
      %v697 = vmul.f32 %v696, %v584
      %v698 = vadd.f32 %v695, %v697
      %v699 = vld [vmem:[%s567 + $0x2] sm:$0xf]
      %v700 = vmul.f32 %v699, %v591
      %v701 = vadd.f32 %v698, %v700
      %v702 = vld [vmem:[%s569] sm:$0xf]
      %v703 = vmul.f32 %v702, %v598
      %v704 = vadd.f32 %v701, %v703
      %v705 = vld [vmem:[%s569 + $0x1] sm:$0xf]
      %v706 = vmul.f32 %v705, %v605
      %v707 = vadd.f32 %v704, %v706
      %v708 = vld [vmem:[%s569 + $0x2] sm:$0xf]
      %v709 = vmul.f32 %v708, %v612
      %v710 = vadd.f32 %v707, %v709
      %s711 = scalar_lea.vmem [#allocation2], 40
      %v712 = vld [vmem:[%s711] sm:$0xf]
      %v713 = vmul.f32 %v712, %v619
      %v714 = vadd.f32 %v710, %v713
      %v715 = vld [vmem:[%s711 + $0x1] sm:$0xf]
      %v716 = vmul.f32 %v715, %v626
      %v717 = vadd.f32 %v714, %v716
      %v718 = vld [vmem:[%s711 + $0x2] sm:$0xf]
      %v719 = vmul.f32 %v718, %v633
      %v720 = vadd.f32 %v717, %v719
      %721 = vst.msk [vmem:[#allocation3 + $0xc] sm:$0xf] %vm562, %v720
      %v722 = vld [vmem:[#allocation3] sm:$0xff]
      %v723 = vld [vmem:[#allocation3 + $0x8] sm:$0xff]
      %v724 = vld [vmem:[%s5] sm:$0x1]
      %v726 = vlaneseq
      %v727 = vshrl.u32 %v726, 7
      %v728 = vsub.s32 0, %v727
      %v729 = vrot.slane %v724, %v728
      %v731 = vmul.f32 %v722, %v729
      %v732 = vmul.f32 %v723, %v729
      %v733 = vld [vmem:[%s6] sm:$0x1]
      %v735 = vlaneseq
      %v736 = vshrl.u32 %v735, 7
      %v737 = vsub.s32 0, %v736
      %v738 = vrot.slane %v733, %v737
      %v740 = vadd.f32 %v731, %v738
      %v741 = vadd.f32 %v732, %v738
      %v742 = vxor.u32 %v740, 2147483648
      %v743 = vxor.u32 %v741, 2147483648
      %v744 = vmul.f32 %v742, 1.442695
      %v745 = vpow.pop %v744
      %v746 = vmul.f32 %v743, 1.442695
      %v747 = vpow.pop %v746
      %v748 = vadd.f32 %v745, 1.0
      %v749 = vadd.f32 %v747, 1.0
      %v750 = vrcp.pop %v748
      %v751 = vmul.f32 1.0, %v750
      %v752 = vrcp.pop %v749
      %v753 = vmul.f32 1.0, %v752
      %v754 = vmul.f32 %v740, %v751
      %v755 = vmul.f32 %v741, %v753
      %vm756 = vcmask 392192
      %v757 = vsel %vm756, %v754, 0.0
      %v758 = vsel %vm756, %v755, 0.0
      %v759 = vadd.f32 %v757, %v758
      %v760 = vrot.slane %v759, 4
      %v761 = vadd.f32 %v759, %v760
      %v762 = vrot.slane %v761, 2
      %v763 = vadd.f32 %v761, %v762
      %v764 = vrot.slane %v763, 1
      %v765 = vadd.f32 %v763, %v764
      %v766 = vrcp.pop 16.0
      %v767 = vmul.f32 %v765, %v766
      %v768 = vld [vmem:[%s7] sm:$0xff]
      %v769 = vld [vmem:[%s7 + $0x8] sm:$0xff]
      %v770 = vld [vmem:[%s7 + $0x10] sm:$0xff]
      %v771 = vld [vmem:[%s7 + $0x18] sm:$0xff]
      %v772 = vld [vmem:[%s7 + $0x20] sm:$0xff]
      %v773 = vld [vmem:[%s7 + $0x28] sm:$0xff]
      %v774 = vld [vmem:[%s8] sm:$0x1]
      %v776 = vsel %vm756, %v767, 0
      %778 = vmatprep.subr.mxu0 0.0
      %779 = vmatpush1.msra.mxu0 %v768
      %780 = vmatprep.subr.mxu0 0.0
      %781 = vmatpush1.msra.mxu0 %v769
      %782 = vmatprep.subr.mxu0 0.0
      %783 = vmatpush1.msra.mxu0 %v770
      %784 = vmatprep.subr.mxu0 0.0
      %785 = vmatpush1.msra.mxu0 %v771
      %786 = vmatprep.subr.mxu0 0.0
      %787 = vmatpush1.msra.mxu0 %v772
      %788 = vmatprep.subr.mxu0 0.0
      %789 = vmatpush1.msra.mxu0 %v773
      %790 = vmatprep.subr.mxu0 0.0
      %791 = vmatpush1.msra.mxu0 0.0
      %792 = vmatprep.subr.mxu0 0.0
      %793 = vmatpush1.msra.mxu0 0.0
      %794 = vmatprep.subr.mxu0 0.0
      %795 = vmatpush1.msra.mxu0 0.0
      %796 = vmatprep.subr.mxu0 0.0
      %797 = vmatpush1.msra.mxu0 0.0
      %798 = vmatprep.subr.mxu0 0.0
      %799 = vmatpush1.msra.mxu0 0.0
      %800 = vmatprep.subr.mxu0 0.0
      %801 = vmatpush1.msra.mxu0 0.0
      %802 = vmatprep.subr.mxu0 0.0
      %803 = vmatpush1.msra.mxu0 0.0
      %804 = vmatprep.subr.mxu0 0.0
      %805 = vmatpush1.msra.mxu0 0.0
      %806 = vmatprep.subr.mxu0 0.0
      %807 = vmatpush1.msra.mxu0 0.0
      %808 = vmatprep.subr.mxu0 0.0
      %809 = vmatpush1.msra.mxu0 0.0
      %810 = vmatprep.subr.mxu0 0.0
      %811 = vmatpush1.msra.mxu0 0.0
      %812 = vmatprep.subr.mxu0 0.0
      %813 = vmatpush1.msra.mxu0 0.0
      %814 = vmatprep.subr.mxu0 0.0
      %815 = vmatpush1.msra.mxu0 0.0
      %816 = vmatprep.subr.mxu0 0.0
      %817 = vmatpush1.msra.mxu0 0.0
      %818 = vmatprep.subr.mxu0 0.0
      %819 = vmatpush1.msra.mxu0 0.0
      %820 = vmatprep.subr.mxu0 0.0
      %821 = vmatpush1.msra.mxu0 0.0
      %822 = vmatprep.subr.mxu0 0.0
      %823 = vmatpush1.msra.mxu0 0.0
      %824 = vmatprep.subr.mxu0 0.0
      %825 = vmatpush1.msra.mxu0 0.0
      %826 = vmatprep.subr.mxu0 0.0
      %827 = vmatpush1.msra.mxu0 0.0
      %828 = vmatprep.subr.mxu0 0.0
      %829 = vmatpush1.msra.mxu0 0.0
      %830 = vmatprep.subr.mxu0 0.0
      %831 = vmatpush1.msra.mxu0 0.0
      %832 = vmatprep.subr.mxu0 0.0
      %833 = vmatpush1.msra.mxu0 0.0
      %834 = vmatprep.subr.mxu0 0.0
      %835 = vmatpush1.msra.mxu0 0.0
      %836 = vmatprep.subr.mxu0 0.0
      %837 = vmatpush1.msra.mxu0 0.0
      %838 = vmatprep.subr.mxu0 0.0
      %839 = vmatpush1.msra.mxu0 0.0
      %840 = vmatprep.subr.mxu0 0.0
      %841 = vmatpush1.msra.mxu0 0.0
      %842 = vmatprep.mubr.f32.mxu0 0.0
      %843 = vmatmul.mubr.f32.gmra.mrb[0].mxu0 %v776
      %v844 = vpop.f32.mrb[0].mxu0
      %v845 = vadd.f32 %v774, %v844
      %v846 = vpop.f32.mrb[0].mxu0
      %847 = vdwg.mxu0
      %v848 = vxor.u32 %v845, 2147483648
      %v849 = vmul.f32 %v848, 1.442695
      %v850 = vpow.pop %v849
      %v851 = vadd.f32 %v850, 1.0
      %v852 = vrcp.pop %v851
      %v853 = vmul.f32 1.0, %v852
      %v854 = vmul.f32 %v845, %v853
      %v855 = vld [vmem:[%s9] sm:$0x3]
      %v856 = vld [vmem:[%s10] sm:$0x1]
      %vm857 = vcmask 15360
      %v859 = vsel %vm857, %v854, 0
      %vm861 = vcmask 1041408
      %v863 = vsel %vm861, %v855, 0
      %865 = vmatprep.subr.mxu0 0.0
      %866 = vmatpush1.msra.mxu0 %v863
      %867 = vmatprep.subr.mxu0 0.0
      %868 = vmatpush1.msra.mxu0 0.0
      %869 = vmatprep.subr.mxu0 0.0
      %870 = vmatpush1.msra.mxu0 0.0
      %871 = vmatprep.subr.mxu0 0.0
      %872 = vmatpush1.msra.mxu0 0.0
      %873 = vmatprep.subr.mxu0 0.0
      %874 = vmatpush1.msra.mxu0 0.0
      %875 = vmatprep.subr.mxu0 0.0
      %876 = vmatpush1.msra.mxu0 0.0
      %877 = vmatprep.subr.mxu0 0.0
      %878 = vmatpush1.msra.mxu0 0.0
      %879 = vmatprep.subr.mxu0 0.0
      %880 = vmatpush1.msra.mxu0 0.0
      %881 = vmatprep.subr.mxu0 0.0
      %882 = vmatpush1.msra.mxu0 0.0
      %883 = vmatprep.subr.mxu0 0.0
      %884 = vmatpush1.msra.mxu0 0.0
      %885 = vmatprep.subr.mxu0 0.0
      %886 = vmatpush1.msra.mxu0 0.0
      %887 = vmatprep.subr.mxu0 0.0
      %888 = vmatpush1.msra.mxu0 0.0
      %889 = vmatprep.subr.mxu0 0.0
      %890 = vmatpush1.msra.mxu0 0.0
      %891 = vmatprep.subr.mxu0 0.0
      %892 = vmatpush1.msra.mxu0 0.0
      %893 = vmatprep.subr.mxu0 0.0
      %894 = vmatpush1.msra.mxu0 0.0
      %895 = vmatprep.subr.mxu0 0.0
      %896 = vmatpush1.msra.mxu0 0.0
      %897 = vmatprep.subr.mxu0 0.0
      %898 = vmatpush1.msra.mxu0 0.0
      %899 = vmatprep.subr.mxu0 0.0
      %900 = vmatpush1.msra.mxu0 0.0
      %901 = vmatprep.subr.mxu0 0.0
      %902 = vmatpush1.msra.mxu0 0.0
      %903 = vmatprep.subr.mxu0 0.0
      %904 = vmatpush1.msra.mxu0 0.0
      %905 = vmatprep.subr.mxu0 0.0
      %906 = vmatpush1.msra.mxu0 0.0
      %907 = vmatprep.subr.mxu0 0.0
      %908 = vmatpush1.msra.mxu0 0.0
      %909 = vmatprep.subr.mxu0 0.0
      %910 = vmatpush1.msra.mxu0 0.0
      %911 = vmatprep.subr.mxu0 0.0
      %912 = vmatpush1.msra.mxu0 0.0
      %913 = vmatprep.subr.mxu0 0.0
      %914 = vmatpush1.msra.mxu0 0.0
      %915 = vmatprep.subr.mxu0 0.0
      %916 = vmatpush1.msra.mxu0 0.0
      %917 = vmatprep.subr.mxu0 0.0
      %918 = vmatpush1.msra.mxu0 0.0
      %919 = vmatprep.subr.mxu0 0.0
      %920 = vmatpush1.msra.mxu0 0.0
      %921 = vmatprep.subr.mxu0 0.0
      %922 = vmatpush1.msra.mxu0 0.0
      %923 = vmatprep.subr.mxu0 0.0
      %924 = vmatpush1.msra.mxu0 0.0
      %925 = vmatprep.subr.mxu0 0.0
      %926 = vmatpush1.msra.mxu0 0.0
      %927 = vmatprep.subr.mxu0 0.0
      %928 = vmatpush1.msra.mxu0 0.0
      %929 = vmatprep.mubr.f32.mxu0 0.0
      %930 = vmatmul.mubr.f32.gmra.mrb[0].mxu0 %v859
      %v931 = vpop.f32.mrb[0].mxu0
      %v932 = vadd.f32 %v856, %v931
      %v933 = vpop.f32.mrb[0].mxu0
      %934 = vdwg.mxu0
      %v935 = vxor.u32 %v932, 2147483648
      %v936 = vmul.f32 %v935, 1.442695
      %v937 = vpow.pop %v936
      %v938 = vadd.f32 %v937, 1.0
      %v939 = vrcp.pop %v938
      %v940 = vmul.f32 1.0, %v939
      %v941 = vlaneseq
      %v942 = vshrl.u32 %v941, 7
      %v943 = vsub.s32 0, %v942
      %v944 = vrot.slane %v940, %v943
      %v945 = vmul.f32 %v754, %v944
      %v946 = vmul.f32 %v755, %v944
      %v947 = vpack.c.bf16 %v946, %v945
      %v948 = vld [vmem:[%s11] sm:$0xf]
      %v949 = vld [vmem:[%s11 + $0x4] sm:$0xf]
      %v950 = vld [vmem:[%s11 + $0x8] sm:$0xf]
      %v951 = vld [vmem:[%s11 + $0xc] sm:$0xf]
      %v952 = vld [vmem:[%s11 + $0x10] sm:$0xf]
      %v953 = vld [vmem:[%s11 + $0x14] sm:$0xf]
      %v960 = vunpack.c.l.b16 %v948
      %v961 = vunpack.c.l.b16 %v949
      %v962 = vunpack.c.l.b16 %v950
      %v963 = vunpack.c.l.b16 %v951
      %v964 = vunpack.c.l.b16 %v952
      %v965 = vunpack.c.l.b16 %v953
      %v966 = vpack.c.b16 %v961, %v960
      %v967 = vpack.c.b16 %v963, %v962
      %v968 = vpack.c.b16 %v965, %v964
      %v973 = vsel %vm756, %v947, 0
      %975 = vmatprep.subr.bf16.mxu0 0
      %976 = vmatpush1.bf16.msra.mxu0 %v966
      %977 = vmatprep.subr.bf16.mxu0 0
      %978 = vmatpush1.bf16.msra.mxu0 %v967
      %979 = vmatprep.subr.bf16.mxu0 0
      %980 = vmatpush1.bf16.msra.mxu0 %v968
      %981 = vmatprep.subr.bf16.mxu0 0
      %982 = vmatpush1.bf16.msra.mxu0 0
      %983 = vmatprep.subr.bf16.mxu0 0
      %984 = vmatpush1.bf16.msra.mxu0 0
      %985 = vmatprep.subr.bf16.mxu0 0
      %986 = vmatpush1.bf16.msra.mxu0 0
      %987 = vmatprep.subr.bf16.mxu0 0
      %988 = vmatpush1.bf16.msra.mxu0 0
      %989 = vmatprep.subr.bf16.mxu0 0
      %990 = vmatpush1.bf16.msra.mxu0 0
      %991 = vmatprep.subr.bf16.mxu0 0
      %992 = vmatpush1.bf16.msra.mxu0 0
      %993 = vmatprep.subr.bf16.mxu0 0
      %994 = vmatpush1.bf16.msra.mxu0 0
      %995 = vmatprep.subr.bf16.mxu0 0
      %996 = vmatpush1.bf16.msra.mxu0 0
      %997 = vmatprep.subr.bf16.mxu0 0
      %998 = vmatpush1.bf16.msra.mxu0 0
      %999 = vmatprep.subr.bf16.mxu0 0
      %1000 = vmatpush1.bf16.msra.mxu0 0
      %1001 = vmatprep.subr.bf16.mxu0 0
      %1002 = vmatpush1.bf16.msra.mxu0 0
      %1003 = vmatprep.subr.bf16.mxu0 0
      %1004 = vmatpush1.bf16.msra.mxu0 0
      %1005 = vmatprep.subr.bf16.mxu0 0
      %1006 = vmatpush1.bf16.msra.mxu0 0
      %1007 = vmatprep.mubr.bf16.mxu0 0
      %1008 = vmatmul.mubr.bf16.gmra.mrb[0].mxu0 %v973
      %v1009 = vpop.f32.mrb[0].mxu0
      %v1010 = vadd.f32 0.0, %v1009
      %v1011 = vpop.f32.mrb[0].mxu0
      %v1012 = vpop.f32.mrb[0].mxu0
      %v1013 = vadd.f32 0.0, %v1012
      %v1014 = vpop.f32.mrb[0].mxu0
      %1015 = vdwg.mxu0
      %v1016 = vld [vmem:[%s12] sm:$0x1]
      %v1018 = vlaneseq
      %v1019 = vshrl.u32 %v1018, 7
      %v1020 = vsub.s32 0, %v1019
      %v1021 = vrot.slane %v1016, %v1020
      %v1023 = vmul.f32 %v1010, %v1021
      %v1024 = vmul.f32 %v1013, %v1021
      %v1025 = vld [vmem:[%s13] sm:$0x1]
      %v1027 = vlaneseq
      %v1028 = vshrl.u32 %v1027, 7
      %v1029 = vsub.s32 0, %v1028
      %v1030 = vrot.slane %v1025, %v1029
      %v1032 = vadd.f32 %v1023, %v1030
      %v1033 = vadd.f32 %v1024, %v1030
      %v1034 = vadd.f32 %v1032, %v469
      %v1035 = vadd.f32 %v1033, %v470
      %1036 = vst.msk [vmem:[%s467] sm:$0xff] %vm473, %v1034
      %1037 = vst.msk [vmem:[%s467 + $0x8] sm:$0xff] %vm473, %v1035
      %p1038 = scmp.lt.s32.totalorder %s25, 1
      %s1039 = scalar_select %p1038, %s25, 1
      %s1040 = smul.addr %s1039, 2
      %s1041 = smul.addr %s1040, 8
      %s1042 = scalar_lea.vmem %s14, %s1041
      // Predicated region
      $region77: #{_lambda_.7} parent=75 // pred_check
        %p1043 = pneg %p342
      $region78: #{_lambda_.7} parent=75 // pred_check_branch
        %1045 = sbr.rel (%p1043) target = $region80
      $region79: #{_lambda_.7} parent=75 // pred_region
        _
      $region80: #{_lambda_.7} parent=75 // pred_fallthru
        _
    $region76: #{_lambda_.7} parent=5 // pred_fallthru
      _
    %p1046 = scmp.le.s32.totalorder 2, %s20
    // Predicated region
    $region81: #{_lambda_.7} parent=5 // pred_check
      %p1047 = pneg %p1046
    $region82: #{_lambda_.7} parent=5 // pred_check_branch
      %1049 = sbr.rel (%p1047) target = $region84
    $region83: #{_lambda_.7} parent=5 // pred_region
      %s1050 = ssub.s32 %s20, 2
      // Predicated region
      $region85: #{_lambda_.7} parent=83 // pred_check
        %p1051 = pneg %p348
      $region86: #{_lambda_.7} parent=83 // pred_check_branch
        %1053 = sbr.rel (%p1051) target = $region88
      $region87: #{_lambda_.7} parent=83 // pred_region
        %p1054 = scmp.lt.s32.totalorder %s26, 1
        %s1055 = scalar_select %p1054, %s26, 1
        %s1056 = smul.addr %s1055, 2
        %s1057 = smul.addr %s1056, 8
        %s1058 = scalar_lea.vmem %s14, %s1057
      $region88: #{_lambda_.7} parent=83 // pred_fallthru
        _
    $region84: #{_lambda_.7} parent=5 // pred_fallthru
      _
  $region6: #{_lambda_.7} parent=0 // loop_footer
    %s24 = sadd.s32 1, %s20
  $region7: #{_lambda_.7} parent=0 // loop_footer_branch
    %19 = sbr.rel target = $region3
  $region8: #{_lambda_.7} parent=0 // loop_exit
    _

</llo_original>
